<compile_context>
chip_gen: v5e
topology: v5e:2x2
jax: 0.10.0
libtpu: 0.0.40
codegen_flags: <defaults>
</compile_context>

<pallas_src>
import jax
import jax.numpy as jnp
import numpy as np
from jax.experimental import pallas as pl
from jax.experimental.pallas import tpu as pltpu

IMG = 256                       # image_size
PATCH = 16                      # patch_size == conv stride
IN_C = 3                        # in_channel
EMBED = 768                     # embed_dim (conv out-channels)
GRID_HW = IMG // PATCH          # 16 patches per side
N_TOK = GRID_HW * GRID_HW       # 256 tokens per image
K_DIM = IN_C * PATCH * PATCH    # 768 = flattened patch length

# Token tile (matmul rows).  M = B*256 is always divisible by 128; 128 tokens
# per step keeps the MXU tile efficient on v5e while giving the pipeline >=4
# steps at B=2 (2 per core on v7x after the "parallel" megacore split).
# With double buffering: bf16 in (2x192 KiB) + bf16 weight (1.18 MiB) +
# bf16 out (2x192 KiB) ~= 2 MiB of VMEM.
TM = 128


def _patch_proj_kernel(p_ref, w_ref, b_ref, o_ref):
    # p_ref: (TM, K) bf16 patches, w_ref: (K, E) bf16, b_ref: (1, E) f32,
    # o_ref: (TM, E) out dtype.  MXU bf16 matmul, f32 accumulate, fused bias.
    acc = jnp.dot(p_ref[...], w_ref[...], preferred_element_type=jnp.float32)
    o_ref[...] = (acc + b_ref[...]).astype(o_ref.dtype)


def patch_projection(patches, w_mat, bias2d, out_dtype=jnp.bfloat16):
    """patches: (M, K) bf16, w_mat: (K, E) bf16, bias2d: (1, E) f32 -> (M, E)."""
    M, K = patches.shape
    E = w_mat.shape[1]
    assert M % TM == 0  # M = B * 256, always divisible by TM = 128
    return pl.pallas_call(
        _patch_proj_kernel,
        out_shape=jax.ShapeDtypeStruct((M, E), out_dtype),
        grid_spec=pltpu.PrefetchScalarGridSpec(
            num_scalar_prefetch=0,
            grid=(M // TM,),
            in_specs=[
                pl.BlockSpec((TM, K), lambda i: (i, 0)),
                # Constant index: weight stays resident across grid steps.
                # TODO(synk): v7x -- use VMEM_SHARED/CMEM so both cores share
                # one weight fetch instead of duplicating the HBM load.
                pl.BlockSpec((K, E), lambda i: (0, 0)),
                pl.BlockSpec((1, E), lambda i: (0, 0)),
            ],
            out_specs=pl.BlockSpec((TM, E), lambda i: (i, 0)),
        ),
        compiler_params=pltpu.CompilerParams(
            dimension_semantics=("parallel",)),
    )(patches, w_mat, bias2d)


def prepare_patch_embed_params(weight, bias):
    """One-time (model init) parameter prep -- NOT on the per-call path.

    weight: (EMBED, IN_C, PATCH, PATCH) Conv2d weight (Cout, Cin, kH, kW)
    bias:   (EMBED,)
    returns w_mat (K_DIM, EMBED) bf16 with rows in (c, p, q) order and
            bias2d (1, EMBED) f32.
    """
    w_mat = weight.reshape(EMBED, K_DIM).T.astype(jnp.bfloat16)
    bias2d = bias.reshape(1, EMBED).astype(jnp.float32)
    return w_mat, bias2d


def patch_embedding_forward(x, w_mat, bias2d, *, out_dtype=jnp.bfloat16):
    """
    x:      (B, IN_C, IMG, IMG)  f32 NCHW image
    w_mat:  (K_DIM, EMBED) bf16  -- from prepare_patch_embed_params
    bias2d: (1, EMBED) f32       -- from prepare_patch_embed_params
    returns (B, N_TOK, EMBED) in out_dtype -- matches PyTorch
            Conv2d(stride=kernel) -> flatten(2) -> transpose(1, 2)
    """
    B = x.shape[0]
    # im2col: (b, c, i, p, j, q) -> (b, i, j, c, p, q), fused by XLA with the
    # bf16 downcast into one half-width pass over the image.
    # TODO(synk): fold this patch gather into the kernel itself; it needs a
    # lane<->sublane shuffle that a rectangular BlockSpec cannot express.
    xr = x.astype(jnp.bfloat16).reshape(B, IN_C, GRID_HW, PATCH, GRID_HW, PATCH)
    patches = xr.transpose(0, 2, 4, 1, 3, 5).reshape(B * N_TOK, K_DIM)

    out = patch_projection(patches, w_mat, bias2d, out_dtype)  # (B*N_TOK, EMBED)
    return out.reshape(B, N_TOK, EMBED)                        # free leading-dim split


if __name__ == "__main__":
    key = jax.random.PRNGKey(0)
    k_x, k_w, k_b = jax.random.split(key, 3)

    B = 2
    x = jax.random.normal(k_x, (B, IN_C, IMG, IMG), dtype=jnp.float32)
    # Deterministic synthetic parameters (Conv2d(3, 768, 16, stride=16) shapes).
    weight = 0.02 * jax.random.normal(
        k_w, (EMBED, IN_C, PATCH, PATCH), dtype=jnp.float32)
    bias = 0.1 * jax.random.normal(k_b, (EMBED,), dtype=jnp.float32)

    # One-time parameter prep (model init) -- hoisted off the per-call path.
    w_mat, bias2d = jax.block_until_ready(prepare_patch_embed_params(weight, bias))

    fwd = jax.jit(patch_embedding_forward, static_argnames=("out_dtype",))
    out = jax.block_until_ready(fwd(x, w_mat, bias2d))
    assert out.shape == (B, N_TOK, EMBED)
    assert out.dtype == jnp.bfloat16

    # Reference: XLA strided conv on the same bf16-quantized operands
    # (f32 values), then flatten(2) + transpose(1, 2) like the PyTorch module.
    xq = x.astype(jnp.bfloat16).astype(jnp.float32)
    wq = weight.astype(jnp.bfloat16).astype(jnp.float32)
    ref = jax.lax.conv_general_dilated(
        xq, wq, window_strides=(PATCH, PATCH), padding="VALID",
        dimension_numbers=("NCHW", "OIHW", "NCHW"))
    ref = ref + bias.reshape(1, EMBED, 1, 1)
    ref = ref.reshape(B, EMBED, N_TOK).transpose(0, 2, 1)

    np.testing.assert_allclose(np.asarray(out.astype(jnp.float32)),
                               np.asarray(ref), rtol=2e-2, atol=2e-2)
    print("KERNEL_OK")
</pallas_src>

<mosaic_0001>
module attributes {stable_mosaic.version = 11 : i64} {
  func.func @_patch_proj_kernel(%arg0: i32, %arg1: memref<128x768xbf16, #tpu.memory_space<vmem>>, %arg2: memref<768x768xbf16, #tpu.memory_space<vmem>>, %arg3: memref<1x768xf32, #tpu.memory_space<vmem>>, %arg4: memref<128x768xbf16, #tpu.memory_space<vmem>>) attributes {dimension_semantics = [#tpu.dimension_semantics<parallel>], iteration_bounds = array<i64: 4>, scalar_prefetch = 0 : i64, scratch_operands = 0 : i64, tpu.core_type = #tpu.core_type<tc>, window_params = [{transform_indices = @transform_0, window_bounds = array<i64: 128, 768>}, {pipeline_mode = #tpu.pipeline_mode<synchronous>, transform_indices = @transform_1, window_bounds = array<i64: 768, 768>}, {pipeline_mode = #tpu.pipeline_mode<synchronous>, transform_indices = @transform_2, window_bounds = array<i64: 1, 768>}, {transform_indices = @transform_3, window_bounds = array<i64: 128, 768>}]} {
    %c0 = arith.constant 0 : index
    %c0_0 = arith.constant 0 : index
    %0 = vector.load %arg1[%c0, %c0_0] : memref<128x768xbf16, #tpu.memory_space<vmem>>, vector<128x768xbf16>
    %c0_1 = arith.constant 0 : index
    %c0_2 = arith.constant 0 : index
    %1 = vector.load %arg2[%c0_1, %c0_2] : memref<768x768xbf16, #tpu.memory_space<vmem>>, vector<768x768xbf16>
    %cst = arith.constant dense<0.000000e+00> : vector<128x768xf32>
    %2 = tpu.matmul %0, %1, %cst {dimension_numbers = #tpu.dot_dimension_numbers<[1], [0], [0], [1], [0, 0, 1, 1], [], []>} : vector<128x768xbf16>, vector<768x768xbf16>, vector<128x768xf32> -> vector<128x768xf32>
    %c0_3 = arith.constant 0 : index
    %c0_4 = arith.constant 0 : index
    %3 = vector.load %arg3[%c0_3, %c0_4] : memref<1x768xf32, #tpu.memory_space<vmem>>, vector<1x768xf32>
    %4 = vector.broadcast %3 : vector<1x768xf32> to vector<128x768xf32>
    %5 = arith.addf %2, %4 : vector<128x768xf32>
    %6 = arith.truncf %5 : vector<128x768xf32> to vector<128x768xbf16>
    %c0_5 = arith.constant 0 : index
    %c0_6 = arith.constant 0 : index
    %7 = vector.load %arg4[%c0_5, %c0_6] : memref<128x768xbf16, #tpu.memory_space<vmem>>, vector<128x768xbf16>
    tpu.vector_store %arg4[%c0_5, %c0_6], %6 {strides = array<i32>} : memref<128x768xbf16, #tpu.memory_space<vmem>>, vector<128x768xbf16>,
    return
  }
  func.func @transform_0(%arg0: i32) -> (i32, i32) {
    %c0_i32 = arith.constant 0 : i32
    %c0_i32_0 = arith.constant 0 : i32
    return %arg0, %c0_i32 : i32, i32
  }
  func.func @transform_1(%arg0: i32) -> (i32, i32) {
    %c0_i32 = arith.constant 0 : i32
    %c0_i32_0 = arith.constant 0 : i32
    %c0_i32_1 = arith.constant 0 : i32
    return %c0_i32, %c0_i32_0 : i32, i32
  }
  func.func @transform_2(%arg0: i32) -> (i32, i32) {
    %c0_i32 = arith.constant 0 : i32
    %c0_i32_0 = arith.constant 0 : i32
    %c0_i32_1 = arith.constant 0 : i32
    return %c0_i32, %c0_i32_0 : i32, i32
  }
  func.func @transform_3(%arg0: i32) -> (i32, i32) {
    %c0_i32 = arith.constant 0 : i32
    %c0_i32_0 = arith.constant 0 : i32
    return %arg0, %c0_i32 : i32, i32
  }
}

</mosaic_0001>

<llo_original>
// kernel: patch_embedding_forward.1
$region0: #{patch_embedding_forward.1}
  #allocation0 [shape = 'u32[]', space=smem, size = 0x4, offset = 0x4, fixed_abs, tag = 'smem constant byte address 0x4 - core index']
  #allocation1 [shape = 'u32[72,128]{1,0:T(1,128)}', space=vmem, size = 0x9000, scoped, tag = 'internal scratch']
  %s0 = inlined_call_operand.vmem [shape: bf16[512,768], index: 0, kind: input, shape index: {}]
  %s1 = inlined_call_operand.vmem [shape: bf16[768,768], index: 1, kind: input, shape index: {}]
  %s2 = inlined_call_operand.vmem [shape: f32[1,768], index: 2, kind: input, shape index: {}]
  %s3 = inlined_call_operand.hbm [shape: bf16[512,768], index: 3, kind: output, shape index: {}]
  %s4 = sld [smem:[#allocation0]]
  $region45: #{patch_embedding_forward.1} parent=0
    _
  %s6 = ssub.s32 1, %s4
  %s7 = scalar_select 0, %s6, %s4
  $region1: #{patch_embedding_forward.1} parent=0
    #allocation2 [shape = 'u8[393216]{0}', space=vmem, size = 0x60000, scoped, tag = 'output window, operand 0']
    #allocation3 [shape = 's32[2]{0}', space=sflag, size = 0x8, scoped, tag = 'scoped memory for patch_embedding_forward.1']
    %8 = vsyncpa [#allocation3], 0
    %s9 = scalar_lea.sflag [#allocation3], 1
    %10 = vsyncpa %s9, 0
    loop: start=0, step=1, limit=6
    $region2: #{patch_embedding_forward.1} parent=1 // loop_pre_header
      _
    $region3: #{patch_embedding_forward.1} parent=1 // loop_header
      %s12 = sphi 0, %s16
      %p13 = scmp.ge.s32.totalorder %s12, 6
      %s22 = sphi 0, %s24
      %s25 = sphi 0, %s22
      %s26 = sphi 0, %s25
      %s42 = sphi 0, %s26
      %s46 = sphi 0, %s46
      %s48 = sphi 0, %s46
      %s49 = sphi 0, %s48
      %s63 = sphi 0, %s49
      %s67 = sphi 0, %s67
      %s69 = sphi 0, %s67
      %s70 = sphi 0, %s69
      %s84 = sphi 0, %s70
      %s90 = sphi 0, %s92
      %s93 = sphi 0, %s90
      %s94 = sphi 0, %s93
      %s110 = sphi 0, %s94
    $region4: #{patch_embedding_forward.1} parent=1 // loop_header_branch
      %15 = sbr.rel (%p13) target = $region8
    $region5: #{patch_embedding_forward.1} parent=1 // loop_body
      %s17 = ssub.s32 %s12, 1
      %s18 = ssub.s32 %s12, 2
      %s19 = sadd.s32 %s12, 1
      %s20 = ssub.s32 %s12, %s19
      %p21 = scmp.eq.s32.totalorder %s20, 0
      %s23 = sadd.s32 %s22, 1
      %s24 = scalar_select %p21, %s22, %s23
      %p27 = pneg %p21
      %p28 = scmp.eq.s32.totalorder %s12, 3
      %p29 = por %p27, %p28
      %p30 = scmp.ne.s32.totalorder %s22, %s25
      %p31 = scmp.eq.s32.totalorder %s12, 0
      %p32 = por %p30, %p31
      %p33 = scmp.ne.s32.totalorder %s22, %s25
      %p34 = scmp.eq.s32.totalorder %s17, 3
      %p35 = por %p33, %p34
      %p36 = scmp.ne.s32.totalorder %s25, %s26
      %p37 = scmp.eq.s32.totalorder %s17, 0
      %p38 = por %p36, %p37
      %p39 = scmp.ne.s32.totalorder %s25, %s26
      %p40 = scmp.eq.s32.totalorder %s18, 3
      %p41 = por %p39, %p40
      %p43 = scmp.ne.s32.totalorder %s26, %s42
      %p44 = scmp.eq.s32.totalorder %s18, 0
      %p45 = por %p43, %p44
      %s47 = sadd.s32 %s46, 1
      %p50 = scmp.eq.s32.totalorder %s12, 3
      %p51 = scmp.ne.s32.totalorder %s46, %s48
      %p52 = scmp.eq.s32.totalorder %s12, 0
      %p53 = por %p51, %p52
      %p54 = scmp.ne.s32.totalorder %s46, %s48
      %p55 = scmp.eq.s32.totalorder %s17, 3
      %p56 = por %p54, %p55
      %p57 = scmp.ne.s32.totalorder %s48, %s49
      %p58 = scmp.eq.s32.totalorder %s17, 0
      %p59 = por %p57, %p58
      %p60 = scmp.ne.s32.totalorder %s48, %s49
      %p61 = scmp.eq.s32.totalorder %s18, 3
      %p62 = por %p60, %p61
      %p64 = scmp.ne.s32.totalorder %s49, %s63
      %p65 = scmp.eq.s32.totalorder %s18, 0
      %p66 = por %p64, %p65
      %s68 = sadd.s32 %s67, 1
      %p71 = scmp.eq.s32.totalorder %s12, 3
      %p72 = scmp.ne.s32.totalorder %s67, %s69
      %p73 = scmp.eq.s32.totalorder %s12, 0
      %p74 = por %p72, %p73
      %p75 = scmp.ne.s32.totalorder %s67, %s69
      %p76 = scmp.eq.s32.totalorder %s17, 3
      %p77 = por %p75, %p76
      %p78 = scmp.ne.s32.totalorder %s69, %s70
      %p79 = scmp.eq.s32.totalorder %s17, 0
      %p80 = por %p78, %p79
      %p81 = scmp.ne.s32.totalorder %s69, %s70
      %p82 = scmp.eq.s32.totalorder %s18, 3
      %p83 = por %p81, %p82
      %p85 = scmp.ne.s32.totalorder %s70, %s84
      %p86 = scmp.eq.s32.totalorder %s18, 0
      %p87 = por %p85, %p86
      %s88 = ssub.s32 %s12, %s19
      %p89 = scmp.eq.s32.totalorder %s88, 0
      %s91 = sadd.s32 %s90, 1
      %s92 = scalar_select %p89, %s90, %s91
      %p95 = pneg %p89
      %p96 = scmp.eq.s32.totalorder %s12, 3
      %p97 = por %p95, %p96
      %p98 = scmp.ne.s32.totalorder %s90, %s93
      %p99 = scmp.eq.s32.totalorder %s12, 0
      %p100 = por %p98, %p99
      %p101 = scmp.ne.s32.totalorder %s90, %s93
      %p102 = scmp.eq.s32.totalorder %s17, 3
      %p103 = por %p101, %p102
      %p104 = scmp.ne.s32.totalorder %s93, %s94
      %p105 = scmp.eq.s32.totalorder %s17, 0
      %p106 = por %p104, %p105
      %p107 = scmp.ne.s32.totalorder %s93, %s94
      %p108 = scmp.eq.s32.totalorder %s18, 3
      %p109 = por %p107, %p108
      %p111 = scmp.ne.s32.totalorder %s94, %s110
      %p112 = scmp.eq.s32.totalorder %s18, 0
      %p113 = por %p111, %p112
      %p114 = scmp.le.s32.totalorder 1, %s12
      %p115 = scmp.lt.s32.totalorder %s12, 5
      %p116 = pnand %p114, %p115
      %p117 = pneg %p116
      // Predicated region
      $region9: #{patch_embedding_forward.1} parent=5 // pred_check
        _
      $region10: #{patch_embedding_forward.1} parent=5 // pred_check_branch
        %119 = sbr.rel (%p116) target = $region12
      $region11: #{patch_embedding_forward.1} parent=5 // pred_region
        %s120 = ssub.s32 %s12, 1
        // Predicated region
        $region13: #{patch_embedding_forward.1} parent=11 // pred_check
          %p121 = pneg %p59
        $region14: #{patch_embedding_forward.1} parent=11 // pred_check_branch
          %123 = sbr.rel (%p121) target = $region16
        $region15: #{patch_embedding_forward.1} parent=11 // pred_region
          _
        $region16: #{patch_embedding_forward.1} parent=11 // pred_fallthru
          _
        // Predicated region
        $region17: #{patch_embedding_forward.1} parent=11 // pred_check
          %p124 = pneg %p80
        $region18: #{patch_embedding_forward.1} parent=11 // pred_check_branch
          %126 = sbr.rel (%p124) target = $region20
        $region19: #{patch_embedding_forward.1} parent=11 // pred_region
          _
        $region20: #{patch_embedding_forward.1} parent=11 // pred_fallthru
          _
      $region12: #{patch_embedding_forward.1} parent=5 // pred_fallthru
        _
      %p127 = scmp.lt.s32.totalorder %s12, 4
      // Predicated region
      $region21: #{patch_embedding_forward.1} parent=5 // pred_check
        %p128 = pneg %p127
      $region22: #{patch_embedding_forward.1} parent=5 // pred_check_branch
        %130 = sbr.rel (%p128) target = $region24
      $region23: #{patch_embedding_forward.1} parent=5 // pred_region
        // Predicated region
        $region25: #{patch_embedding_forward.1} parent=23 // pred_check
          %p131 = pneg %p32
        $region26: #{patch_embedding_forward.1} parent=23 // pred_check_branch
          %133 = sbr.rel (%p131) target = $region28
        $region27: #{patch_embedding_forward.1} parent=23 // pred_region
          %s134 = smul.u32 16, %s12
          %p135 = scmp.lt.s32.totalorder %s134, 63
          %s136 = scalar_select %p135, %s134, 63
          %s137 = smul.addr %s136, 6
          %s138 = smul.addr %s137, 4
          %s139 = scalar_lea.vmem %s0, %s138
          %s140 = smul.u32 16, %s12
        $region28: #{patch_embedding_forward.1} parent=23 // pred_fallthru
          _
      $region24: #{patch_embedding_forward.1} parent=5 // pred_fallthru
        _
      %p141 = scmp.le.s32.totalorder 1, %s12
      %p142 = scmp.lt.s32.totalorder %s12, 5
      %p143 = pnand %p141, %p142
      %p144 = pneg %p143
      // Predicated region
      $region29: #{patch_embedding_forward.1} parent=5 // pred_check
        _
      $region30: #{patch_embedding_forward.1} parent=5 // pred_check_branch
        %146 = sbr.rel (%p143) target = $region32
      $region31: #{patch_embedding_forward.1} parent=5 // pred_region
        %s147 = ssub.s32 %s12, 1
        %s148 = smul.u32 16, %s17
        %p149 = scmp.lt.s32.totalorder %s148, 63
        %s150 = scalar_select %p149, %s148, 63
        %s151 = smul.addr %s150, 6
        %s152 = smul.addr %s151, 4
        %s153 = scalar_lea.vmem %s0, %s152
        %p154 = pneg %p38
        %p155 = pneg %p35
        %p156 = pneg %p59
        %p157 = pneg %p56
        %p158 = pneg %p80
        %p159 = pneg %p77
        %p160 = pneg %p106
        %p161 = pneg %p103
        %s162 = sand.u32 %s93, 1
        %s163 = scalar_lea.sflag [#allocation3], %s162
        %s164 = sand.u32 %s93, 1
        %s165 = smul.addr %s164, 384
        %s166 = scalar_lea.vmem [#allocation2], %s165
        %s167 = smul.u32 16, %s17
        %p168 = scmp.lt.s32.totalorder %s167, 63
        %s169 = scalar_select %p168, %s167, 63
        %s170 = smul.addr %s169, 6
        %s171 = smul.addr %s170, 4
        %s172 = scalar_lea.vmem %s0, %s171
        %s173 = smul.u32 16, %s17
        %s174 = smul.u32 16, %s17
        %v175 = vld [vmem:[%s172] sm:$0xff]
        %v176 = vld [vmem:[%s172 + $0x8] sm:$0xff]
        %v177 = vld [vmem:[%s172 + $0x10] sm:$0xff]
        %v178 = vld [vmem:[%s172 + $0x18] sm:$0xff]
        %v179 = vld [vmem:[%s172 + $0x20] sm:$0xff]
        %v180 = vld [vmem:[%s172 + $0x28] sm:$0xff]
        %v181 = vld [vmem:[%s172 + $0x30] sm:$0xff]
        %v182 = vld [vmem:[%s172 + $0x38] sm:$0xff]
        %v183 = vld [vmem:[%s172 + $0x40] sm:$0xff]
        %v184 = vld [vmem:[%s172 + $0x48] sm:$0xff]
        %v185 = vld [vmem:[%s172 + $0x50] sm:$0xff]
        %v186 = vld [vmem:[%s172 + $0x58] sm:$0xff]
        %v187 = vld [vmem:[%s172 + $0x60] sm:$0xff]
        %v188 = vld [vmem:[%s172 + $0x68] sm:$0xff]
        %v189 = vld [vmem:[%s172 + $0x70] sm:$0xff]
        %v190 = vld [vmem:[%s172 + $0x78] sm:$0xff]
        %v191 = vld [vmem:[%s172 + $0x80] sm:$0xff]
        %v192 = vld [vmem:[%s172 + $0x88] sm:$0xff]
        %v193 = vld [vmem:[%s172 + $0x90] sm:$0xff]
        %v194 = vld [vmem:[%s172 + $0x98] sm:$0xff]
        %v195 = vld [vmem:[%s172 + $0xa0] sm:$0xff]
        %v196 = vld [vmem:[%s172 + $0xa8] sm:$0xff]
        %v197 = vld [vmem:[%s172 + $0xb0] sm:$0xff]
        %v198 = vld [vmem:[%s172 + $0xb8] sm:$0xff]
        %v199 = vld [vmem:[%s172 + $0xc0] sm:$0xff]
        %v200 = vld [vmem:[%s172 + $0xc8] sm:$0xff]
        %v201 = vld [vmem:[%s172 + $0xd0] sm:$0xff]
        %v202 = vld [vmem:[%s172 + $0xd8] sm:$0xff]
        %v203 = vld [vmem:[%s172 + $0xe0] sm:$0xff]
        %v204 = vld [vmem:[%s172 + $0xe8] sm:$0xff]
        %v205 = vld [vmem:[%s172 + $0xf0] sm:$0xff]
        %v206 = vld [vmem:[%s172 + $0xf8] sm:$0xff]
        %v207 = vld [vmem:[%s172 + $0x100] sm:$0xff]
        %v208 = vld [vmem:[%s172 + $0x108] sm:$0xff]
        %v209 = vld [vmem:[%s172 + $0x110] sm:$0xff]
        %v210 = vld [vmem:[%s172 + $0x118] sm:$0xff]
        %v211 = vld [vmem:[%s172 + $0x120] sm:$0xff]
        %v212 = vld [vmem:[%s172 + $0x128] sm:$0xff]
        %v213 = vld [vmem:[%s172 + $0x130] sm:$0xff]
        %v214 = vld [vmem:[%s172 + $0x138] sm:$0xff]
        %v215 = vld [vmem:[%s172 + $0x140] sm:$0xff]
        %v216 = vld [vmem:[%s172 + $0x148] sm:$0xff]
        %v217 = vld [vmem:[%s172 + $0x150] sm:$0xff]
        %v218 = vld [vmem:[%s172 + $0x158] sm:$0xff]
        %v219 = vld [vmem:[%s172 + $0x160] sm:$0xff]
        %v220 = vld [vmem:[%s172 + $0x168] sm:$0xff]
        %v221 = vld [vmem:[%s172 + $0x170] sm:$0xff]
        %v222 = vld [vmem:[%s172 + $0x178] sm:$0xff]
        %v223 = vld [vmem:[%s1] sm:$0xff]
        %v224 = vld [vmem:[%s1 + $0x8] sm:$0xff]
        %v225 = vld [vmem:[%s1 + $0x10] sm:$0xff]
        %v226 = vld [vmem:[%s1 + $0x18] sm:$0xff]
        %v227 = vld [vmem:[%s1 + $0x20] sm:$0xff]
        %v228 = vld [vmem:[%s1 + $0x28] sm:$0xff]
        %v229 = vld [vmem:[%s1 + $0x30] sm:$0xff]
        %v230 = vld [vmem:[%s1 + $0x38] sm:$0xff]
        %v231 = vld [vmem:[%s1 + $0x40] sm:$0xff]
        %v232 = vld [vmem:[%s1 + $0x48] sm:$0xff]
        %v233 = vld [vmem:[%s1 + $0x50] sm:$0xff]
        %v234 = vld [vmem:[%s1 + $0x58] sm:$0xff]
        %v235 = vld [vmem:[%s1 + $0x60] sm:$0xff]
        %v236 = vld [vmem:[%s1 + $0x68] sm:$0xff]
        %v237 = vld [vmem:[%s1 + $0x70] sm:$0xff]
        %v238 = vld [vmem:[%s1 + $0x78] sm:$0xff]
        %v239 = vld [vmem:[%s1 + $0x80] sm:$0xff]
        %v240 = vld [vmem:[%s1 + $0x88] sm:$0xff]
        %v241 = vld [vmem:[%s1 + $0x90] sm:$0xff]
        %v242 = vld [vmem:[%s1 + $0x98] sm:$0xff]
        %v243 = vld [vmem:[%s1 + $0xa0] sm:$0xff]
        %v244 = vld [vmem:[%s1 + $0xa8] sm:$0xff]
        %v245 = vld [vmem:[%s1 + $0xb0] sm:$0xff]
        %v246 = vld [vmem:[%s1 + $0xb8] sm:$0xff]
        %v247 = vld [vmem:[%s1 + $0xc0] sm:$0xff]
        %v248 = vld [vmem:[%s1 + $0xc8] sm:$0xff]
        %v249 = vld [vmem:[%s1 + $0xd0] sm:$0xff]
        %v250 = vld [vmem:[%s1 + $0xd8] sm:$0xff]
        %v251 = vld [vmem:[%s1 + $0xe0] sm:$0xff]
        %v252 = vld [vmem:[%s1 + $0xe8] sm:$0xff]
        %v253 = vld [vmem:[%s1 + $0xf0] sm:$0xff]
        %v254 = vld [vmem:[%s1 + $0xf8] sm:$0xff]
        %v255 = vld [vmem:[%s1 + $0x100] sm:$0xff]
        %v256 = vld [vmem:[%s1 + $0x108] sm:$0xff]
        %v257 = vld [vmem:[%s1 + $0x110] sm:$0xff]
        %v258 = vld [vmem:[%s1 + $0x118] sm:$0xff]
        %v259 = vld [vmem:[%s1 + $0x120] sm:$0xff]
        %v260 = vld [vmem:[%s1 + $0x128] sm:$0xff]
        %v261 = vld [vmem:[%s1 + $0x130] sm:$0xff]
        %v262 = vld [vmem:[%s1 + $0x138] sm:$0xff]
        %v263 = vld [vmem:[%s1 + $0x140] sm:$0xff]
        %v264 = vld [vmem:[%s1 + $0x148] sm:$0xff]
        %v265 = vld [vmem:[%s1 + $0x150] sm:$0xff]
        %v266 = vld [vmem:[%s1 + $0x158] sm:$0xff]
        %v267 = vld [vmem:[%s1 + $0x160] sm:$0xff]
        %v268 = vld [vmem:[%s1 + $0x168] sm:$0xff]
        %v269 = vld [vmem:[%s1 + $0x170] sm:$0xff]
        %v270 = vld [vmem:[%s1 + $0x178] sm:$0xff]
        %v271 = vld [vmem:[%s1 + $0x180] sm:$0xff]
        %v272 = vld [vmem:[%s1 + $0x188] sm:$0xff]
        %v273 = vld [vmem:[%s1 + $0x190] sm:$0xff]
        %v274 = vld [vmem:[%s1 + $0x198] sm:$0xff]
        %v275 = vld [vmem:[%s1 + $0x1a0] sm:$0xff]
        %v276 = vld [vmem:[%s1 + $0x1a8] sm:$0xff]
        %v277 = vld [vmem:[%s1 + $0x1b0] sm:$0xff]
        %v278 = vld [vmem:[%s1 + $0x1b8] sm:$0xff]
        %v279 = vld [vmem:[%s1 + $0x1c0] sm:$0xff]
        %v280 = vld [vmem:[%s1 + $0x1c8] sm:$0xff]
        %v281 = vld [vmem:[%s1 + $0x1d0] sm:$0xff]
        %v282 = vld [vmem:[%s1 + $0x1d8] sm:$0xff]
        %v283 = vld [vmem:[%s1 + $0x1e0] sm:$0xff]
        %v284 = vld [vmem:[%s1 + $0x1e8] sm:$0xff]
        %v285 = vld [vmem:[%s1 + $0x1f0] sm:$0xff]
        %v286 = vld [vmem:[%s1 + $0x1f8] sm:$0xff]
        %v287 = vld [vmem:[%s1 + $0x200] sm:$0xff]
        %v288 = vld [vmem:[%s1 + $0x208] sm:$0xff]
        %v289 = vld [vmem:[%s1 + $0x210] sm:$0xff]
        %v290 = vld [vmem:[%s1 + $0x218] sm:$0xff]
        %v291 = vld [vmem:[%s1 + $0x220] sm:$0xff]
        %v292 = vld [vmem:[%s1 + $0x228] sm:$0xff]
        %v293 = vld [vmem:[%s1 + $0x230] sm:$0xff]
        %v294 = vld [vmem:[%s1 + $0x238] sm:$0xff]
        %v295 = vld [vmem:[%s1 + $0x240] sm:$0xff]
        %v296 = vld [vmem:[%s1 + $0x248] sm:$0xff]
        %v297 = vld [vmem:[%s1 + $0x250] sm:$0xff]
        %v298 = vld [vmem:[%s1 + $0x258] sm:$0xff]
        %v299 = vld [vmem:[%s1 + $0x260] sm:$0xff]
        %v300 = vld [vmem:[%s1 + $0x268] sm:$0xff]
        %v301 = vld [vmem:[%s1 + $0x270] sm:$0xff]
        %v302 = vld [vmem:[%s1 + $0x278] sm:$0xff]
        %v303 = vld [vmem:[%s1 + $0x280] sm:$0xff]
        %v304 = vld [vmem:[%s1 + $0x288] sm:$0xff]
        %v305 = vld [vmem:[%s1 + $0x290] sm:$0xff]
        %v306 = vld [vmem:[%s1 + $0x298] sm:$0xff]
        %v307 = vld [vmem:[%s1 + $0x2a0] sm:$0xff]
        %v308 = vld [vmem:[%s1 + $0x2a8] sm:$0xff]
        %v309 = vld [vmem:[%s1 + $0x2b0] sm:$0xff]
        %v310 = vld [vmem:[%s1 + $0x2b8] sm:$0xff]
        %v311 = vld [vmem:[%s1 + $0x2c0] sm:$0xff]
        %v312 = vld [vmem:[%s1 + $0x2c8] sm:$0xff]
        %v313 = vld [vmem:[%s1 + $0x2d0] sm:$0xff]
        %v314 = vld [vmem:[%s1 + $0x2d8] sm:$0xff]
        %v315 = vld [vmem:[%s1 + $0x2e0] sm:$0xff]
        %v316 = vld [vmem:[%s1 + $0x2e8] sm:$0xff]
        %v317 = vld [vmem:[%s1 + $0x2f0] sm:$0xff]
        %v318 = vld [vmem:[%s1 + $0x2f8] sm:$0xff]
        %v319 = vld [vmem:[%s1 + $0x300] sm:$0xff]
        %v320 = vld [vmem:[%s1 + $0x308] sm:$0xff]
        %v321 = vld [vmem:[%s1 + $0x310] sm:$0xff]
        %v322 = vld [vmem:[%s1 + $0x318] sm:$0xff]
        %v323 = vld [vmem:[%s1 + $0x320] sm:$0xff]
        %v324 = vld [vmem:[%s1 + $0x328] sm:$0xff]
        %v325 = vld [vmem:[%s1 + $0x330] sm:$0xff]
        %v326 = vld [vmem:[%s1 + $0x338] sm:$0xff]
        %v327 = vld [vmem:[%s1 + $0x340] sm:$0xff]
        %v328 = vld [vmem:[%s1 + $0x348] sm:$0xff]
        %v329 = vld [vmem:[%s1 + $0x350] sm:$0xff]
        %v330 = vld [vmem:[%s1 + $0x358] sm:$0xff]
        %v331 = vld [vmem:[%s1 + $0x360] sm:$0xff]
        %v332 = vld [vmem:[%s1 + $0x368] sm:$0xff]
        %v333 = vld [vmem:[%s1 + $0x370] sm:$0xff]
        %v334 = vld [vmem:[%s1 + $0x378] sm:$0xff]
        %v335 = vld [vmem:[%s1 + $0x380] sm:$0xff]
        %v336 = vld [vmem:[%s1 + $0x388] sm:$0xff]
        %v337 = vld [vmem:[%s1 + $0x390] sm:$0xff]
        %v338 = vld [vmem:[%s1 + $0x398] sm:$0xff]
        %v339 = vld [vmem:[%s1 + $0x3a0] sm:$0xff]
        %v340 = vld [vmem:[%s1 + $0x3a8] sm:$0xff]
        %v341 = vld [vmem:[%s1 + $0x3b0] sm:$0xff]
        %v342 = vld [vmem:[%s1 + $0x3b8] sm:$0xff]
        %v343 = vld [vmem:[%s1 + $0x3c0] sm:$0xff]
        %v344 = vld [vmem:[%s1 + $0x3c8] sm:$0xff]
        %v345 = vld [vmem:[%s1 + $0x3d0] sm:$0xff]
        %v346 = vld [vmem:[%s1 + $0x3d8] sm:$0xff]
        %v347 = vld [vmem:[%s1 + $0x3e0] sm:$0xff]
        %v348 = vld [vmem:[%s1 + $0x3e8] sm:$0xff]
        %v349 = vld [vmem:[%s1 + $0x3f0] sm:$0xff]
        %v350 = vld [vmem:[%s1 + $0x3f8] sm:$0xff]
        %v351 = vld [vmem:[%s1 + $0x400] sm:$0xff]
        %v352 = vld [vmem:[%s1 + $0x408] sm:$0xff]
        %v353 = vld [vmem:[%s1 + $0x410] sm:$0xff]
        %v354 = vld [vmem:[%s1 + $0x418] sm:$0xff]
        %v355 = vld [vmem:[%s1 + $0x420] sm:$0xff]
        %v356 = vld [vmem:[%s1 + $0x428] sm:$0xff]
        %v357 = vld [vmem:[%s1 + $0x430] sm:$0xff]
        %v358 = vld [vmem:[%s1 + $0x438] sm:$0xff]
        %v359 = vld [vmem:[%s1 + $0x440] sm:$0xff]
        %v360 = vld [vmem:[%s1 + $0x448] sm:$0xff]
        %v361 = vld [vmem:[%s1 + $0x450] sm:$0xff]
        %v362 = vld [vmem:[%s1 + $0x458] sm:$0xff]
        %v363 = vld [vmem:[%s1 + $0x460] sm:$0xff]
        %v364 = vld [vmem:[%s1 + $0x468] sm:$0xff]
        %v365 = vld [vmem:[%s1 + $0x470] sm:$0xff]
        %v366 = vld [vmem:[%s1 + $0x478] sm:$0xff]
        %v367 = vld [vmem:[%s1 + $0x480] sm:$0xff]
        %v368 = vld [vmem:[%s1 + $0x488] sm:$0xff]
        %v369 = vld [vmem:[%s1 + $0x490] sm:$0xff]
        %v370 = vld [vmem:[%s1 + $0x498] sm:$0xff]
        %v371 = vld [vmem:[%s1 + $0x4a0] sm:$0xff]
        %v372 = vld [vmem:[%s1 + $0x4a8] sm:$0xff]
        %v373 = vld [vmem:[%s1 + $0x4b0] sm:$0xff]
        %v374 = vld [vmem:[%s1 + $0x4b8] sm:$0xff]
        %v375 = vld [vmem:[%s1 + $0x4c0] sm:$0xff]
        %v376 = vld [vmem:[%s1 + $0x4c8] sm:$0xff]
        %v377 = vld [vmem:[%s1 + $0x4d0] sm:$0xff]
        %v378 = vld [vmem:[%s1 + $0x4d8] sm:$0xff]
        %v379 = vld [vmem:[%s1 + $0x4e0] sm:$0xff]
        %v380 = vld [vmem:[%s1 + $0x4e8] sm:$0xff]
        %v381 = vld [vmem:[%s1 + $0x4f0] sm:$0xff]
        %v382 = vld [vmem:[%s1 + $0x4f8] sm:$0xff]
        %v383 = vld [vmem:[%s1 + $0x500] sm:$0xff]
        %v384 = vld [vmem:[%s1 + $0x508] sm:$0xff]
        %v385 = vld [vmem:[%s1 + $0x510] sm:$0xff]
        %v386 = vld [vmem:[%s1 + $0x518] sm:$0xff]
        %v387 = vld [vmem:[%s1 + $0x520] sm:$0xff]
        %v388 = vld [vmem:[%s1 + $0x528] sm:$0xff]
        %v389 = vld [vmem:[%s1 + $0x530] sm:$0xff]
        %v390 = vld [vmem:[%s1 + $0x538] sm:$0xff]
        %v391 = vld [vmem:[%s1 + $0x540] sm:$0xff]
        %v392 = vld [vmem:[%s1 + $0x548] sm:$0xff]
        %v393 = vld [vmem:[%s1 + $0x550] sm:$0xff]
        %v394 = vld [vmem:[%s1 + $0x558] sm:$0xff]
        %v395 = vld [vmem:[%s1 + $0x560] sm:$0xff]
        %v396 = vld [vmem:[%s1 + $0x568] sm:$0xff]
        %v397 = vld [vmem:[%s1 + $0x570] sm:$0xff]
        %v398 = vld [vmem:[%s1 + $0x578] sm:$0xff]
        %v399 = vld [vmem:[%s1 + $0x580] sm:$0xff]
        %v400 = vld [vmem:[%s1 + $0x588] sm:$0xff]
        %v401 = vld [vmem:[%s1 + $0x590] sm:$0xff]
        %v402 = vld [vmem:[%s1 + $0x598] sm:$0xff]
        %v403 = vld [vmem:[%s1 + $0x5a0] sm:$0xff]
        %v404 = vld [vmem:[%s1 + $0x5a8] sm:$0xff]
        %v405 = vld [vmem:[%s1 + $0x5b0] sm:$0xff]
        %v406 = vld [vmem:[%s1 + $0x5b8] sm:$0xff]
        %v407 = vld [vmem:[%s1 + $0x5c0] sm:$0xff]
        %v408 = vld [vmem:[%s1 + $0x5c8] sm:$0xff]
        %v409 = vld [vmem:[%s1 + $0x5d0] sm:$0xff]
        %v410 = vld [vmem:[%s1 + $0x5d8] sm:$0xff]
        %v411 = vld [vmem:[%s1 + $0x5e0] sm:$0xff]
        %v412 = vld [vmem:[%s1 + $0x5e8] sm:$0xff]
        %v413 = vld [vmem:[%s1 + $0x5f0] sm:$0xff]
        %v414 = vld [vmem:[%s1 + $0x5f8] sm:$0xff]
        %v415 = vld [vmem:[%s1 + $0x600] sm:$0xff]
        %v416 = vld [vmem:[%s1 + $0x608] sm:$0xff]
        %v417 = vld [vmem:[%s1 + $0x610] sm:$0xff]
        %v418 = vld [vmem:[%s1 + $0x618] sm:$0xff]
        %v419 = vld [vmem:[%s1 + $0x620] sm:$0xff]
        %v420 = vld [vmem:[%s1 + $0x628] sm:$0xff]
        %v421 = vld [vmem:[%s1 + $0x630] sm:$0xff]
        %v422 = vld [vmem:[%s1 + $0x638] sm:$0xff]
        %v423 = vld [vmem:[%s1 + $0x640] sm:$0xff]
        %v424 = vld [vmem:[%s1 + $0x648] sm:$0xff]
        %v425 = vld [vmem:[%s1 + $0x650] sm:$0xff]
        %v426 = vld [vmem:[%s1 + $0x658] sm:$0xff]
        %v427 = vld [vmem:[%s1 + $0x660] sm:$0xff]
        %v428 = vld [vmem:[%s1 + $0x668] sm:$0xff]
        %v429 = vld [vmem:[%s1 + $0x670] sm:$0xff]
        %v430 = vld [vmem:[%s1 + $0x678] sm:$0xff]
        %v431 = vld [vmem:[%s1 + $0x680] sm:$0xff]
        %v432 = vld [vmem:[%s1 + $0x688] sm:$0xff]
        %v433 = vld [vmem:[%s1 + $0x690] sm:$0xff]
        %v434 = vld [vmem:[%s1 + $0x698] sm:$0xff]
        %v435 = vld [vmem:[%s1 + $0x6a0] sm:$0xff]
        %v436 = vld [vmem:[%s1 + $0x6a8] sm:$0xff]
        %v437 = vld [vmem:[%s1 + $0x6b0] sm:$0xff]
        %v438 = vld [vmem:[%s1 + $0x6b8] sm:$0xff]
        %v439 = vld [vmem:[%s1 + $0x6c0] sm:$0xff]
        %v440 = vld [vmem:[%s1 + $0x6c8] sm:$0xff]
        %v441 = vld [vmem:[%s1 + $0x6d0] sm:$0xff]
        %v442 = vld [vmem:[%s1 + $0x6d8] sm:$0xff]
        %v443 = vld [vmem:[%s1 + $0x6e0] sm:$0xff]
        %v444 = vld [vmem:[%s1 + $0x6e8] sm:$0xff]
        %v445 = vld [vmem:[%s1 + $0x6f0] sm:$0xff]
        %v446 = vld [vmem:[%s1 + $0x6f8] sm:$0xff]
        %v447 = vld [vmem:[%s1 + $0x700] sm:$0xff]
        %v448 = vld [vmem:[%s1 + $0x708] sm:$0xff]
        %v449 = vld [vmem:[%s1 + $0x710] sm:$0xff]
        %v450 = vld [vmem:[%s1 + $0x718] sm:$0xff]
        %v451 = vld [vmem:[%s1 + $0x720] sm:$0xff]
        %v452 = vld [vmem:[%s1 + $0x728] sm:$0xff]
        %v453 = vld [vmem:[%s1 + $0x730] sm:$0xff]
        %v454 = vld [vmem:[%s1 + $0x738] sm:$0xff]
        %v455 = vld [vmem:[%s1 + $0x740] sm:$0xff]
        %v456 = vld [vmem:[%s1 + $0x748] sm:$0xff]
        %v457 = vld [vmem:[%s1 + $0x750] sm:$0xff]
        %v458 = vld [vmem:[%s1 + $0x758] sm:$0xff]
        %v459 = vld [vmem:[%s1 + $0x760] sm:$0xff]
        %v460 = vld [vmem:[%s1 + $0x768] sm:$0xff]
        %v461 = vld [vmem:[%s1 + $0x770] sm:$0xff]
        %v462 = vld [vmem:[%s1 + $0x778] sm:$0xff]
        %v463 = vld [vmem:[%s1 + $0x780] sm:$0xff]
        %v464 = vld [vmem:[%s1 + $0x788] sm:$0xff]
        %v465 = vld [vmem:[%s1 + $0x790] sm:$0xff]
        %v466 = vld [vmem:[%s1 + $0x798] sm:$0xff]
        %v467 = vld [vmem:[%s1 + $0x7a0] sm:$0xff]
        %v468 = vld [vmem:[%s1 + $0x7a8] sm:$0xff]
        %v469 = vld [vmem:[%s1 + $0x7b0] sm:$0xff]
        %v470 = vld [vmem:[%s1 + $0x7b8] sm:$0xff]
        %v471 = vld [vmem:[%s1 + $0x7c0] sm:$0xff]
        %v472 = vld [vmem:[%s1 + $0x7c8] sm:$0xff]
        %v473 = vld [vmem:[%s1 + $0x7d0] sm:$0xff]
        %v474 = vld [vmem:[%s1 + $0x7d8] sm:$0xff]
        %v475 = vld [vmem:[%s1 + $0x7e0] sm:$0xff]
        %v476 = vld [vmem:[%s1 + $0x7e8] sm:$0xff]
        %v477 = vld [vmem:[%s1 + $0x7f0] sm:$0xff]
        %v478 = vld [vmem:[%s1 + $0x7f8] sm:$0xff]
        %v479 = vld [vmem:[%s1 + $0x800] sm:$0xff]
        %v480 = vld [vmem:[%s1 + $0x808] sm:$0xff]
        %v481 = vld [vmem:[%s1 + $0x810] sm:$0xff]
        %v482 = vld [vmem:[%s1 + $0x818] sm:$0xff]
        %v483 = vld [vmem:[%s1 + $0x820] sm:$0xff]
        %v484 = vld [vmem:[%s1 + $0x828] sm:$0xff]
        %v485 = vld [vmem:[%s1 + $0x830] sm:$0xff]
        %v486 = vld [vmem:[%s1 + $0x838] sm:$0xff]
        %v487 = vld [vmem:[%s1 + $0x840] sm:$0xff]
        %v488 = vld [vmem:[%s1 + $0x848] sm:$0xff]
        %v489 = vld [vmem:[%s1 + $0x850] sm:$0xff]
        %v490 = vld [vmem:[%s1 + $0x858] sm:$0xff]
        %v491 = vld [vmem:[%s1 + $0x860] sm:$0xff]
        %v492 = vld [vmem:[%s1 + $0x868] sm:$0xff]
        %v493 = vld [vmem:[%s1 + $0x870] sm:$0xff]
        %v494 = vld [vmem:[%s1 + $0x878] sm:$0xff]
        %v495 = vld [vmem:[%s1 + $0x880] sm:$0xff]
        %v496 = vld [vmem:[%s1 + $0x888] sm:$0xff]
        %v497 = vld [vmem:[%s1 + $0x890] sm:$0xff]
        %v498 = vld [vmem:[%s1 + $0x898] sm:$0xff]
        %v499 = vld [vmem:[%s1 + $0x8a0] sm:$0xff]
        %v500 = vld [vmem:[%s1 + $0x8a8] sm:$0xff]
        %v501 = vld [vmem:[%s1 + $0x8b0] sm:$0xff]
        %v502 = vld [vmem:[%s1 + $0x8b8] sm:$0xff]
        %v503 = vld [vmem:[%s1 + $0x8c0] sm:$0xff]
        %v504 = vld [vmem:[%s1 + $0x8c8] sm:$0xff]
        %v505 = vld [vmem:[%s1 + $0x8d0] sm:$0xff]
        %v506 = vld [vmem:[%s1 + $0x8d8] sm:$0xff]
        %v507 = vld [vmem:[%s1 + $0x8e0] sm:$0xff]
        %v508 = vld [vmem:[%s1 + $0x8e8] sm:$0xff]
        %v509 = vld [vmem:[%s1 + $0x8f0] sm:$0xff]
        %v510 = vld [vmem:[%s1 + $0x8f8] sm:$0xff]
        %v511 = vld [vmem:[%s2] sm:$0x3f]
        %v513 = vperm.slane %v511, 0
        %v514 = vperm.slane %v511, 1
        %v515 = vperm.slane %v511, 2
        %v516 = vperm.slane %v511, 3
        %v517 = vperm.slane %v511, 4
        %v518 = vperm.slane %v511, 5
        %v573 = vunpack.c.l.b16 %v175
        %v574 = vunpack.c.h.b16 %v175
        %v575 = vunpack.c.l.b16 %v176
        %v576 = vunpack.c.h.b16 %v176
        %v577 = vunpack.c.l.b16 %v177
        %v578 = vunpack.c.h.b16 %v177
        %v579 = vunpack.c.l.b16 %v178
        %v580 = vunpack.c.h.b16 %v178
        %v581 = vunpack.c.l.b16 %v179
        %v582 = vunpack.c.h.b16 %v179
        %v583 = vunpack.c.l.b16 %v180
        %v584 = vunpack.c.h.b16 %v180
        %v585 = vunpack.c.l.b16 %v181
        %v586 = vunpack.c.h.b16 %v181
        %v587 = vunpack.c.l.b16 %v182
        %v588 = vunpack.c.h.b16 %v182
        %v589 = vunpack.c.l.b16 %v183
        %v590 = vunpack.c.h.b16 %v183
        %v591 = vunpack.c.l.b16 %v184
        %v592 = vunpack.c.h.b16 %v184
        %v593 = vunpack.c.l.b16 %v185
        %v594 = vunpack.c.h.b16 %v185
        %v595 = vunpack.c.l.b16 %v186
        %v596 = vunpack.c.h.b16 %v186
        %v597 = vunpack.c.l.b16 %v187
        %v598 = vunpack.c.h.b16 %v187
        %v599 = vunpack.c.l.b16 %v188
        %v600 = vunpack.c.h.b16 %v188
        %v601 = vunpack.c.l.b16 %v189
        %v602 = vunpack.c.h.b16 %v189
        %v603 = vunpack.c.l.b16 %v190
        %v604 = vunpack.c.h.b16 %v190
        %v605 = vunpack.c.l.b16 %v191
        %v606 = vunpack.c.h.b16 %v191
        %v607 = vunpack.c.l.b16 %v192
        %v608 = vunpack.c.h.b16 %v192
        %v609 = vunpack.c.l.b16 %v193
        %v610 = vunpack.c.h.b16 %v193
        %v611 = vunpack.c.l.b16 %v194
        %v612 = vunpack.c.h.b16 %v194
        %v613 = vunpack.c.l.b16 %v195
        %v614 = vunpack.c.h.b16 %v195
        %v615 = vunpack.c.l.b16 %v196
        %v616 = vunpack.c.h.b16 %v196
        %v617 = vunpack.c.l.b16 %v197
        %v618 = vunpack.c.h.b16 %v197
        %v619 = vunpack.c.l.b16 %v198
        %v620 = vunpack.c.h.b16 %v198
        %v621 = vunpack.c.l.b16 %v199
        %v622 = vunpack.c.h.b16 %v199
        %v623 = vunpack.c.l.b16 %v200
        %v624 = vunpack.c.h.b16 %v200
        %v625 = vunpack.c.l.b16 %v201
        %v626 = vunpack.c.h.b16 %v201
        %v627 = vunpack.c.l.b16 %v202
        %v628 = vunpack.c.h.b16 %v202
        %v629 = vunpack.c.l.b16 %v203
        %v630 = vunpack.c.h.b16 %v203
        %v631 = vunpack.c.l.b16 %v204
        %v632 = vunpack.c.h.b16 %v204
        %v633 = vunpack.c.l.b16 %v205
        %v634 = vunpack.c.h.b16 %v205
        %v635 = vunpack.c.l.b16 %v206
        %v636 = vunpack.c.h.b16 %v206
        %v637 = vunpack.c.l.b16 %v207
        %v638 = vunpack.c.h.b16 %v207
        %v639 = vunpack.c.l.b16 %v208
        %v640 = vunpack.c.h.b16 %v208
        %v641 = vunpack.c.l.b16 %v209
        %v642 = vunpack.c.h.b16 %v209
        %v643 = vunpack.c.l.b16 %v210
        %v644 = vunpack.c.h.b16 %v210
        %v645 = vunpack.c.l.b16 %v211
        %v646 = vunpack.c.h.b16 %v211
        %v647 = vunpack.c.l.b16 %v212
        %v648 = vunpack.c.h.b16 %v212
        %v649 = vunpack.c.l.b16 %v213
        %v650 = vunpack.c.h.b16 %v213
        %v651 = vunpack.c.l.b16 %v214
        %v652 = vunpack.c.h.b16 %v214
        %v653 = vunpack.c.l.b16 %v215
        %v654 = vunpack.c.h.b16 %v215
        %v655 = vunpack.c.l.b16 %v216
        %v656 = vunpack.c.h.b16 %v216
        %v657 = vunpack.c.l.b16 %v217
        %v658 = vunpack.c.h.b16 %v217
        %v659 = vunpack.c.l.b16 %v218
        %v660 = vunpack.c.h.b16 %v218
        %v661 = vunpack.c.l.b16 %v219
        %v662 = vunpack.c.h.b16 %v219
        %v663 = vunpack.c.l.b16 %v220
        %v664 = vunpack.c.h.b16 %v220
        %v665 = vunpack.c.l.b16 %v221
        %v666 = vunpack.c.h.b16 %v221
        %v667 = vunpack.c.l.b16 %v222
        %v668 = vunpack.c.h.b16 %v222
        %v669 = vpack.c.b16 %v579, %v573
        %v670 = vpack.c.b16 %v580, %v574
        %v671 = vpack.c.b16 %v581, %v575
        %v672 = vpack.c.b16 %v582, %v576
        %v673 = vpack.c.b16 %v583, %v577
        %v674 = vpack.c.b16 %v584, %v578
        %v675 = vpack.c.b16 %v591, %v585
        %v676 = vpack.c.b16 %v592, %v586
        %v677 = vpack.c.b16 %v593, %v587
        %v678 = vpack.c.b16 %v594, %v588
        %v679 = vpack.c.b16 %v595, %v589
        %v680 = vpack.c.b16 %v596, %v590
        %v681 = vpack.c.b16 %v603, %v597
        %v682 = vpack.c.b16 %v604, %v598
        %v683 = vpack.c.b16 %v605, %v599
        %v684 = vpack.c.b16 %v606, %v600
        %v685 = vpack.c.b16 %v607, %v601
        %v686 = vpack.c.b16 %v608, %v602
        %v687 = vpack.c.b16 %v615, %v609
        %v688 = vpack.c.b16 %v616, %v610
        %v689 = vpack.c.b16 %v617, %v611
        %v690 = vpack.c.b16 %v618, %v612
        %v691 = vpack.c.b16 %v619, %v613
        %v692 = vpack.c.b16 %v620, %v614
        %v693 = vpack.c.b16 %v627, %v621
        %v694 = vpack.c.b16 %v628, %v622
        %v695 = vpack.c.b16 %v629, %v623
        %v696 = vpack.c.b16 %v630, %v624
        %v697 = vpack.c.b16 %v631, %v625
        %v698 = vpack.c.b16 %v632, %v626
        %v699 = vpack.c.b16 %v639, %v633
        %v700 = vpack.c.b16 %v640, %v634
        %v701 = vpack.c.b16 %v641, %v635
        %v702 = vpack.c.b16 %v642, %v636
        %v703 = vpack.c.b16 %v643, %v637
        %v704 = vpack.c.b16 %v644, %v638
        %v705 = vpack.c.b16 %v651, %v645
        %v706 = vpack.c.b16 %v652, %v646
        %v707 = vpack.c.b16 %v653, %v647
        %v708 = vpack.c.b16 %v654, %v648
        %v709 = vpack.c.b16 %v655, %v649
        %v710 = vpack.c.b16 %v656, %v650
        %v711 = vpack.c.b16 %v663, %v657
        %v712 = vpack.c.b16 %v664, %v658
        %v713 = vpack.c.b16 %v665, %v659
        %v714 = vpack.c.b16 %v666, %v660
        %v715 = vpack.c.b16 %v667, %v661
        %v716 = vpack.c.b16 %v668, %v662
        %v1053 = vunpack.c.l.b16 %v223
        %v1054 = vunpack.c.h.b16 %v223
        %v1055 = vunpack.c.l.b16 %v224
        %v1056 = vunpack.c.h.b16 %v224
        %v1057 = vunpack.c.l.b16 %v225
        %v1058 = vunpack.c.h.b16 %v225
        %v1059 = vunpack.c.l.b16 %v226
        %v1060 = vunpack.c.h.b16 %v226
        %v1061 = vunpack.c.l.b16 %v227
        %v1062 = vunpack.c.h.b16 %v227
        %v1063 = vunpack.c.l.b16 %v228
        %v1064 = vunpack.c.h.b16 %v228
        %v1065 = vunpack.c.l.b16 %v229
        %v1066 = vunpack.c.h.b16 %v229
        %v1067 = vunpack.c.l.b16 %v230
        %v1068 = vunpack.c.h.b16 %v230
        %v1069 = vunpack.c.l.b16 %v231
        %v1070 = vunpack.c.h.b16 %v231
        %v1071 = vunpack.c.l.b16 %v232
        %v1072 = vunpack.c.h.b16 %v232
        %v1073 = vunpack.c.l.b16 %v233
        %v1074 = vunpack.c.h.b16 %v233
        %v1075 = vunpack.c.l.b16 %v234
        %v1076 = vunpack.c.h.b16 %v234
        %v1077 = vunpack.c.l.b16 %v235
        %v1078 = vunpack.c.h.b16 %v235
        %v1079 = vunpack.c.l.b16 %v236
        %v1080 = vunpack.c.h.b16 %v236
        %v1081 = vunpack.c.l.b16 %v237
        %v1082 = vunpack.c.h.b16 %v237
        %v1083 = vunpack.c.l.b16 %v238
        %v1084 = vunpack.c.h.b16 %v238
        %v1085 = vunpack.c.l.b16 %v239
        %v1086 = vunpack.c.h.b16 %v239
        %v1087 = vunpack.c.l.b16 %v240
        %v1088 = vunpack.c.h.b16 %v240
        %v1089 = vunpack.c.l.b16 %v241
        %v1090 = vunpack.c.h.b16 %v241
        %v1091 = vunpack.c.l.b16 %v242
        %v1092 = vunpack.c.h.b16 %v242
        %v1093 = vunpack.c.l.b16 %v243
        %v1094 = vunpack.c.h.b16 %v243
        %v1095 = vunpack.c.l.b16 %v244
        %v1096 = vunpack.c.h.b16 %v244
        %v1097 = vunpack.c.l.b16 %v245
        %v1098 = vunpack.c.h.b16 %v245
        %v1099 = vunpack.c.l.b16 %v246
        %v1100 = vunpack.c.h.b16 %v246
        %v1101 = vunpack.c.l.b16 %v247
        %v1102 = vunpack.c.h.b16 %v247
        %v1103 = vunpack.c.l.b16 %v248
        %v1104 = vunpack.c.h.b16 %v248
        %v1105 = vunpack.c.l.b16 %v249
        %v1106 = vunpack.c.h.b16 %v249
        %v1107 = vunpack.c.l.b16 %v250
        %v1108 = vunpack.c.h.b16 %v250
        %v1109 = vunpack.c.l.b16 %v251
        %v1110 = vunpack.c.h.b16 %v251
        %v1111 = vunpack.c.l.b16 %v252
        %v1112 = vunpack.c.h.b16 %v252
        %v1113 = vunpack.c.l.b16 %v253
        %v1114 = vunpack.c.h.b16 %v253
        %v1115 = vunpack.c.l.b16 %v254
        %v1116 = vunpack.c.h.b16 %v254
        %v1117 = vunpack.c.l.b16 %v255
        %v1118 = vunpack.c.h.b16 %v255
        %v1119 = vunpack.c.l.b16 %v256
        %v1120 = vunpack.c.h.b16 %v256
        %v1121 = vunpack.c.l.b16 %v257
        %v1122 = vunpack.c.h.b16 %v257
        %v1123 = vunpack.c.l.b16 %v258
        %v1124 = vunpack.c.h.b16 %v258
        %v1125 = vunpack.c.l.b16 %v259
        %v1126 = vunpack.c.h.b16 %v259
        %v1127 = vunpack.c.l.b16 %v260
        %v1128 = vunpack.c.h.b16 %v260
        %v1129 = vunpack.c.l.b16 %v261
        %v1130 = vunpack.c.h.b16 %v261
        %v1131 = vunpack.c.l.b16 %v262
        %v1132 = vunpack.c.h.b16 %v262
        %v1133 = vunpack.c.l.b16 %v263
        %v1134 = vunpack.c.h.b16 %v263
        %v1135 = vunpack.c.l.b16 %v264
        %v1136 = vunpack.c.h.b16 %v264
        %v1137 = vunpack.c.l.b16 %v265
        %v1138 = vunpack.c.h.b16 %v265
        %v1139 = vunpack.c.l.b16 %v266
        %v1140 = vunpack.c.h.b16 %v266
        %v1141 = vunpack.c.l.b16 %v267
        %v1142 = vunpack.c.h.b16 %v267
        %v1143 = vunpack.c.l.b16 %v268
        %v1144 = vunpack.c.h.b16 %v268
        %v1145 = vunpack.c.l.b16 %v269
        %v1146 = vunpack.c.h.b16 %v269
        %v1147 = vunpack.c.l.b16 %v270
        %v1148 = vunpack.c.h.b16 %v270
        %v1149 = vunpack.c.l.b16 %v271
        %v1150 = vunpack.c.h.b16 %v271
        %v1151 = vunpack.c.l.b16 %v272
        %v1152 = vunpack.c.h.b16 %v272
        %v1153 = vunpack.c.l.b16 %v273
        %v1154 = vunpack.c.h.b16 %v273
        %v1155 = vunpack.c.l.b16 %v274
        %v1156 = vunpack.c.h.b16 %v274
        %v1157 = vunpack.c.l.b16 %v275
        %v1158 = vunpack.c.h.b16 %v275
        %v1159 = vunpack.c.l.b16 %v276
        %v1160 = vunpack.c.h.b16 %v276
        %v1161 = vunpack.c.l.b16 %v277
        %v1162 = vunpack.c.h.b16 %v277
        %v1163 = vunpack.c.l.b16 %v278
        %v1164 = vunpack.c.h.b16 %v278
        %v1165 = vunpack.c.l.b16 %v279
        %v1166 = vunpack.c.h.b16 %v279
        %v1167 = vunpack.c.l.b16 %v280
        %v1168 = vunpack.c.h.b16 %v280
        %v1169 = vunpack.c.l.b16 %v281
        %v1170 = vunpack.c.h.b16 %v281
        %v1171 = vunpack.c.l.b16 %v282
        %v1172 = vunpack.c.h.b16 %v282
        %v1173 = vunpack.c.l.b16 %v283
        %v1174 = vunpack.c.h.b16 %v283
        %v1175 = vunpack.c.l.b16 %v284
        %v1176 = vunpack.c.h.b16 %v284
        %v1177 = vunpack.c.l.b16 %v285
        %v1178 = vunpack.c.h.b16 %v285
        %v1179 = vunpack.c.l.b16 %v286
        %v1180 = vunpack.c.h.b16 %v286
        %v1181 = vunpack.c.l.b16 %v287
        %v1182 = vunpack.c.h.b16 %v287
        %v1183 = vunpack.c.l.b16 %v288
        %v1184 = vunpack.c.h.b16 %v288
        %v1185 = vunpack.c.l.b16 %v289
        %v1186 = vunpack.c.h.b16 %v289
        %v1187 = vunpack.c.l.b16 %v290
        %v1188 = vunpack.c.h.b16 %v290
        %v1189 = vunpack.c.l.b16 %v291
        %v1190 = vunpack.c.h.b16 %v291
        %v1191 = vunpack.c.l.b16 %v292
        %v1192 = vunpack.c.h.b16 %v292
        %v1193 = vunpack.c.l.b16 %v293
        %v1194 = vunpack.c.h.b16 %v293
        %v1195 = vunpack.c.l.b16 %v294
        %v1196 = vunpack.c.h.b16 %v294
        %v1197 = vunpack.c.l.b16 %v295
        %v1198 = vunpack.c.h.b16 %v295
        %v1199 = vunpack.c.l.b16 %v296
        %v1200 = vunpack.c.h.b16 %v296
        %v1201 = vunpack.c.l.b16 %v297
        %v1202 = vunpack.c.h.b16 %v297
        %v1203 = vunpack.c.l.b16 %v298
        %v1204 = vunpack.c.h.b16 %v298
        %v1205 = vunpack.c.l.b16 %v299
        %v1206 = vunpack.c.h.b16 %v299
        %v1207 = vunpack.c.l.b16 %v300
        %v1208 = vunpack.c.h.b16 %v300
        %v1209 = vunpack.c.l.b16 %v301
        %v1210 = vunpack.c.h.b16 %v301
        %v1211 = vunpack.c.l.b16 %v302
        %v1212 = vunpack.c.h.b16 %v302
        %v1213 = vunpack.c.l.b16 %v303
        %v1214 = vunpack.c.h.b16 %v303
        %v1215 = vunpack.c.l.b16 %v304
        %v1216 = vunpack.c.h.b16 %v304
        %v1217 = vunpack.c.l.b16 %v305
        %v1218 = vunpack.c.h.b16 %v305
        %v1219 = vunpack.c.l.b16 %v306
        %v1220 = vunpack.c.h.b16 %v306
        %v1221 = vunpack.c.l.b16 %v307
        %v1222 = vunpack.c.h.b16 %v307
        %v1223 = vunpack.c.l.b16 %v308
        %v1224 = vunpack.c.h.b16 %v308
        %v1225 = vunpack.c.l.b16 %v309
        %v1226 = vunpack.c.h.b16 %v309
        %v1227 = vunpack.c.l.b16 %v310
        %v1228 = vunpack.c.h.b16 %v310
        %v1229 = vunpack.c.l.b16 %v311
        %v1230 = vunpack.c.h.b16 %v311
        %v1231 = vunpack.c.l.b16 %v312
        %v1232 = vunpack.c.h.b16 %v312
        %v1233 = vunpack.c.l.b16 %v313
        %v1234 = vunpack.c.h.b16 %v313
        %v1235 = vunpack.c.l.b16 %v314
        %v1236 = vunpack.c.h.b16 %v314
        %v1237 = vunpack.c.l.b16 %v315
        %v1238 = vunpack.c.h.b16 %v315
        %v1239 = vunpack.c.l.b16 %v316
        %v1240 = vunpack.c.h.b16 %v316
        %v1241 = vunpack.c.l.b16 %v317
        %v1242 = vunpack.c.h.b16 %v317
        %v1243 = vunpack.c.l.b16 %v318
        %v1244 = vunpack.c.h.b16 %v318
        %v1245 = vunpack.c.l.b16 %v319
        %v1246 = vunpack.c.h.b16 %v319
        %v1247 = vunpack.c.l.b16 %v320
        %v1248 = vunpack.c.h.b16 %v320
        %v1249 = vunpack.c.l.b16 %v321
        %v1250 = vunpack.c.h.b16 %v321
        %v1251 = vunpack.c.l.b16 %v322
        %v1252 = vunpack.c.h.b16 %v322
        %v1253 = vunpack.c.l.b16 %v323
        %v1254 = vunpack.c.h.b16 %v323
        %v1255 = vunpack.c.l.b16 %v324
        %v1256 = vunpack.c.h.b16 %v324
        %v1257 = vunpack.c.l.b16 %v325
        %v1258 = vunpack.c.h.b16 %v325
        %v1259 = vunpack.c.l.b16 %v326
        %v1260 = vunpack.c.h.b16 %v326
        %v1261 = vunpack.c.l.b16 %v327
        %v1262 = vunpack.c.h.b16 %v327
        %v1263 = vunpack.c.l.b16 %v328
        %v1264 = vunpack.c.h.b16 %v328
        %v1265 = vunpack.c.l.b16 %v329
        %v1266 = vunpack.c.h.b16 %v329
        %v1267 = vunpack.c.l.b16 %v330
        %v1268 = vunpack.c.h.b16 %v330
        %v1269 = vunpack.c.l.b16 %v331
        %v1270 = vunpack.c.h.b16 %v331
        %v1271 = vunpack.c.l.b16 %v332
        %v1272 = vunpack.c.h.b16 %v332
        %v1273 = vunpack.c.l.b16 %v333
        %v1274 = vunpack.c.h.b16 %v333
        %v1275 = vunpack.c.l.b16 %v334
        %v1276 = vunpack.c.h.b16 %v334
        %v1277 = vunpack.c.l.b16 %v335
        %v1278 = vunpack.c.h.b16 %v335
        %v1279 = vunpack.c.l.b16 %v336
        %v1280 = vunpack.c.h.b16 %v336
        %v1281 = vunpack.c.l.b16 %v337
        %v1282 = vunpack.c.h.b16 %v337
        %v1283 = vunpack.c.l.b16 %v338
        %v1284 = vunpack.c.h.b16 %v338
        %v1285 = vunpack.c.l.b16 %v339
        %v1286 = vunpack.c.h.b16 %v339
        %v1287 = vunpack.c.l.b16 %v340
        %v1288 = vunpack.c.h.b16 %v340
        %v1289 = vunpack.c.l.b16 %v341
        %v1290 = vunpack.c.h.b16 %v341
        %v1291 = vunpack.c.l.b16 %v342
        %v1292 = vunpack.c.h.b16 %v342
        %v1293 = vunpack.c.l.b16 %v343
        %v1294 = vunpack.c.h.b16 %v343
        %v1295 = vunpack.c.l.b16 %v344
        %v1296 = vunpack.c.h.b16 %v344
        %v1297 = vunpack.c.l.b16 %v345
        %v1298 = vunpack.c.h.b16 %v345
        %v1299 = vunpack.c.l.b16 %v346
        %v1300 = vunpack.c.h.b16 %v346
        %v1301 = vunpack.c.l.b16 %v347
        %v1302 = vunpack.c.h.b16 %v347
        %v1303 = vunpack.c.l.b16 %v348
        %v1304 = vunpack.c.h.b16 %v348
        %v1305 = vunpack.c.l.b16 %v349
        %v1306 = vunpack.c.h.b16 %v349
        %v1307 = vunpack.c.l.b16 %v350
        %v1308 = vunpack.c.h.b16 %v350
        %v1309 = vunpack.c.l.b16 %v351
        %v1310 = vunpack.c.h.b16 %v351
        %v1311 = vunpack.c.l.b16 %v352
        %v1312 = vunpack.c.h.b16 %v352
        %v1313 = vunpack.c.l.b16 %v353
        %v1314 = vunpack.c.h.b16 %v353
        %v1315 = vunpack.c.l.b16 %v354
        %v1316 = vunpack.c.h.b16 %v354
        %v1317 = vunpack.c.l.b16 %v355
        %v1318 = vunpack.c.h.b16 %v355
        %v1319 = vunpack.c.l.b16 %v356
        %v1320 = vunpack.c.h.b16 %v356
        %v1321 = vunpack.c.l.b16 %v357
        %v1322 = vunpack.c.h.b16 %v357
        %v1323 = vunpack.c.l.b16 %v358
        %v1324 = vunpack.c.h.b16 %v358
        %v1325 = vunpack.c.l.b16 %v359
        %v1326 = vunpack.c.h.b16 %v359
        %v1327 = vunpack.c.l.b16 %v360
        %v1328 = vunpack.c.h.b16 %v360
        %v1329 = vunpack.c.l.b16 %v361
        %v1330 = vunpack.c.h.b16 %v361
        %v1331 = vunpack.c.l.b16 %v362
        %v1332 = vunpack.c.h.b16 %v362
        %v1333 = vunpack.c.l.b16 %v363
        %v1334 = vunpack.c.h.b16 %v363
        %v1335 = vunpack.c.l.b16 %v364
        %v1336 = vunpack.c.h.b16 %v364
        %v1337 = vunpack.c.l.b16 %v365
        %v1338 = vunpack.c.h.b16 %v365
        %v1339 = vunpack.c.l.b16 %v366
        %v1340 = vunpack.c.h.b16 %v366
        %v1341 = vunpack.c.l.b16 %v367
        %v1342 = vunpack.c.h.b16 %v367
        %v1343 = vunpack.c.l.b16 %v368
        %v1344 = vunpack.c.h.b16 %v368
        %v1345 = vunpack.c.l.b16 %v369
        %v1346 = vunpack.c.h.b16 %v369
        %v1347 = vunpack.c.l.b16 %v370
        %v1348 = vunpack.c.h.b16 %v370
        %v1349 = vunpack.c.l.b16 %v371
        %v1350 = vunpack.c.h.b16 %v371
        %v1351 = vunpack.c.l.b16 %v372
        %v1352 = vunpack.c.h.b16 %v372
        %v1353 = vunpack.c.l.b16 %v373
        %v1354 = vunpack.c.h.b16 %v373
        %v1355 = vunpack.c.l.b16 %v374
        %v1356 = vunpack.c.h.b16 %v374
        %v1357 = vunpack.c.l.b16 %v375
        %v1358 = vunpack.c.h.b16 %v375
        %v1359 = vunpack.c.l.b16 %v376
        %v1360 = vunpack.c.h.b16 %v376
        %v1361 = vunpack.c.l.b16 %v377
        %v1362 = vunpack.c.h.b16 %v377
        %v1363 = vunpack.c.l.b16 %v378
        %v1364 = vunpack.c.h.b16 %v378
        %v1365 = vunpack.c.l.b16 %v379
        %v1366 = vunpack.c.h.b16 %v379
        %v1367 = vunpack.c.l.b16 %v380
        %v1368 = vunpack.c.h.b16 %v380
        %v1369 = vunpack.c.l.b16 %v381
        %v1370 = vunpack.c.h.b16 %v381
        %v1371 = vunpack.c.l.b16 %v382
        %v1372 = vunpack.c.h.b16 %v382
        %v1373 = vunpack.c.l.b16 %v383
        %v1374 = vunpack.c.h.b16 %v383
        %v1375 = vunpack.c.l.b16 %v384
        %v1376 = vunpack.c.h.b16 %v384
        %v1377 = vunpack.c.l.b16 %v385
        %v1378 = vunpack.c.h.b16 %v385
        %v1379 = vunpack.c.l.b16 %v386
        %v1380 = vunpack.c.h.b16 %v386
        %v1381 = vunpack.c.l.b16 %v387
        %v1382 = vunpack.c.h.b16 %v387
        %v1383 = vunpack.c.l.b16 %v388
        %v1384 = vunpack.c.h.b16 %v388
        %v1385 = vunpack.c.l.b16 %v389
        %v1386 = vunpack.c.h.b16 %v389
        %v1387 = vunpack.c.l.b16 %v390
        %v1388 = vunpack.c.h.b16 %v390
        %v1389 = vunpack.c.l.b16 %v391
        %v1390 = vunpack.c.h.b16 %v391
        %v1391 = vunpack.c.l.b16 %v392
        %v1392 = vunpack.c.h.b16 %v392
        %v1393 = vunpack.c.l.b16 %v393
        %v1394 = vunpack.c.h.b16 %v393
        %v1395 = vunpack.c.l.b16 %v394
        %v1396 = vunpack.c.h.b16 %v394
        %v1397 = vunpack.c.l.b16 %v395
        %v1398 = vunpack.c.h.b16 %v395
        %v1399 = vunpack.c.l.b16 %v396
        %v1400 = vunpack.c.h.b16 %v396
        %v1401 = vunpack.c.l.b16 %v397
        %v1402 = vunpack.c.h.b16 %v397
        %v1403 = vunpack.c.l.b16 %v398
        %v1404 = vunpack.c.h.b16 %v398
        %v1405 = vunpack.c.l.b16 %v399
        %v1406 = vunpack.c.h.b16 %v399
        %v1407 = vunpack.c.l.b16 %v400
        %v1408 = vunpack.c.h.b16 %v400
        %v1409 = vunpack.c.l.b16 %v401
        %v1410 = vunpack.c.h.b16 %v401
        %v1411 = vunpack.c.l.b16 %v402
        %v1412 = vunpack.c.h.b16 %v402
        %v1413 = vunpack.c.l.b16 %v403
        %v1414 = vunpack.c.h.b16 %v403
        %v1415 = vunpack.c.l.b16 %v404
        %v1416 = vunpack.c.h.b16 %v404
        %v1417 = vunpack.c.l.b16 %v405
        %v1418 = vunpack.c.h.b16 %v405
        %v1419 = vunpack.c.l.b16 %v406
        %v1420 = vunpack.c.h.b16 %v406
        %v1421 = vunpack.c.l.b16 %v407
        %v1422 = vunpack.c.h.b16 %v407
        %v1423 = vunpack.c.l.b16 %v408
        %v1424 = vunpack.c.h.b16 %v408
        %v1425 = vunpack.c.l.b16 %v409
        %v1426 = vunpack.c.h.b16 %v409
        %v1427 = vunpack.c.l.b16 %v410
        %v1428 = vunpack.c.h.b16 %v410
        %v1429 = vunpack.c.l.b16 %v411
        %v1430 = vunpack.c.h.b16 %v411
        %v1431 = vunpack.c.l.b16 %v412
        %v1432 = vunpack.c.h.b16 %v412
        %v1433 = vunpack.c.l.b16 %v413
        %v1434 = vunpack.c.h.b16 %v413
        %v1435 = vunpack.c.l.b16 %v414
        %v1436 = vunpack.c.h.b16 %v414
        %v1437 = vunpack.c.l.b16 %v415
        %v1438 = vunpack.c.h.b16 %v415
        %v1439 = vunpack.c.l.b16 %v416
        %v1440 = vunpack.c.h.b16 %v416
        %v1441 = vunpack.c.l.b16 %v417
        %v1442 = vunpack.c.h.b16 %v417
        %v1443 = vunpack.c.l.b16 %v418
        %v1444 = vunpack.c.h.b16 %v418
        %v1445 = vunpack.c.l.b16 %v419
        %v1446 = vunpack.c.h.b16 %v419
        %v1447 = vunpack.c.l.b16 %v420
        %v1448 = vunpack.c.h.b16 %v420
        %v1449 = vunpack.c.l.b16 %v421
        %v1450 = vunpack.c.h.b16 %v421
        %v1451 = vunpack.c.l.b16 %v422
        %v1452 = vunpack.c.h.b16 %v422
        %v1453 = vunpack.c.l.b16 %v423
        %v1454 = vunpack.c.h.b16 %v423
        %v1455 = vunpack.c.l.b16 %v424
        %v1456 = vunpack.c.h.b16 %v424
        %v1457 = vunpack.c.l.b16 %v425
        %v1458 = vunpack.c.h.b16 %v425
        %v1459 = vunpack.c.l.b16 %v426
        %v1460 = vunpack.c.h.b16 %v426
        %v1461 = vunpack.c.l.b16 %v427
        %v1462 = vunpack.c.h.b16 %v427
        %v1463 = vunpack.c.l.b16 %v428
        %v1464 = vunpack.c.h.b16 %v428
        %v1465 = vunpack.c.l.b16 %v429
        %v1466 = vunpack.c.h.b16 %v429
        %v1467 = vunpack.c.l.b16 %v430
        %v1468 = vunpack.c.h.b16 %v430
        %v1469 = vunpack.c.l.b16 %v431
        %v1470 = vunpack.c.h.b16 %v431
        %v1471 = vunpack.c.l.b16 %v432
        %v1472 = vunpack.c.h.b16 %v432
        %v1473 = vunpack.c.l.b16 %v433
        %v1474 = vunpack.c.h.b16 %v433
        %v1475 = vunpack.c.l.b16 %v434
        %v1476 = vunpack.c.h.b16 %v434
        %v1477 = vunpack.c.l.b16 %v435
        %v1478 = vunpack.c.h.b16 %v435
        %v1479 = vunpack.c.l.b16 %v436
        %v1480 = vunpack.c.h.b16 %v436
        %v1481 = vunpack.c.l.b16 %v437
        %v1482 = vunpack.c.h.b16 %v437
        %v1483 = vunpack.c.l.b16 %v438
        %v1484 = vunpack.c.h.b16 %v438
        %v1485 = vunpack.c.l.b16 %v439
        %v1486 = vunpack.c.h.b16 %v439
        %v1487 = vunpack.c.l.b16 %v440
        %v1488 = vunpack.c.h.b16 %v440
        %v1489 = vunpack.c.l.b16 %v441
        %v1490 = vunpack.c.h.b16 %v441
        %v1491 = vunpack.c.l.b16 %v442
        %v1492 = vunpack.c.h.b16 %v442
        %v1493 = vunpack.c.l.b16 %v443
        %v1494 = vunpack.c.h.b16 %v443
        %v1495 = vunpack.c.l.b16 %v444
        %v1496 = vunpack.c.h.b16 %v444
        %v1497 = vunpack.c.l.b16 %v445
        %v1498 = vunpack.c.h.b16 %v445
        %v1499 = vunpack.c.l.b16 %v446
        %v1500 = vunpack.c.h.b16 %v446
        %v1501 = vunpack.c.l.b16 %v447
        %v1502 = vunpack.c.h.b16 %v447
        %v1503 = vunpack.c.l.b16 %v448
        %v1504 = vunpack.c.h.b16 %v448
        %v1505 = vunpack.c.l.b16 %v449
        %v1506 = vunpack.c.h.b16 %v449
        %v1507 = vunpack.c.l.b16 %v450
        %v1508 = vunpack.c.h.b16 %v450
        %v1509 = vunpack.c.l.b16 %v451
        %v1510 = vunpack.c.h.b16 %v451
        %v1511 = vunpack.c.l.b16 %v452
        %v1512 = vunpack.c.h.b16 %v452
        %v1513 = vunpack.c.l.b16 %v453
        %v1514 = vunpack.c.h.b16 %v453
        %v1515 = vunpack.c.l.b16 %v454
        %v1516 = vunpack.c.h.b16 %v454
        %v1517 = vunpack.c.l.b16 %v455
        %v1518 = vunpack.c.h.b16 %v455
        %v1519 = vunpack.c.l.b16 %v456
        %v1520 = vunpack.c.h.b16 %v456
        %v1521 = vunpack.c.l.b16 %v457
        %v1522 = vunpack.c.h.b16 %v457
        %v1523 = vunpack.c.l.b16 %v458
        %v1524 = vunpack.c.h.b16 %v458
        %v1525 = vunpack.c.l.b16 %v459
        %v1526 = vunpack.c.h.b16 %v459
        %v1527 = vunpack.c.l.b16 %v460
        %v1528 = vunpack.c.h.b16 %v460
        %v1529 = vunpack.c.l.b16 %v461
        %v1530 = vunpack.c.h.b16 %v461
        %v1531 = vunpack.c.l.b16 %v462
        %v1532 = vunpack.c.h.b16 %v462
        %v1533 = vunpack.c.l.b16 %v463
        %v1534 = vunpack.c.h.b16 %v463
        %v1535 = vunpack.c.l.b16 %v464
        %v1536 = vunpack.c.h.b16 %v464
        %v1537 = vunpack.c.l.b16 %v465
        %v1538 = vunpack.c.h.b16 %v465
        %v1539 = vunpack.c.l.b16 %v466
        %v1540 = vunpack.c.h.b16 %v466
        %v1541 = vunpack.c.l.b16 %v467
        %v1542 = vunpack.c.h.b16 %v467
        %v1543 = vunpack.c.l.b16 %v468
        %v1544 = vunpack.c.h.b16 %v468
        %v1545 = vunpack.c.l.b16 %v469
        %v1546 = vunpack.c.h.b16 %v469
        %v1547 = vunpack.c.l.b16 %v470
        %v1548 = vunpack.c.h.b16 %v470
        %v1549 = vunpack.c.l.b16 %v471
        %v1550 = vunpack.c.h.b16 %v471
        %v1551 = vunpack.c.l.b16 %v472
        %v1552 = vunpack.c.h.b16 %v472
        %v1553 = vunpack.c.l.b16 %v473
        %v1554 = vunpack.c.h.b16 %v473
        %v1555 = vunpack.c.l.b16 %v474
        %v1556 = vunpack.c.h.b16 %v474
        %v1557 = vunpack.c.l.b16 %v475
        %v1558 = vunpack.c.h.b16 %v475
        %v1559 = vunpack.c.l.b16 %v476
        %v1560 = vunpack.c.h.b16 %v476
        %v1561 = vunpack.c.l.b16 %v477
        %v1562 = vunpack.c.h.b16 %v477
        %v1563 = vunpack.c.l.b16 %v478
        %v1564 = vunpack.c.h.b16 %v478
        %v1565 = vunpack.c.l.b16 %v479
        %v1566 = vunpack.c.h.b16 %v479
        %v1567 = vunpack.c.l.b16 %v480
        %v1568 = vunpack.c.h.b16 %v480
        %v1569 = vunpack.c.l.b16 %v481
        %v1570 = vunpack.c.h.b16 %v481
        %v1571 = vunpack.c.l.b16 %v482
        %v1572 = vunpack.c.h.b16 %v482
        %v1573 = vunpack.c.l.b16 %v483
        %v1574 = vunpack.c.h.b16 %v483
        %v1575 = vunpack.c.l.b16 %v484
        %v1576 = vunpack.c.h.b16 %v484
        %v1577 = vunpack.c.l.b16 %v485
        %v1578 = vunpack.c.h.b16 %v485
        %v1579 = vunpack.c.l.b16 %v486
        %v1580 = vunpack.c.h.b16 %v486
        %v1581 = vunpack.c.l.b16 %v487
        %v1582 = vunpack.c.h.b16 %v487
        %v1583 = vunpack.c.l.b16 %v488
        %v1584 = vunpack.c.h.b16 %v488
        %v1585 = vunpack.c.l.b16 %v489
        %v1586 = vunpack.c.h.b16 %v489
        %v1587 = vunpack.c.l.b16 %v490
        %v1588 = vunpack.c.h.b16 %v490
        %v1589 = vunpack.c.l.b16 %v491
        %v1590 = vunpack.c.h.b16 %v491
        %v1591 = vunpack.c.l.b16 %v492
        %v1592 = vunpack.c.h.b16 %v492
        %v1593 = vunpack.c.l.b16 %v493
        %v1594 = vunpack.c.h.b16 %v493
        %v1595 = vunpack.c.l.b16 %v494
        %v1596 = vunpack.c.h.b16 %v494
        %v1597 = vunpack.c.l.b16 %v495
        %v1598 = vunpack.c.h.b16 %v495
        %v1599 = vunpack.c.l.b16 %v496
        %v1600 = vunpack.c.h.b16 %v496
        %v1601 = vunpack.c.l.b16 %v497
        %v1602 = vunpack.c.h.b16 %v497
        %v1603 = vunpack.c.l.b16 %v498
        %v1604 = vunpack.c.h.b16 %v498
        %v1605 = vunpack.c.l.b16 %v499
        %v1606 = vunpack.c.h.b16 %v499
        %v1607 = vunpack.c.l.b16 %v500
        %v1608 = vunpack.c.h.b16 %v500
        %v1609 = vunpack.c.l.b16 %v501
        %v1610 = vunpack.c.h.b16 %v501
        %v1611 = vunpack.c.l.b16 %v502
        %v1612 = vunpack.c.h.b16 %v502
        %v1613 = vunpack.c.l.b16 %v503
        %v1614 = vunpack.c.h.b16 %v503
        %v1615 = vunpack.c.l.b16 %v504
        %v1616 = vunpack.c.h.b16 %v504
        %v1617 = vunpack.c.l.b16 %v505
        %v1618 = vunpack.c.h.b16 %v505
        %v1619 = vunpack.c.l.b16 %v506
        %v1620 = vunpack.c.h.b16 %v506
        %v1621 = vunpack.c.l.b16 %v507
        %v1622 = vunpack.c.h.b16 %v507
        %v1623 = vunpack.c.l.b16 %v508
        %v1624 = vunpack.c.h.b16 %v508
        %v1625 = vunpack.c.l.b16 %v509
        %v1626 = vunpack.c.h.b16 %v509
        %v1627 = vunpack.c.l.b16 %v510
        %v1628 = vunpack.c.h.b16 %v510
        %v1629 = vpack.c.b16 %v1059, %v1053
        %v1630 = vpack.c.b16 %v1060, %v1054
        %v1631 = vpack.c.b16 %v1061, %v1055
        %v1632 = vpack.c.b16 %v1062, %v1056
        %v1633 = vpack.c.b16 %v1063, %v1057
        %v1634 = vpack.c.b16 %v1064, %v1058
        %v1635 = vpack.c.b16 %v1071, %v1065
        %v1636 = vpack.c.b16 %v1072, %v1066
        %v1637 = vpack.c.b16 %v1073, %v1067
        %v1638 = vpack.c.b16 %v1074, %v1068
        %v1639 = vpack.c.b16 %v1075, %v1069
        %v1640 = vpack.c.b16 %v1076, %v1070
        %v1641 = vpack.c.b16 %v1083, %v1077
        %v1642 = vpack.c.b16 %v1084, %v1078
        %v1643 = vpack.c.b16 %v1085, %v1079
        %v1644 = vpack.c.b16 %v1086, %v1080
        %v1645 = vpack.c.b16 %v1087, %v1081
        %v1646 = vpack.c.b16 %v1088, %v1082
        %v1647 = vpack.c.b16 %v1095, %v1089
        %v1648 = vpack.c.b16 %v1096, %v1090
        %v1649 = vpack.c.b16 %v1097, %v1091
        %v1650 = vpack.c.b16 %v1098, %v1092
        %v1651 = vpack.c.b16 %v1099, %v1093
        %v1652 = vpack.c.b16 %v1100, %v1094
        %v1653 = vpack.c.b16 %v1107, %v1101
        %v1654 = vpack.c.b16 %v1108, %v1102
        %v1655 = vpack.c.b16 %v1109, %v1103
        %v1656 = vpack.c.b16 %v1110, %v1104
        %v1657 = vpack.c.b16 %v1111, %v1105
        %v1658 = vpack.c.b16 %v1112, %v1106
        %v1659 = vpack.c.b16 %v1119, %v1113
        %v1660 = vpack.c.b16 %v1120, %v1114
        %v1661 = vpack.c.b16 %v1121, %v1115
        %v1662 = vpack.c.b16 %v1122, %v1116
        %v1663 = vpack.c.b16 %v1123, %v1117
        %v1664 = vpack.c.b16 %v1124, %v1118
        %v1665 = vpack.c.b16 %v1131, %v1125
        %v1666 = vpack.c.b16 %v1132, %v1126
        %v1667 = vpack.c.b16 %v1133, %v1127
        %v1668 = vpack.c.b16 %v1134, %v1128
        %v1669 = vpack.c.b16 %v1135, %v1129
        %v1670 = vpack.c.b16 %v1136, %v1130
        %v1671 = vpack.c.b16 %v1143, %v1137
        %v1672 = vpack.c.b16 %v1144, %v1138
        %v1673 = vpack.c.b16 %v1145, %v1139
        %v1674 = vpack.c.b16 %v1146, %v1140
        %v1675 = vpack.c.b16 %v1147, %v1141
        %v1676 = vpack.c.b16 %v1148, %v1142
        %v1677 = vpack.c.b16 %v1155, %v1149
        %v1678 = vpack.c.b16 %v1156, %v1150
        %v1679 = vpack.c.b16 %v1157, %v1151
        %v1680 = vpack.c.b16 %v1158, %v1152
        %v1681 = vpack.c.b16 %v1159, %v1153
        %v1682 = vpack.c.b16 %v1160, %v1154
        %v1683 = vpack.c.b16 %v1167, %v1161
        %v1684 = vpack.c.b16 %v1168, %v1162
        %v1685 = vpack.c.b16 %v1169, %v1163
        %v1686 = vpack.c.b16 %v1170, %v1164
        %v1687 = vpack.c.b16 %v1171, %v1165
        %v1688 = vpack.c.b16 %v1172, %v1166
        %v1689 = vpack.c.b16 %v1179, %v1173
        %v1690 = vpack.c.b16 %v1180, %v1174
        %v1691 = vpack.c.b16 %v1181, %v1175
        %v1692 = vpack.c.b16 %v1182, %v1176
        %v1693 = vpack.c.b16 %v1183, %v1177
        %v1694 = vpack.c.b16 %v1184, %v1178
        %v1695 = vpack.c.b16 %v1191, %v1185
        %v1696 = vpack.c.b16 %v1192, %v1186
        %v1697 = vpack.c.b16 %v1193, %v1187
        %v1698 = vpack.c.b16 %v1194, %v1188
        %v1699 = vpack.c.b16 %v1195, %v1189
        %v1700 = vpack.c.b16 %v1196, %v1190
        %v1701 = vpack.c.b16 %v1203, %v1197
        %v1702 = vpack.c.b16 %v1204, %v1198
        %v1703 = vpack.c.b16 %v1205, %v1199
        %v1704 = vpack.c.b16 %v1206, %v1200
        %v1705 = vpack.c.b16 %v1207, %v1201
        %v1706 = vpack.c.b16 %v1208, %v1202
        %v1707 = vpack.c.b16 %v1215, %v1209
        %v1708 = vpack.c.b16 %v1216, %v1210
        %v1709 = vpack.c.b16 %v1217, %v1211
        %v1710 = vpack.c.b16 %v1218, %v1212
        %v1711 = vpack.c.b16 %v1219, %v1213
        %v1712 = vpack.c.b16 %v1220, %v1214
        %v1713 = vpack.c.b16 %v1227, %v1221
        %v1714 = vpack.c.b16 %v1228, %v1222
        %v1715 = vpack.c.b16 %v1229, %v1223
        %v1716 = vpack.c.b16 %v1230, %v1224
        %v1717 = vpack.c.b16 %v1231, %v1225
        %v1718 = vpack.c.b16 %v1232, %v1226
        %v1719 = vpack.c.b16 %v1239, %v1233
        %v1720 = vpack.c.b16 %v1240, %v1234
        %v1721 = vpack.c.b16 %v1241, %v1235
        %v1722 = vpack.c.b16 %v1242, %v1236
        %v1723 = vpack.c.b16 %v1243, %v1237
        %v1724 = vpack.c.b16 %v1244, %v1238
        %v1725 = vpack.c.b16 %v1251, %v1245
        %v1726 = vpack.c.b16 %v1252, %v1246
        %v1727 = vpack.c.b16 %v1253, %v1247
        %v1728 = vpack.c.b16 %v1254, %v1248
        %v1729 = vpack.c.b16 %v1255, %v1249
        %v1730 = vpack.c.b16 %v1256, %v1250
        %v1731 = vpack.c.b16 %v1263, %v1257
        %v1732 = vpack.c.b16 %v1264, %v1258
        %v1733 = vpack.c.b16 %v1265, %v1259
        %v1734 = vpack.c.b16 %v1266, %v1260
        %v1735 = vpack.c.b16 %v1267, %v1261
        %v1736 = vpack.c.b16 %v1268, %v1262
        %v1737 = vpack.c.b16 %v1275, %v1269
        %v1738 = vpack.c.b16 %v1276, %v1270
        %v1739 = vpack.c.b16 %v1277, %v1271
        %v1740 = vpack.c.b16 %v1278, %v1272
        %v1741 = vpack.c.b16 %v1279, %v1273
        %v1742 = vpack.c.b16 %v1280, %v1274
        %v1743 = vpack.c.b16 %v1287, %v1281
        %v1744 = vpack.c.b16 %v1288, %v1282
        %v1745 = vpack.c.b16 %v1289, %v1283
        %v1746 = vpack.c.b16 %v1290, %v1284
        %v1747 = vpack.c.b16 %v1291, %v1285
        %v1748 = vpack.c.b16 %v1292, %v1286
        %v1749 = vpack.c.b16 %v1299, %v1293
        %v1750 = vpack.c.b16 %v1300, %v1294
        %v1751 = vpack.c.b16 %v1301, %v1295
        %v1752 = vpack.c.b16 %v1302, %v1296
        %v1753 = vpack.c.b16 %v1303, %v1297
        %v1754 = vpack.c.b16 %v1304, %v1298
        %v1755 = vpack.c.b16 %v1311, %v1305
        %v1756 = vpack.c.b16 %v1312, %v1306
        %v1757 = vpack.c.b16 %v1313, %v1307
        %v1758 = vpack.c.b16 %v1314, %v1308
        %v1759 = vpack.c.b16 %v1315, %v1309
        %v1760 = vpack.c.b16 %v1316, %v1310
        %v1761 = vpack.c.b16 %v1323, %v1317
        %v1762 = vpack.c.b16 %v1324, %v1318
        %v1763 = vpack.c.b16 %v1325, %v1319
        %v1764 = vpack.c.b16 %v1326, %v1320
        %v1765 = vpack.c.b16 %v1327, %v1321
        %v1766 = vpack.c.b16 %v1328, %v1322
        %v1767 = vpack.c.b16 %v1335, %v1329
        %v1768 = vpack.c.b16 %v1336, %v1330
        %v1769 = vpack.c.b16 %v1337, %v1331
        %v1770 = vpack.c.b16 %v1338, %v1332
        %v1771 = vpack.c.b16 %v1339, %v1333
        %v1772 = vpack.c.b16 %v1340, %v1334
        %v1773 = vpack.c.b16 %v1347, %v1341
        %v1774 = vpack.c.b16 %v1348, %v1342
        %v1775 = vpack.c.b16 %v1349, %v1343
        %v1776 = vpack.c.b16 %v1350, %v1344
        %v1777 = vpack.c.b16 %v1351, %v1345
        %v1778 = vpack.c.b16 %v1352, %v1346
        %v1779 = vpack.c.b16 %v1359, %v1353
        %v1780 = vpack.c.b16 %v1360, %v1354
        %v1781 = vpack.c.b16 %v1361, %v1355
        %v1782 = vpack.c.b16 %v1362, %v1356
        %v1783 = vpack.c.b16 %v1363, %v1357
        %v1784 = vpack.c.b16 %v1364, %v1358
        %v1785 = vpack.c.b16 %v1371, %v1365
        %v1786 = vpack.c.b16 %v1372, %v1366
        %v1787 = vpack.c.b16 %v1373, %v1367
        %v1788 = vpack.c.b16 %v1374, %v1368
        %v1789 = vpack.c.b16 %v1375, %v1369
        %v1790 = vpack.c.b16 %v1376, %v1370
        %v1791 = vpack.c.b16 %v1383, %v1377
        %v1792 = vpack.c.b16 %v1384, %v1378
        %v1793 = vpack.c.b16 %v1385, %v1379
        %v1794 = vpack.c.b16 %v1386, %v1380
        %v1795 = vpack.c.b16 %v1387, %v1381
        %v1796 = vpack.c.b16 %v1388, %v1382
        %v1797 = vpack.c.b16 %v1395, %v1389
        %v1798 = vpack.c.b16 %v1396, %v1390
        %v1799 = vpack.c.b16 %v1397, %v1391
        %v1800 = vpack.c.b16 %v1398, %v1392
        %v1801 = vpack.c.b16 %v1399, %v1393
        %v1802 = vpack.c.b16 %v1400, %v1394
        %v1803 = vpack.c.b16 %v1407, %v1401
        %v1804 = vpack.c.b16 %v1408, %v1402
        %v1805 = vpack.c.b16 %v1409, %v1403
        %v1806 = vpack.c.b16 %v1410, %v1404
        %v1807 = vpack.c.b16 %v1411, %v1405
        %v1808 = vpack.c.b16 %v1412, %v1406
        %v1809 = vpack.c.b16 %v1419, %v1413
        %v1810 = vpack.c.b16 %v1420, %v1414
        %v1811 = vpack.c.b16 %v1421, %v1415
        %v1812 = vpack.c.b16 %v1422, %v1416
        %v1813 = vpack.c.b16 %v1423, %v1417
        %v1814 = vpack.c.b16 %v1424, %v1418
        %v1815 = vpack.c.b16 %v1431, %v1425
        %v1816 = vpack.c.b16 %v1432, %v1426
        %v1817 = vpack.c.b16 %v1433, %v1427
        %v1818 = vpack.c.b16 %v1434, %v1428
        %v1819 = vpack.c.b16 %v1435, %v1429
        %v1820 = vpack.c.b16 %v1436, %v1430
        %v1821 = vpack.c.b16 %v1443, %v1437
        %v1822 = vpack.c.b16 %v1444, %v1438
        %v1823 = vpack.c.b16 %v1445, %v1439
        %v1824 = vpack.c.b16 %v1446, %v1440
        %v1825 = vpack.c.b16 %v1447, %v1441
        %v1826 = vpack.c.b16 %v1448, %v1442
        %v1827 = vpack.c.b16 %v1455, %v1449
        %v1828 = vpack.c.b16 %v1456, %v1450
        %v1829 = vpack.c.b16 %v1457, %v1451
        %v1830 = vpack.c.b16 %v1458, %v1452
        %v1831 = vpack.c.b16 %v1459, %v1453
        %v1832 = vpack.c.b16 %v1460, %v1454
        %v1833 = vpack.c.b16 %v1467, %v1461
        %v1834 = vpack.c.b16 %v1468, %v1462
        %v1835 = vpack.c.b16 %v1469, %v1463
        %v1836 = vpack.c.b16 %v1470, %v1464
        %v1837 = vpack.c.b16 %v1471, %v1465
        %v1838 = vpack.c.b16 %v1472, %v1466
        %v1839 = vpack.c.b16 %v1479, %v1473
        %v1840 = vpack.c.b16 %v1480, %v1474
        %v1841 = vpack.c.b16 %v1481, %v1475
        %v1842 = vpack.c.b16 %v1482, %v1476
        %v1843 = vpack.c.b16 %v1483, %v1477
        %v1844 = vpack.c.b16 %v1484, %v1478
        %v1845 = vpack.c.b16 %v1491, %v1485
        %v1846 = vpack.c.b16 %v1492, %v1486
        %v1847 = vpack.c.b16 %v1493, %v1487
        %v1848 = vpack.c.b16 %v1494, %v1488
        %v1849 = vpack.c.b16 %v1495, %v1489
        %v1850 = vpack.c.b16 %v1496, %v1490
        %v1851 = vpack.c.b16 %v1503, %v1497
        %v1852 = vpack.c.b16 %v1504, %v1498
        %v1853 = vpack.c.b16 %v1505, %v1499
        %v1854 = vpack.c.b16 %v1506, %v1500
        %v1855 = vpack.c.b16 %v1507, %v1501
        %v1856 = vpack.c.b16 %v1508, %v1502
        %v1857 = vpack.c.b16 %v1515, %v1509
        %v1858 = vpack.c.b16 %v1516, %v1510
        %v1859 = vpack.c.b16 %v1517, %v1511
        %v1860 = vpack.c.b16 %v1518, %v1512
        %v1861 = vpack.c.b16 %v1519, %v1513
        %v1862 = vpack.c.b16 %v1520, %v1514
        %v1863 = vpack.c.b16 %v1527, %v1521
        %v1864 = vpack.c.b16 %v1528, %v1522
        %v1865 = vpack.c.b16 %v1529, %v1523
        %v1866 = vpack.c.b16 %v1530, %v1524
        %v1867 = vpack.c.b16 %v1531, %v1525
        %v1868 = vpack.c.b16 %v1532, %v1526
        %v1869 = vpack.c.b16 %v1539, %v1533
        %v1870 = vpack.c.b16 %v1540, %v1534
        %v1871 = vpack.c.b16 %v1541, %v1535
        %v1872 = vpack.c.b16 %v1542, %v1536
        %v1873 = vpack.c.b16 %v1543, %v1537
        %v1874 = vpack.c.b16 %v1544, %v1538
        %v1875 = vpack.c.b16 %v1551, %v1545
        %v1876 = vpack.c.b16 %v1552, %v1546
        %v1877 = vpack.c.b16 %v1553, %v1547
        %v1878 = vpack.c.b16 %v1554, %v1548
        %v1879 = vpack.c.b16 %v1555, %v1549
        %v1880 = vpack.c.b16 %v1556, %v1550
        %v1881 = vpack.c.b16 %v1563, %v1557
        %v1882 = vpack.c.b16 %v1564, %v1558
        %v1883 = vpack.c.b16 %v1565, %v1559
        %v1884 = vpack.c.b16 %v1566, %v1560
        %v1885 = vpack.c.b16 %v1567, %v1561
        %v1886 = vpack.c.b16 %v1568, %v1562
        %v1887 = vpack.c.b16 %v1575, %v1569
        %v1888 = vpack.c.b16 %v1576, %v1570
        %v1889 = vpack.c.b16 %v1577, %v1571
        %v1890 = vpack.c.b16 %v1578, %v1572
        %v1891 = vpack.c.b16 %v1579, %v1573
        %v1892 = vpack.c.b16 %v1580, %v1574
        %v1893 = vpack.c.b16 %v1587, %v1581
        %v1894 = vpack.c.b16 %v1588, %v1582
        %v1895 = vpack.c.b16 %v1589, %v1583
        %v1896 = vpack.c.b16 %v1590, %v1584
        %v1897 = vpack.c.b16 %v1591, %v1585
        %v1898 = vpack.c.b16 %v1592, %v1586
        %v1899 = vpack.c.b16 %v1599, %v1593
        %v1900 = vpack.c.b16 %v1600, %v1594
        %v1901 = vpack.c.b16 %v1601, %v1595
        %v1902 = vpack.c.b16 %v1602, %v1596
        %v1903 = vpack.c.b16 %v1603, %v1597
        %v1904 = vpack.c.b16 %v1604, %v1598
        %v1905 = vpack.c.b16 %v1611, %v1605
        %v1906 = vpack.c.b16 %v1612, %v1606
        %v1907 = vpack.c.b16 %v1613, %v1607
        %v1908 = vpack.c.b16 %v1614, %v1608
        %v1909 = vpack.c.b16 %v1615, %v1609
        %v1910 = vpack.c.b16 %v1616, %v1610
        %v1911 = vpack.c.b16 %v1623, %v1617
        %v1912 = vpack.c.b16 %v1624, %v1618
        %v1913 = vpack.c.b16 %v1625, %v1619
        %v1914 = vpack.c.b16 %v1626, %v1620
        %v1915 = vpack.c.b16 %v1627, %v1621
        %v1916 = vpack.c.b16 %v1628, %v1622
        %2205 = vmatpush.bf16.msra.mxu0 %v1671
        %2206 = vmatpush.bf16.msra.mxu0 %v1665
        %2207 = vmatpush.bf16.msra.mxu0 %v1659
        %2208 = vmatpush.bf16.msra.mxu0 %v1653
        %2209 = vmatpush.bf16.msra.mxu0 %v1647
        %2210 = vmatpush.bf16.msra.mxu0 %v1641
        %2211 = vmatpush.bf16.msra.mxu0 %v1635
        %2212 = vmatpush.bf16.msra.mxu0 %v1629
        %2213 = vmatmul.bf16.gmra.mxu0 %v669
        %v2214 = vpop.f32.mrf.mxu0
        %v2215 = vadd.f32 %v513, %v2214
        %v2216 = vpop.f32.mrf.mxu0
        %v2217 = vadd.f32 %v513, %v2216
        %2218 = vmatmul.bf16.gmra.mxu0 %v675
        %v2219 = vpop.f32.mrf.mxu0
        %v2220 = vadd.f32 %v513, %v2219
        %v2221 = vpop.f32.mrf.mxu0
        %v2222 = vadd.f32 %v513, %v2221
        %2223 = vmatmul.bf16.gmra.mxu0 %v681
        %v2224 = vpop.f32.mrf.mxu0
        %v2225 = vadd.f32 %v513, %v2224
        %v2226 = vpop.f32.mrf.mxu0
        %v2227 = vadd.f32 %v513, %v2226
        %2228 = vmatmul.bf16.gmra.mxu0 %v687
        %v2229 = vpop.f32.mrf.mxu0
        %v2230 = vadd.f32 %v513, %v2229
        %v2231 = vpop.f32.mrf.mxu0
        %v2232 = vadd.f32 %v513, %v2231
        %2233 = vmatmul.bf16.gmra.mxu0 %v693
        %v2234 = vpop.f32.mrf.mxu0
        %v2235 = vadd.f32 %v513, %v2234
        %v2236 = vpop.f32.mrf.mxu0
        %v2237 = vadd.f32 %v513, %v2236
        %2238 = vmatmul.bf16.gmra.mxu0 %v699
        %v2239 = vpop.f32.mrf.mxu0
        %v2240 = vadd.f32 %v513, %v2239
        %v2241 = vpop.f32.mrf.mxu0
        %v2242 = vadd.f32 %v513, %v2241
        %2243 = vmatmul.bf16.gmra.mxu0 %v705
        %v2244 = vpop.f32.mrf.mxu0
        %v2245 = vadd.f32 %v513, %v2244
        %v2246 = vpop.f32.mrf.mxu0
        %v2247 = vadd.f32 %v513, %v2246
        %2248 = vmatmul.bf16.gmra.mxu0 %v711
        %v2249 = vpop.f32.mrf.mxu0
        %v2250 = vadd.f32 %v513, %v2249
        %v2251 = vpop.f32.mrf.mxu0
        %v2252 = vadd.f32 %v513, %v2251
        %2253 = vdwg.mxu0
        %2254 = vmatpush.bf16.msra.mxu0 %v1719
        %2255 = vmatpush.bf16.msra.mxu0 %v1713
        %2256 = vmatpush.bf16.msra.mxu0 %v1707
        %2257 = vmatpush.bf16.msra.mxu0 %v1701
        %2258 = vmatpush.bf16.msra.mxu0 %v1695
        %2259 = vmatpush.bf16.msra.mxu0 %v1689
        %2260 = vmatpush.bf16.msra.mxu0 %v1683
        %2261 = vmatpush.bf16.msra.mxu0 %v1677
        %2262 = vmatmul.bf16.gmra.mxu0 %v670
        %v2263 = vpop.f32.mrf.mxu0
        %v2264 = vadd.f32 %v2215, %v2263
        %v2265 = vpop.f32.mrf.mxu0
        %v2266 = vadd.f32 %v2217, %v2265
        %2267 = vmatmul.bf16.gmra.mxu0 %v676
        %v2268 = vpop.f32.mrf.mxu0
        %v2269 = vadd.f32 %v2220, %v2268
        %v2270 = vpop.f32.mrf.mxu0
        %v2271 = vadd.f32 %v2222, %v2270
        %2272 = vmatmul.bf16.gmra.mxu0 %v682
        %v2273 = vpop.f32.mrf.mxu0
        %v2274 = vadd.f32 %v2225, %v2273
        %v2275 = vpop.f32.mrf.mxu0
        %v2276 = vadd.f32 %v2227, %v2275
        %2277 = vmatmul.bf16.gmra.mxu0 %v688
        %v2278 = vpop.f32.mrf.mxu0
        %v2279 = vadd.f32 %v2230, %v2278
        %v2280 = vpop.f32.mrf.mxu0
        %v2281 = vadd.f32 %v2232, %v2280
        %2282 = vmatmul.bf16.gmra.mxu0 %v694
        %v2283 = vpop.f32.mrf.mxu0
        %v2284 = vadd.f32 %v2235, %v2283
        %v2285 = vpop.f32.mrf.mxu0
        %v2286 = vadd.f32 %v2237, %v2285
        %2287 = vmatmul.bf16.gmra.mxu0 %v700
        %v2288 = vpop.f32.mrf.mxu0
        %v2289 = vadd.f32 %v2240, %v2288
        %v2290 = vpop.f32.mrf.mxu0
        %v2291 = vadd.f32 %v2242, %v2290
        %2292 = vmatmul.bf16.gmra.mxu0 %v706
        %v2293 = vpop.f32.mrf.mxu0
        %v2294 = vadd.f32 %v2245, %v2293
        %v2295 = vpop.f32.mrf.mxu0
        %v2296 = vadd.f32 %v2247, %v2295
        %2297 = vmatmul.bf16.gmra.mxu0 %v712
        %v2298 = vpop.f32.mrf.mxu0
        %v2299 = vadd.f32 %v2250, %v2298
        %v2300 = vpop.f32.mrf.mxu0
        %v2301 = vadd.f32 %v2252, %v2300
        %2302 = vdwg.mxu0
        %2303 = vmatpush.bf16.msra.mxu0 %v1767
        %2304 = vmatpush.bf16.msra.mxu0 %v1761
        %2305 = vmatpush.bf16.msra.mxu0 %v1755
        %2306 = vmatpush.bf16.msra.mxu0 %v1749
        %2307 = vmatpush.bf16.msra.mxu0 %v1743
        %2308 = vmatpush.bf16.msra.mxu0 %v1737
        %2309 = vmatpush.bf16.msra.mxu0 %v1731
        %2310 = vmatpush.bf16.msra.mxu0 %v1725
        %2311 = vmatmul.bf16.gmra.mxu0 %v671
        %v2312 = vpop.f32.mrf.mxu0
        %v2313 = vadd.f32 %v2264, %v2312
        %v2314 = vpop.f32.mrf.mxu0
        %v2315 = vadd.f32 %v2266, %v2314
        %2316 = vmatmul.bf16.gmra.mxu0 %v677
        %v2317 = vpop.f32.mrf.mxu0
        %v2318 = vadd.f32 %v2269, %v2317
        %v2319 = vpop.f32.mrf.mxu0
        %v2320 = vadd.f32 %v2271, %v2319
        %2321 = vmatmul.bf16.gmra.mxu0 %v683
        %v2322 = vpop.f32.mrf.mxu0
        %v2323 = vadd.f32 %v2274, %v2322
        %v2324 = vpop.f32.mrf.mxu0
        %v2325 = vadd.f32 %v2276, %v2324
        %2326 = vmatmul.bf16.gmra.mxu0 %v689
        %v2327 = vpop.f32.mrf.mxu0
        %v2328 = vadd.f32 %v2279, %v2327
        %v2329 = vpop.f32.mrf.mxu0
        %v2330 = vadd.f32 %v2281, %v2329
        %2331 = vmatmul.bf16.gmra.mxu0 %v695
        %v2332 = vpop.f32.mrf.mxu0
        %v2333 = vadd.f32 %v2284, %v2332
        %v2334 = vpop.f32.mrf.mxu0
        %v2335 = vadd.f32 %v2286, %v2334
        %2336 = vmatmul.bf16.gmra.mxu0 %v701
        %v2337 = vpop.f32.mrf.mxu0
        %v2338 = vadd.f32 %v2289, %v2337
        %v2339 = vpop.f32.mrf.mxu0
        %v2340 = vadd.f32 %v2291, %v2339
        %2341 = vmatmul.bf16.gmra.mxu0 %v707
        %v2342 = vpop.f32.mrf.mxu0
        %v2343 = vadd.f32 %v2294, %v2342
        %v2344 = vpop.f32.mrf.mxu0
        %v2345 = vadd.f32 %v2296, %v2344
        %2346 = vmatmul.bf16.gmra.mxu0 %v713
        %v2347 = vpop.f32.mrf.mxu0
        %v2348 = vadd.f32 %v2299, %v2347
        %v2349 = vpop.f32.mrf.mxu0
        %v2350 = vadd.f32 %v2301, %v2349
        %2351 = vdwg.mxu0
        %2352 = vmatpush.bf16.msra.mxu0 %v1815
        %2353 = vmatpush.bf16.msra.mxu0 %v1809
        %2354 = vmatpush.bf16.msra.mxu0 %v1803
        %2355 = vmatpush.bf16.msra.mxu0 %v1797
        %2356 = vmatpush.bf16.msra.mxu0 %v1791
        %2357 = vmatpush.bf16.msra.mxu0 %v1785
        %2358 = vmatpush.bf16.msra.mxu0 %v1779
        %2359 = vmatpush.bf16.msra.mxu0 %v1773
        %2360 = vmatmul.bf16.gmra.mxu0 %v672
        %v2361 = vpop.f32.mrf.mxu0
        %v2362 = vadd.f32 %v2313, %v2361
        %v2363 = vpop.f32.mrf.mxu0
        %v2364 = vadd.f32 %v2315, %v2363
        %2365 = vmatmul.bf16.gmra.mxu0 %v678
        %v2366 = vpop.f32.mrf.mxu0
        %v2367 = vadd.f32 %v2318, %v2366
        %v2368 = vpop.f32.mrf.mxu0
        %v2369 = vadd.f32 %v2320, %v2368
        %2370 = vmatmul.bf16.gmra.mxu0 %v684
        %v2371 = vpop.f32.mrf.mxu0
        %v2372 = vadd.f32 %v2323, %v2371
        %v2373 = vpop.f32.mrf.mxu0
        %v2374 = vadd.f32 %v2325, %v2373
        %2375 = vmatmul.bf16.gmra.mxu0 %v690
        %v2376 = vpop.f32.mrf.mxu0
        %v2377 = vadd.f32 %v2328, %v2376
        %v2378 = vpop.f32.mrf.mxu0
        %v2379 = vadd.f32 %v2330, %v2378
        %2380 = vmatmul.bf16.gmra.mxu0 %v696
        %v2381 = vpop.f32.mrf.mxu0
        %v2382 = vadd.f32 %v2333, %v2381
        %v2383 = vpop.f32.mrf.mxu0
        %v2384 = vadd.f32 %v2335, %v2383
        %2385 = vmatmul.bf16.gmra.mxu0 %v702
        %v2386 = vpop.f32.mrf.mxu0
        %v2387 = vadd.f32 %v2338, %v2386
        %v2388 = vpop.f32.mrf.mxu0
        %v2389 = vadd.f32 %v2340, %v2388
        %2390 = vmatmul.bf16.gmra.mxu0 %v708
        %v2391 = vpop.f32.mrf.mxu0
        %v2392 = vadd.f32 %v2343, %v2391
        %v2393 = vpop.f32.mrf.mxu0
        %v2394 = vadd.f32 %v2345, %v2393
        %2395 = vmatmul.bf16.gmra.mxu0 %v714
        %v2396 = vpop.f32.mrf.mxu0
        %v2397 = vadd.f32 %v2348, %v2396
        %v2398 = vpop.f32.mrf.mxu0
        %v2399 = vadd.f32 %v2350, %v2398
        %2400 = vdwg.mxu0
        %2401 = vmatpush.bf16.msra.mxu0 %v1863
        %2402 = vmatpush.bf16.msra.mxu0 %v1857
        %2403 = vmatpush.bf16.msra.mxu0 %v1851
        %2404 = vmatpush.bf16.msra.mxu0 %v1845
        %2405 = vmatpush.bf16.msra.mxu0 %v1839
        %2406 = vmatpush.bf16.msra.mxu0 %v1833
        %2407 = vmatpush.bf16.msra.mxu0 %v1827
        %2408 = vmatpush.bf16.msra.mxu0 %v1821
        %2409 = vmatmul.bf16.gmra.mxu0 %v673
        %v2410 = vpop.f32.mrf.mxu0
        %v2411 = vadd.f32 %v2362, %v2410
        %v2412 = vpop.f32.mrf.mxu0
        %v2413 = vadd.f32 %v2364, %v2412
        %2414 = vmatmul.bf16.gmra.mxu0 %v679
        %v2415 = vpop.f32.mrf.mxu0
        %v2416 = vadd.f32 %v2367, %v2415
        %v2417 = vpop.f32.mrf.mxu0
        %v2418 = vadd.f32 %v2369, %v2417
        %2419 = vmatmul.bf16.gmra.mxu0 %v685
        %v2420 = vpop.f32.mrf.mxu0
        %v2421 = vadd.f32 %v2372, %v2420
        %v2422 = vpop.f32.mrf.mxu0
        %v2423 = vadd.f32 %v2374, %v2422
        %2424 = vmatmul.bf16.gmra.mxu0 %v691
        %v2425 = vpop.f32.mrf.mxu0
        %v2426 = vadd.f32 %v2377, %v2425
        %v2427 = vpop.f32.mrf.mxu0
        %v2428 = vadd.f32 %v2379, %v2427
        %2429 = vmatmul.bf16.gmra.mxu0 %v697
        %v2430 = vpop.f32.mrf.mxu0
        %v2431 = vadd.f32 %v2382, %v2430
        %v2432 = vpop.f32.mrf.mxu0
        %v2433 = vadd.f32 %v2384, %v2432
        %2434 = vmatmul.bf16.gmra.mxu0 %v703
        %v2435 = vpop.f32.mrf.mxu0
        %v2436 = vadd.f32 %v2387, %v2435
        %v2437 = vpop.f32.mrf.mxu0
        %v2438 = vadd.f32 %v2389, %v2437
        %2439 = vmatmul.bf16.gmra.mxu0 %v709
        %v2440 = vpop.f32.mrf.mxu0
        %v2441 = vadd.f32 %v2392, %v2440
        %v2442 = vpop.f32.mrf.mxu0
        %v2443 = vadd.f32 %v2394, %v2442
        %2444 = vmatmul.bf16.gmra.mxu0 %v715
        %v2445 = vpop.f32.mrf.mxu0
        %v2446 = vadd.f32 %v2397, %v2445
        %v2447 = vpop.f32.mrf.mxu0
        %v2448 = vadd.f32 %v2399, %v2447
        %2449 = vdwg.mxu0
        %2450 = vmatpush.bf16.msra.mxu0 %v1911
        %2451 = vmatpush.bf16.msra.mxu0 %v1905
        %2452 = vmatpush.bf16.msra.mxu0 %v1899
        %2453 = vmatpush.bf16.msra.mxu0 %v1893
        %2454 = vmatpush.bf16.msra.mxu0 %v1887
        %2455 = vmatpush.bf16.msra.mxu0 %v1881
        %2456 = vmatpush.bf16.msra.mxu0 %v1875
        %2457 = vmatpush.bf16.msra.mxu0 %v1869
        %2458 = vmatmul.bf16.gmra.mxu0 %v674
        %v2459 = vpop.f32.mrf.mxu0
        %v2460 = vadd.f32 %v2411, %v2459
        %v2461 = vpop.f32.mrf.mxu0
        %v2462 = vadd.f32 %v2413, %v2461
        %2463 = vmatmul.bf16.gmra.mxu0 %v680
        %v2464 = vpop.f32.mrf.mxu0
        %v2465 = vadd.f32 %v2416, %v2464
        %v2466 = vpop.f32.mrf.mxu0
        %v2467 = vadd.f32 %v2418, %v2466
        %2468 = vmatmul.bf16.gmra.mxu0 %v686
        %v2469 = vpop.f32.mrf.mxu0
        %v2470 = vadd.f32 %v2421, %v2469
        %v2471 = vpop.f32.mrf.mxu0
        %v2472 = vadd.f32 %v2423, %v2471
        %2473 = vmatmul.bf16.gmra.mxu0 %v692
        %v2474 = vpop.f32.mrf.mxu0
        %v2475 = vadd.f32 %v2426, %v2474
        %v2476 = vpop.f32.mrf.mxu0
        %v2477 = vadd.f32 %v2428, %v2476
        %2478 = vmatmul.bf16.gmra.mxu0 %v698
        %v2479 = vpop.f32.mrf.mxu0
        %v2480 = vadd.f32 %v2431, %v2479
        %v2481 = vpop.f32.mrf.mxu0
        %v2482 = vadd.f32 %v2433, %v2481
        %2483 = vmatmul.bf16.gmra.mxu0 %v704
        %v2484 = vpop.f32.mrf.mxu0
        %v2485 = vadd.f32 %v2436, %v2484
        %v2486 = vpop.f32.mrf.mxu0
        %v2487 = vadd.f32 %v2438, %v2486
        %2488 = vmatmul.bf16.gmra.mxu0 %v710
        %v2489 = vpop.f32.mrf.mxu0
        %v2490 = vadd.f32 %v2441, %v2489
        %v2491 = vpop.f32.mrf.mxu0
        %v2492 = vadd.f32 %v2443, %v2491
        %2493 = vmatmul.bf16.gmra.mxu0 %v716
        %v2494 = vpop.f32.mrf.mxu0
        %v2495 = vadd.f32 %v2446, %v2494
        %v2496 = vpop.f32.mrf.mxu0
        %v2497 = vadd.f32 %v2448, %v2496
        %2498 = vdwg.mxu0
        %2499 = vmatpush.bf16.msra.mxu0 %v1672
        %2500 = vmatpush.bf16.msra.mxu0 %v1666
        %2501 = vmatpush.bf16.msra.mxu0 %v1660
        %2502 = vmatpush.bf16.msra.mxu0 %v1654
        %2503 = vmatpush.bf16.msra.mxu0 %v1648
        %2504 = vmatpush.bf16.msra.mxu0 %v1642
        %2505 = vmatpush.bf16.msra.mxu0 %v1636
        %2506 = vmatpush.bf16.msra.mxu0 %v1630
        %2507 = vmatmul.bf16.gmra.mxu0 %v669
        %v2508 = vpop.f32.mrf.mxu0
        %v2509 = vadd.f32 %v514, %v2508
        %v2510 = vpop.f32.mrf.mxu0
        %v2511 = vadd.f32 %v514, %v2510
        %2512 = vmatmul.bf16.gmra.mxu0 %v675
        %v2513 = vpop.f32.mrf.mxu0
        %v2514 = vadd.f32 %v514, %v2513
        %v2515 = vpop.f32.mrf.mxu0
        %v2516 = vadd.f32 %v514, %v2515
        %2517 = vmatmul.bf16.gmra.mxu0 %v681
        %v2518 = vpop.f32.mrf.mxu0
        %v2519 = vadd.f32 %v514, %v2518
        %v2520 = vpop.f32.mrf.mxu0
        %v2521 = vadd.f32 %v514, %v2520
        %2522 = vmatmul.bf16.gmra.mxu0 %v687
        %v2523 = vpop.f32.mrf.mxu0
        %v2524 = vadd.f32 %v514, %v2523
        %v2525 = vpop.f32.mrf.mxu0
        %v2526 = vadd.f32 %v514, %v2525
        %2527 = vmatmul.bf16.gmra.mxu0 %v693
        %v2528 = vpop.f32.mrf.mxu0
        %v2529 = vadd.f32 %v514, %v2528
        %v2530 = vpop.f32.mrf.mxu0
        %v2531 = vadd.f32 %v514, %v2530
        %2532 = vmatmul.bf16.gmra.mxu0 %v699
        %v2533 = vpop.f32.mrf.mxu0
        %v2534 = vadd.f32 %v514, %v2533
        %v2535 = vpop.f32.mrf.mxu0
        %v2536 = vadd.f32 %v514, %v2535
        %2537 = vmatmul.bf16.gmra.mxu0 %v705
        %v2538 = vpop.f32.mrf.mxu0
        %v2539 = vadd.f32 %v514, %v2538
        %v2540 = vpop.f32.mrf.mxu0
        %v2541 = vadd.f32 %v514, %v2540
        %2542 = vmatmul.bf16.gmra.mxu0 %v711
        %v2543 = vpop.f32.mrf.mxu0
        %v2544 = vadd.f32 %v514, %v2543
        %v2545 = vpop.f32.mrf.mxu0
        %v2546 = vadd.f32 %v514, %v2545
        %2547 = vdwg.mxu0
        %2548 = vmatpush.bf16.msra.mxu0 %v1720
        %2549 = vmatpush.bf16.msra.mxu0 %v1714
        %2550 = vmatpush.bf16.msra.mxu0 %v1708
        %2551 = vmatpush.bf16.msra.mxu0 %v1702
        %2552 = vmatpush.bf16.msra.mxu0 %v1696
        %2553 = vmatpush.bf16.msra.mxu0 %v1690
        %2554 = vmatpush.bf16.msra.mxu0 %v1684
        %2555 = vmatpush.bf16.msra.mxu0 %v1678
        %2556 = vmatmul.bf16.gmra.mxu0 %v670
        %v2557 = vpop.f32.mrf.mxu0
        %v2558 = vadd.f32 %v2509, %v2557
        %v2559 = vpop.f32.mrf.mxu0
        %v2560 = vadd.f32 %v2511, %v2559
        %2561 = vmatmul.bf16.gmra.mxu0 %v676
        %v2562 = vpop.f32.mrf.mxu0
        %v2563 = vadd.f32 %v2514, %v2562
        %v2564 = vpop.f32.mrf.mxu0
        %v2565 = vadd.f32 %v2516, %v2564
        %2566 = vmatmul.bf16.gmra.mxu0 %v682
        %v2567 = vpop.f32.mrf.mxu0
        %v2568 = vadd.f32 %v2519, %v2567
        %v2569 = vpop.f32.mrf.mxu0
        %v2570 = vadd.f32 %v2521, %v2569
        %2571 = vmatmul.bf16.gmra.mxu0 %v688
        %v2572 = vpop.f32.mrf.mxu0
        %v2573 = vadd.f32 %v2524, %v2572
        %v2574 = vpop.f32.mrf.mxu0
        %v2575 = vadd.f32 %v2526, %v2574
        %2576 = vmatmul.bf16.gmra.mxu0 %v694
        %v2577 = vpop.f32.mrf.mxu0
        %v2578 = vadd.f32 %v2529, %v2577
        %v2579 = vpop.f32.mrf.mxu0
        %v2580 = vadd.f32 %v2531, %v2579
        %2581 = vmatmul.bf16.gmra.mxu0 %v700
        %v2582 = vpop.f32.mrf.mxu0
        %v2583 = vadd.f32 %v2534, %v2582
        %v2584 = vpop.f32.mrf.mxu0
        %v2585 = vadd.f32 %v2536, %v2584
        %2586 = vmatmul.bf16.gmra.mxu0 %v706
        %v2587 = vpop.f32.mrf.mxu0
        %v2588 = vadd.f32 %v2539, %v2587
        %v2589 = vpop.f32.mrf.mxu0
        %v2590 = vadd.f32 %v2541, %v2589
        %2591 = vmatmul.bf16.gmra.mxu0 %v712
        %v2592 = vpop.f32.mrf.mxu0
        %v2593 = vadd.f32 %v2544, %v2592
        %v2594 = vpop.f32.mrf.mxu0
        %v2595 = vadd.f32 %v2546, %v2594
        %2596 = vdwg.mxu0
        %2597 = vmatpush.bf16.msra.mxu0 %v1768
        %2598 = vmatpush.bf16.msra.mxu0 %v1762
        %2599 = vmatpush.bf16.msra.mxu0 %v1756
        %2600 = vmatpush.bf16.msra.mxu0 %v1750
        %2601 = vmatpush.bf16.msra.mxu0 %v1744
        %2602 = vmatpush.bf16.msra.mxu0 %v1738
        %2603 = vmatpush.bf16.msra.mxu0 %v1732
        %2604 = vmatpush.bf16.msra.mxu0 %v1726
        %2605 = vmatmul.bf16.gmra.mxu0 %v671
        %v2606 = vpop.f32.mrf.mxu0
        %v2607 = vadd.f32 %v2558, %v2606
        %v2608 = vpop.f32.mrf.mxu0
        %v2609 = vadd.f32 %v2560, %v2608
        %2610 = vmatmul.bf16.gmra.mxu0 %v677
        %v2611 = vpop.f32.mrf.mxu0
        %v2612 = vadd.f32 %v2563, %v2611
        %v2613 = vpop.f32.mrf.mxu0
        %v2614 = vadd.f32 %v2565, %v2613
        %2615 = vmatmul.bf16.gmra.mxu0 %v683
        %v2616 = vpop.f32.mrf.mxu0
        %v2617 = vadd.f32 %v2568, %v2616
        %v2618 = vpop.f32.mrf.mxu0
        %v2619 = vadd.f32 %v2570, %v2618
        %2620 = vmatmul.bf16.gmra.mxu0 %v689
        %v2621 = vpop.f32.mrf.mxu0
        %v2622 = vadd.f32 %v2573, %v2621
        %v2623 = vpop.f32.mrf.mxu0
        %v2624 = vadd.f32 %v2575, %v2623
        %2625 = vmatmul.bf16.gmra.mxu0 %v695
        %v2626 = vpop.f32.mrf.mxu0
        %v2627 = vadd.f32 %v2578, %v2626
        %v2628 = vpop.f32.mrf.mxu0
        %v2629 = vadd.f32 %v2580, %v2628
        %2630 = vmatmul.bf16.gmra.mxu0 %v701
        %v2631 = vpop.f32.mrf.mxu0
        %v2632 = vadd.f32 %v2583, %v2631
        %v2633 = vpop.f32.mrf.mxu0
        %v2634 = vadd.f32 %v2585, %v2633
        %2635 = vmatmul.bf16.gmra.mxu0 %v707
        %v2636 = vpop.f32.mrf.mxu0
        %v2637 = vadd.f32 %v2588, %v2636
        %v2638 = vpop.f32.mrf.mxu0
        %v2639 = vadd.f32 %v2590, %v2638
        %2640 = vmatmul.bf16.gmra.mxu0 %v713
        %v2641 = vpop.f32.mrf.mxu0
        %v2642 = vadd.f32 %v2593, %v2641
        %v2643 = vpop.f32.mrf.mxu0
        %v2644 = vadd.f32 %v2595, %v2643
        %2645 = vdwg.mxu0
        %2646 = vmatpush.bf16.msra.mxu0 %v1816
        %2647 = vmatpush.bf16.msra.mxu0 %v1810
        %2648 = vmatpush.bf16.msra.mxu0 %v1804
        %2649 = vmatpush.bf16.msra.mxu0 %v1798
        %2650 = vmatpush.bf16.msra.mxu0 %v1792
        %2651 = vmatpush.bf16.msra.mxu0 %v1786
        %2652 = vmatpush.bf16.msra.mxu0 %v1780
        %2653 = vmatpush.bf16.msra.mxu0 %v1774
        %2654 = vmatmul.bf16.gmra.mxu0 %v672
        %v2655 = vpop.f32.mrf.mxu0
        %v2656 = vadd.f32 %v2607, %v2655
        %v2657 = vpop.f32.mrf.mxu0
        %v2658 = vadd.f32 %v2609, %v2657
        %2659 = vmatmul.bf16.gmra.mxu0 %v678
        %v2660 = vpop.f32.mrf.mxu0
        %v2661 = vadd.f32 %v2612, %v2660
        %v2662 = vpop.f32.mrf.mxu0
        %v2663 = vadd.f32 %v2614, %v2662
        %2664 = vmatmul.bf16.gmra.mxu0 %v684
        %v2665 = vpop.f32.mrf.mxu0
        %v2666 = vadd.f32 %v2617, %v2665
        %v2667 = vpop.f32.mrf.mxu0
        %v2668 = vadd.f32 %v2619, %v2667
        %2669 = vmatmul.bf16.gmra.mxu0 %v690
        %v2670 = vpop.f32.mrf.mxu0
        %v2671 = vadd.f32 %v2622, %v2670
        %v2672 = vpop.f32.mrf.mxu0
        %v2673 = vadd.f32 %v2624, %v2672
        %2674 = vmatmul.bf16.gmra.mxu0 %v696
        %v2675 = vpop.f32.mrf.mxu0
        %v2676 = vadd.f32 %v2627, %v2675
        %v2677 = vpop.f32.mrf.mxu0
        %v2678 = vadd.f32 %v2629, %v2677
        %2679 = vmatmul.bf16.gmra.mxu0 %v702
        %v2680 = vpop.f32.mrf.mxu0
        %v2681 = vadd.f32 %v2632, %v2680
        %v2682 = vpop.f32.mrf.mxu0
        %v2683 = vadd.f32 %v2634, %v2682
        %2684 = vmatmul.bf16.gmra.mxu0 %v708
        %v2685 = vpop.f32.mrf.mxu0
        %v2686 = vadd.f32 %v2637, %v2685
        %v2687 = vpop.f32.mrf.mxu0
        %v2688 = vadd.f32 %v2639, %v2687
        %2689 = vmatmul.bf16.gmra.mxu0 %v714
        %v2690 = vpop.f32.mrf.mxu0
        %v2691 = vadd.f32 %v2642, %v2690
        %v2692 = vpop.f32.mrf.mxu0
        %v2693 = vadd.f32 %v2644, %v2692
        %2694 = vdwg.mxu0
        %2695 = vmatpush.bf16.msra.mxu0 %v1864
        %2696 = vmatpush.bf16.msra.mxu0 %v1858
        %2697 = vmatpush.bf16.msra.mxu0 %v1852
        %2698 = vmatpush.bf16.msra.mxu0 %v1846
        %2699 = vmatpush.bf16.msra.mxu0 %v1840
        %2700 = vmatpush.bf16.msra.mxu0 %v1834
        %2701 = vmatpush.bf16.msra.mxu0 %v1828
        %2702 = vmatpush.bf16.msra.mxu0 %v1822
        %2703 = vmatmul.bf16.gmra.mxu0 %v673
        %v2704 = vpop.f32.mrf.mxu0
        %v2705 = vadd.f32 %v2656, %v2704
        %v2706 = vpop.f32.mrf.mxu0
        %v2707 = vadd.f32 %v2658, %v2706
        %2708 = vmatmul.bf16.gmra.mxu0 %v679
        %v2709 = vpop.f32.mrf.mxu0
        %v2710 = vadd.f32 %v2661, %v2709
        %v2711 = vpop.f32.mrf.mxu0
        %v2712 = vadd.f32 %v2663, %v2711
        %2713 = vmatmul.bf16.gmra.mxu0 %v685
        %v2714 = vpop.f32.mrf.mxu0
        %v2715 = vadd.f32 %v2666, %v2714
        %v2716 = vpop.f32.mrf.mxu0
        %v2717 = vadd.f32 %v2668, %v2716
        %2718 = vmatmul.bf16.gmra.mxu0 %v691
        %v2719 = vpop.f32.mrf.mxu0
        %v2720 = vadd.f32 %v2671, %v2719
        %v2721 = vpop.f32.mrf.mxu0
        %v2722 = vadd.f32 %v2673, %v2721
        %2723 = vmatmul.bf16.gmra.mxu0 %v697
        %v2724 = vpop.f32.mrf.mxu0
        %v2725 = vadd.f32 %v2676, %v2724
        %v2726 = vpop.f32.mrf.mxu0
        %v2727 = vadd.f32 %v2678, %v2726
        %2728 = vmatmul.bf16.gmra.mxu0 %v703
        %v2729 = vpop.f32.mrf.mxu0
        %v2730 = vadd.f32 %v2681, %v2729
        %v2731 = vpop.f32.mrf.mxu0
        %v2732 = vadd.f32 %v2683, %v2731
        %2733 = vmatmul.bf16.gmra.mxu0 %v709
        %v2734 = vpop.f32.mrf.mxu0
        %v2735 = vadd.f32 %v2686, %v2734
        %v2736 = vpop.f32.mrf.mxu0
        %v2737 = vadd.f32 %v2688, %v2736
        %2738 = vmatmul.bf16.gmra.mxu0 %v715
        %v2739 = vpop.f32.mrf.mxu0
        %v2740 = vadd.f32 %v2691, %v2739
        %v2741 = vpop.f32.mrf.mxu0
        %v2742 = vadd.f32 %v2693, %v2741
        %2743 = vdwg.mxu0
        %2744 = vmatpush.bf16.msra.mxu0 %v1912
        %2745 = vmatpush.bf16.msra.mxu0 %v1906
        %2746 = vmatpush.bf16.msra.mxu0 %v1900
        %2747 = vmatpush.bf16.msra.mxu0 %v1894
        %2748 = vmatpush.bf16.msra.mxu0 %v1888
        %2749 = vmatpush.bf16.msra.mxu0 %v1882
        %2750 = vmatpush.bf16.msra.mxu0 %v1876
        %2751 = vmatpush.bf16.msra.mxu0 %v1870
        %2752 = vmatmul.bf16.gmra.mxu0 %v674
        %v2753 = vpop.f32.mrf.mxu0
        %v2754 = vadd.f32 %v2705, %v2753
        %v2755 = vpop.f32.mrf.mxu0
        %v2756 = vadd.f32 %v2707, %v2755
        %2757 = vmatmul.bf16.gmra.mxu0 %v680
        %v2758 = vpop.f32.mrf.mxu0
        %v2759 = vadd.f32 %v2710, %v2758
        %v2760 = vpop.f32.mrf.mxu0
        %v2761 = vadd.f32 %v2712, %v2760
        %2762 = vmatmul.bf16.gmra.mxu0 %v686
        %v2763 = vpop.f32.mrf.mxu0
        %v2764 = vadd.f32 %v2715, %v2763
        %v2765 = vpop.f32.mrf.mxu0
        %v2766 = vadd.f32 %v2717, %v2765
        %2767 = vmatmul.bf16.gmra.mxu0 %v692
        %v2768 = vpop.f32.mrf.mxu0
        %v2769 = vadd.f32 %v2720, %v2768
        %v2770 = vpop.f32.mrf.mxu0
        %v2771 = vadd.f32 %v2722, %v2770
        %2772 = vmatmul.bf16.gmra.mxu0 %v698
        %v2773 = vpop.f32.mrf.mxu0
        %v2774 = vadd.f32 %v2725, %v2773
        %v2775 = vpop.f32.mrf.mxu0
        %v2776 = vadd.f32 %v2727, %v2775
        %2777 = vmatmul.bf16.gmra.mxu0 %v704
        %v2778 = vpop.f32.mrf.mxu0
        %v2779 = vadd.f32 %v2730, %v2778
        %v2780 = vpop.f32.mrf.mxu0
        %v2781 = vadd.f32 %v2732, %v2780
        %2782 = vmatmul.bf16.gmra.mxu0 %v710
        %v2783 = vpop.f32.mrf.mxu0
        %v2784 = vadd.f32 %v2735, %v2783
        %v2785 = vpop.f32.mrf.mxu0
        %v2786 = vadd.f32 %v2737, %v2785
        %2787 = vmatmul.bf16.gmra.mxu0 %v716
        %v2788 = vpop.f32.mrf.mxu0
        %v2789 = vadd.f32 %v2740, %v2788
        %v2790 = vpop.f32.mrf.mxu0
        %v2791 = vadd.f32 %v2742, %v2790
        %2792 = vdwg.mxu0
        %2793 = vmatpush.bf16.msra.mxu0 %v1673
        %2794 = vmatpush.bf16.msra.mxu0 %v1667
        %2795 = vmatpush.bf16.msra.mxu0 %v1661
        %2796 = vmatpush.bf16.msra.mxu0 %v1655
        %2797 = vmatpush.bf16.msra.mxu0 %v1649
        %2798 = vmatpush.bf16.msra.mxu0 %v1643
        %2799 = vmatpush.bf16.msra.mxu0 %v1637
        %2800 = vmatpush.bf16.msra.mxu0 %v1631
        %2801 = vmatmul.bf16.gmra.mxu0 %v669
        %v2802 = vpop.f32.mrf.mxu0
        %v2803 = vadd.f32 %v515, %v2802
        %v2804 = vpop.f32.mrf.mxu0
        %v2805 = vadd.f32 %v515, %v2804
        %2806 = vmatmul.bf16.gmra.mxu0 %v675
        %v2807 = vpop.f32.mrf.mxu0
        %v2808 = vadd.f32 %v515, %v2807
        %v2809 = vpop.f32.mrf.mxu0
        %v2810 = vadd.f32 %v515, %v2809
        %2811 = vmatmul.bf16.gmra.mxu0 %v681
        %v2812 = vpop.f32.mrf.mxu0
        %v2813 = vadd.f32 %v515, %v2812
        %v2814 = vpop.f32.mrf.mxu0
        %v2815 = vadd.f32 %v515, %v2814
        %2816 = vmatmul.bf16.gmra.mxu0 %v687
        %v2817 = vpop.f32.mrf.mxu0
        %v2818 = vadd.f32 %v515, %v2817
        %v2819 = vpop.f32.mrf.mxu0
        %v2820 = vadd.f32 %v515, %v2819
        %2821 = vmatmul.bf16.gmra.mxu0 %v693
        %v2822 = vpop.f32.mrf.mxu0
        %v2823 = vadd.f32 %v515, %v2822
        %v2824 = vpop.f32.mrf.mxu0
        %v2825 = vadd.f32 %v515, %v2824
        %2826 = vmatmul.bf16.gmra.mxu0 %v699
        %v2827 = vpop.f32.mrf.mxu0
        %v2828 = vadd.f32 %v515, %v2827
        %v2829 = vpop.f32.mrf.mxu0
        %v2830 = vadd.f32 %v515, %v2829
        %2831 = vmatmul.bf16.gmra.mxu0 %v705
        %v2832 = vpop.f32.mrf.mxu0
        %v2833 = vadd.f32 %v515, %v2832
        %v2834 = vpop.f32.mrf.mxu0
        %v2835 = vadd.f32 %v515, %v2834
        %2836 = vmatmul.bf16.gmra.mxu0 %v711
        %v2837 = vpop.f32.mrf.mxu0
        %v2838 = vadd.f32 %v515, %v2837
        %v2839 = vpop.f32.mrf.mxu0
        %v2840 = vadd.f32 %v515, %v2839
        %2841 = vdwg.mxu0
        %2842 = vmatpush.bf16.msra.mxu0 %v1721
        %2843 = vmatpush.bf16.msra.mxu0 %v1715
        %2844 = vmatpush.bf16.msra.mxu0 %v1709
        %2845 = vmatpush.bf16.msra.mxu0 %v1703
        %2846 = vmatpush.bf16.msra.mxu0 %v1697
        %2847 = vmatpush.bf16.msra.mxu0 %v1691
        %2848 = vmatpush.bf16.msra.mxu0 %v1685
        %2849 = vmatpush.bf16.msra.mxu0 %v1679
        %2850 = vmatmul.bf16.gmra.mxu0 %v670
        %v2851 = vpop.f32.mrf.mxu0
        %v2852 = vadd.f32 %v2803, %v2851
        %v2853 = vpop.f32.mrf.mxu0
        %v2854 = vadd.f32 %v2805, %v2853
        %2855 = vmatmul.bf16.gmra.mxu0 %v676
        %v2856 = vpop.f32.mrf.mxu0
        %v2857 = vadd.f32 %v2808, %v2856
        %v2858 = vpop.f32.mrf.mxu0
        %v2859 = vadd.f32 %v2810, %v2858
        %2860 = vmatmul.bf16.gmra.mxu0 %v682
        %v2861 = vpop.f32.mrf.mxu0
        %v2862 = vadd.f32 %v2813, %v2861
        %v2863 = vpop.f32.mrf.mxu0
        %v2864 = vadd.f32 %v2815, %v2863
        %2865 = vmatmul.bf16.gmra.mxu0 %v688
        %v2866 = vpop.f32.mrf.mxu0
        %v2867 = vadd.f32 %v2818, %v2866
        %v2868 = vpop.f32.mrf.mxu0
        %v2869 = vadd.f32 %v2820, %v2868
        %2870 = vmatmul.bf16.gmra.mxu0 %v694
        %v2871 = vpop.f32.mrf.mxu0
        %v2872 = vadd.f32 %v2823, %v2871
        %v2873 = vpop.f32.mrf.mxu0
        %v2874 = vadd.f32 %v2825, %v2873
        %2875 = vmatmul.bf16.gmra.mxu0 %v700
        %v2876 = vpop.f32.mrf.mxu0
        %v2877 = vadd.f32 %v2828, %v2876
        %v2878 = vpop.f32.mrf.mxu0
        %v2879 = vadd.f32 %v2830, %v2878
        %2880 = vmatmul.bf16.gmra.mxu0 %v706
        %v2881 = vpop.f32.mrf.mxu0
        %v2882 = vadd.f32 %v2833, %v2881
        %v2883 = vpop.f32.mrf.mxu0
        %v2884 = vadd.f32 %v2835, %v2883
        %2885 = vmatmul.bf16.gmra.mxu0 %v712
        %v2886 = vpop.f32.mrf.mxu0
        %v2887 = vadd.f32 %v2838, %v2886
        %v2888 = vpop.f32.mrf.mxu0
        %v2889 = vadd.f32 %v2840, %v2888
        %2890 = vdwg.mxu0
        %2891 = vmatpush.bf16.msra.mxu0 %v1769
        %2892 = vmatpush.bf16.msra.mxu0 %v1763
        %2893 = vmatpush.bf16.msra.mxu0 %v1757
        %2894 = vmatpush.bf16.msra.mxu0 %v1751
        %2895 = vmatpush.bf16.msra.mxu0 %v1745
        %2896 = vmatpush.bf16.msra.mxu0 %v1739
        %2897 = vmatpush.bf16.msra.mxu0 %v1733
        %2898 = vmatpush.bf16.msra.mxu0 %v1727
        %2899 = vmatmul.bf16.gmra.mxu0 %v671
        %v2900 = vpop.f32.mrf.mxu0
        %v2901 = vadd.f32 %v2852, %v2900
        %v2902 = vpop.f32.mrf.mxu0
        %v2903 = vadd.f32 %v2854, %v2902
        %2904 = vmatmul.bf16.gmra.mxu0 %v677
        %v2905 = vpop.f32.mrf.mxu0
        %v2906 = vadd.f32 %v2857, %v2905
        %v2907 = vpop.f32.mrf.mxu0
        %v2908 = vadd.f32 %v2859, %v2907
        %2909 = vmatmul.bf16.gmra.mxu0 %v683
        %v2910 = vpop.f32.mrf.mxu0
        %v2911 = vadd.f32 %v2862, %v2910
        %v2912 = vpop.f32.mrf.mxu0
        %v2913 = vadd.f32 %v2864, %v2912
        %2914 = vmatmul.bf16.gmra.mxu0 %v689
        %v2915 = vpop.f32.mrf.mxu0
        %v2916 = vadd.f32 %v2867, %v2915
        %v2917 = vpop.f32.mrf.mxu0
        %v2918 = vadd.f32 %v2869, %v2917
        %2919 = vmatmul.bf16.gmra.mxu0 %v695
        %v2920 = vpop.f32.mrf.mxu0
        %v2921 = vadd.f32 %v2872, %v2920
        %v2922 = vpop.f32.mrf.mxu0
        %v2923 = vadd.f32 %v2874, %v2922
        %2924 = vmatmul.bf16.gmra.mxu0 %v701
        %v2925 = vpop.f32.mrf.mxu0
        %v2926 = vadd.f32 %v2877, %v2925
        %v2927 = vpop.f32.mrf.mxu0
        %v2928 = vadd.f32 %v2879, %v2927
        %2929 = vmatmul.bf16.gmra.mxu0 %v707
        %v2930 = vpop.f32.mrf.mxu0
        %v2931 = vadd.f32 %v2882, %v2930
        %v2932 = vpop.f32.mrf.mxu0
        %v2933 = vadd.f32 %v2884, %v2932
        %2934 = vmatmul.bf16.gmra.mxu0 %v713
        %v2935 = vpop.f32.mrf.mxu0
        %v2936 = vadd.f32 %v2887, %v2935
        %v2937 = vpop.f32.mrf.mxu0
        %v2938 = vadd.f32 %v2889, %v2937
        %2939 = vdwg.mxu0
        %2940 = vmatpush.bf16.msra.mxu0 %v1817
        %2941 = vmatpush.bf16.msra.mxu0 %v1811
        %2942 = vmatpush.bf16.msra.mxu0 %v1805
        %2943 = vmatpush.bf16.msra.mxu0 %v1799
        %2944 = vmatpush.bf16.msra.mxu0 %v1793
        %2945 = vmatpush.bf16.msra.mxu0 %v1787
        %2946 = vmatpush.bf16.msra.mxu0 %v1781
        %2947 = vmatpush.bf16.msra.mxu0 %v1775
        %2948 = vmatmul.bf16.gmra.mxu0 %v672
        %v2949 = vpop.f32.mrf.mxu0
        %v2950 = vadd.f32 %v2901, %v2949
        %v2951 = vpop.f32.mrf.mxu0
        %v2952 = vadd.f32 %v2903, %v2951
        %2953 = vmatmul.bf16.gmra.mxu0 %v678
        %v2954 = vpop.f32.mrf.mxu0
        %v2955 = vadd.f32 %v2906, %v2954
        %v2956 = vpop.f32.mrf.mxu0
        %v2957 = vadd.f32 %v2908, %v2956
        %2958 = vmatmul.bf16.gmra.mxu0 %v684
        %v2959 = vpop.f32.mrf.mxu0
        %v2960 = vadd.f32 %v2911, %v2959
        %v2961 = vpop.f32.mrf.mxu0
        %v2962 = vadd.f32 %v2913, %v2961
        %2963 = vmatmul.bf16.gmra.mxu0 %v690
        %v2964 = vpop.f32.mrf.mxu0
        %v2965 = vadd.f32 %v2916, %v2964
        %v2966 = vpop.f32.mrf.mxu0
        %v2967 = vadd.f32 %v2918, %v2966
        %2968 = vmatmul.bf16.gmra.mxu0 %v696
        %v2969 = vpop.f32.mrf.mxu0
        %v2970 = vadd.f32 %v2921, %v2969
        %v2971 = vpop.f32.mrf.mxu0
        %v2972 = vadd.f32 %v2923, %v2971
        %2973 = vmatmul.bf16.gmra.mxu0 %v702
        %v2974 = vpop.f32.mrf.mxu0
        %v2975 = vadd.f32 %v2926, %v2974
        %v2976 = vpop.f32.mrf.mxu0
        %v2977 = vadd.f32 %v2928, %v2976
        %2978 = vmatmul.bf16.gmra.mxu0 %v708
        %v2979 = vpop.f32.mrf.mxu0
        %v2980 = vadd.f32 %v2931, %v2979
        %v2981 = vpop.f32.mrf.mxu0
        %v2982 = vadd.f32 %v2933, %v2981
        %2983 = vmatmul.bf16.gmra.mxu0 %v714
        %v2984 = vpop.f32.mrf.mxu0
        %v2985 = vadd.f32 %v2936, %v2984
        %v2986 = vpop.f32.mrf.mxu0
        %v2987 = vadd.f32 %v2938, %v2986
        %2988 = vdwg.mxu0
        %2989 = vmatpush.bf16.msra.mxu0 %v1865
        %2990 = vmatpush.bf16.msra.mxu0 %v1859
        %2991 = vmatpush.bf16.msra.mxu0 %v1853
        %2992 = vmatpush.bf16.msra.mxu0 %v1847
        %2993 = vmatpush.bf16.msra.mxu0 %v1841
        %2994 = vmatpush.bf16.msra.mxu0 %v1835
        %2995 = vmatpush.bf16.msra.mxu0 %v1829
        %2996 = vmatpush.bf16.msra.mxu0 %v1823
        %2997 = vmatmul.bf16.gmra.mxu0 %v673
        %v2998 = vpop.f32.mrf.mxu0
        %v2999 = vadd.f32 %v2950, %v2998
        %v3000 = vpop.f32.mrf.mxu0
        %v3001 = vadd.f32 %v2952, %v3000
        %3002 = vmatmul.bf16.gmra.mxu0 %v679
        %v3003 = vpop.f32.mrf.mxu0
        %v3004 = vadd.f32 %v2955, %v3003
        %v3005 = vpop.f32.mrf.mxu0
        %v3006 = vadd.f32 %v2957, %v3005
        %3007 = vmatmul.bf16.gmra.mxu0 %v685
        %v3008 = vpop.f32.mrf.mxu0
        %v3009 = vadd.f32 %v2960, %v3008
        %v3010 = vpop.f32.mrf.mxu0
        %v3011 = vadd.f32 %v2962, %v3010
        %3012 = vmatmul.bf16.gmra.mxu0 %v691
        %v3013 = vpop.f32.mrf.mxu0
        %v3014 = vadd.f32 %v2965, %v3013
        %v3015 = vpop.f32.mrf.mxu0
        %v3016 = vadd.f32 %v2967, %v3015
        %3017 = vmatmul.bf16.gmra.mxu0 %v697
        %v3018 = vpop.f32.mrf.mxu0
        %v3019 = vadd.f32 %v2970, %v3018
        %v3020 = vpop.f32.mrf.mxu0
        %v3021 = vadd.f32 %v2972, %v3020
        %3022 = vmatmul.bf16.gmra.mxu0 %v703
        %v3023 = vpop.f32.mrf.mxu0
        %v3024 = vadd.f32 %v2975, %v3023
        %v3025 = vpop.f32.mrf.mxu0
        %v3026 = vadd.f32 %v2977, %v3025
        %3027 = vmatmul.bf16.gmra.mxu0 %v709
        %v3028 = vpop.f32.mrf.mxu0
        %v3029 = vadd.f32 %v2980, %v3028
        %v3030 = vpop.f32.mrf.mxu0
        %v3031 = vadd.f32 %v2982, %v3030
        %3032 = vmatmul.bf16.gmra.mxu0 %v715
        %v3033 = vpop.f32.mrf.mxu0
        %v3034 = vadd.f32 %v2985, %v3033
        %v3035 = vpop.f32.mrf.mxu0
        %v3036 = vadd.f32 %v2987, %v3035
        %3037 = vdwg.mxu0
        %3038 = vmatpush.bf16.msra.mxu0 %v1913
        %3039 = vmatpush.bf16.msra.mxu0 %v1907
        %3040 = vmatpush.bf16.msra.mxu0 %v1901
        %3041 = vmatpush.bf16.msra.mxu0 %v1895
        %3042 = vmatpush.bf16.msra.mxu0 %v1889
        %3043 = vmatpush.bf16.msra.mxu0 %v1883
        %3044 = vmatpush.bf16.msra.mxu0 %v1877
        %3045 = vmatpush.bf16.msra.mxu0 %v1871
        %3046 = vmatmul.bf16.gmra.mxu0 %v674
        %v3047 = vpop.f32.mrf.mxu0
        %v3048 = vadd.f32 %v2999, %v3047
        %v3049 = vpop.f32.mrf.mxu0
        %v3050 = vadd.f32 %v3001, %v3049
        %3051 = vmatmul.bf16.gmra.mxu0 %v680
        %v3052 = vpop.f32.mrf.mxu0
        %v3053 = vadd.f32 %v3004, %v3052
        %v3054 = vpop.f32.mrf.mxu0
        %v3055 = vadd.f32 %v3006, %v3054
        %3056 = vmatmul.bf16.gmra.mxu0 %v686
        %v3057 = vpop.f32.mrf.mxu0
        %v3058 = vadd.f32 %v3009, %v3057
        %v3059 = vpop.f32.mrf.mxu0
        %v3060 = vadd.f32 %v3011, %v3059
        %3061 = vmatmul.bf16.gmra.mxu0 %v692
        %v3062 = vpop.f32.mrf.mxu0
        %v3063 = vadd.f32 %v3014, %v3062
        %v3064 = vpop.f32.mrf.mxu0
        %v3065 = vadd.f32 %v3016, %v3064
        %3066 = vmatmul.bf16.gmra.mxu0 %v698
        %v3067 = vpop.f32.mrf.mxu0
        %v3068 = vadd.f32 %v3019, %v3067
        %v3069 = vpop.f32.mrf.mxu0
        %v3070 = vadd.f32 %v3021, %v3069
        %3071 = vmatmul.bf16.gmra.mxu0 %v704
        %v3072 = vpop.f32.mrf.mxu0
        %v3073 = vadd.f32 %v3024, %v3072
        %v3074 = vpop.f32.mrf.mxu0
        %v3075 = vadd.f32 %v3026, %v3074
        %3076 = vmatmul.bf16.gmra.mxu0 %v710
        %v3077 = vpop.f32.mrf.mxu0
        %v3078 = vadd.f32 %v3029, %v3077
        %v3079 = vpop.f32.mrf.mxu0
        %v3080 = vadd.f32 %v3031, %v3079
        %3081 = vmatmul.bf16.gmra.mxu0 %v716
        %v3082 = vpop.f32.mrf.mxu0
        %v3083 = vadd.f32 %v3034, %v3082
        %v3084 = vpop.f32.mrf.mxu0
        %v3085 = vadd.f32 %v3036, %v3084
        %3086 = vdwg.mxu0
        %3087 = vmatpush.bf16.msra.mxu0 %v1674
        %3088 = vmatpush.bf16.msra.mxu0 %v1668
        %3089 = vmatpush.bf16.msra.mxu0 %v1662
        %3090 = vmatpush.bf16.msra.mxu0 %v1656
        %3091 = vmatpush.bf16.msra.mxu0 %v1650
        %3092 = vmatpush.bf16.msra.mxu0 %v1644
        %3093 = vmatpush.bf16.msra.mxu0 %v1638
        %3094 = vmatpush.bf16.msra.mxu0 %v1632
        %3095 = vmatmul.bf16.gmra.mxu0 %v669
        %v3096 = vpop.f32.mrf.mxu0
        %v3097 = vadd.f32 %v516, %v3096
        %v3098 = vpop.f32.mrf.mxu0
        %v3099 = vadd.f32 %v516, %v3098
        %3100 = vmatmul.bf16.gmra.mxu0 %v675
        %v3101 = vpop.f32.mrf.mxu0
        %v3102 = vadd.f32 %v516, %v3101
        %v3103 = vpop.f32.mrf.mxu0
        %v3104 = vadd.f32 %v516, %v3103
        %3105 = vmatmul.bf16.gmra.mxu0 %v681
        %v3106 = vpop.f32.mrf.mxu0
        %v3107 = vadd.f32 %v516, %v3106
        %v3108 = vpop.f32.mrf.mxu0
        %v3109 = vadd.f32 %v516, %v3108
        %3110 = vmatmul.bf16.gmra.mxu0 %v687
        %v3111 = vpop.f32.mrf.mxu0
        %v3112 = vadd.f32 %v516, %v3111
        %v3113 = vpop.f32.mrf.mxu0
        %v3114 = vadd.f32 %v516, %v3113
        %3115 = vmatmul.bf16.gmra.mxu0 %v693
        %v3116 = vpop.f32.mrf.mxu0
        %v3117 = vadd.f32 %v516, %v3116
        %v3118 = vpop.f32.mrf.mxu0
        %v3119 = vadd.f32 %v516, %v3118
        %3120 = vmatmul.bf16.gmra.mxu0 %v699
        %v3121 = vpop.f32.mrf.mxu0
        %v3122 = vadd.f32 %v516, %v3121
        %v3123 = vpop.f32.mrf.mxu0
        %v3124 = vadd.f32 %v516, %v3123
        %3125 = vmatmul.bf16.gmra.mxu0 %v705
        %v3126 = vpop.f32.mrf.mxu0
        %v3127 = vadd.f32 %v516, %v3126
        %v3128 = vpop.f32.mrf.mxu0
        %v3129 = vadd.f32 %v516, %v3128
        %3130 = vmatmul.bf16.gmra.mxu0 %v711
        %v3131 = vpop.f32.mrf.mxu0
        %v3132 = vadd.f32 %v516, %v3131
        %v3133 = vpop.f32.mrf.mxu0
        %v3134 = vadd.f32 %v516, %v3133
        %3135 = vdwg.mxu0
        %3136 = vmatpush.bf16.msra.mxu0 %v1722
        %3137 = vmatpush.bf16.msra.mxu0 %v1716
        %3138 = vmatpush.bf16.msra.mxu0 %v1710
        %3139 = vmatpush.bf16.msra.mxu0 %v1704
        %3140 = vmatpush.bf16.msra.mxu0 %v1698
        %3141 = vmatpush.bf16.msra.mxu0 %v1692
        %3142 = vmatpush.bf16.msra.mxu0 %v1686
        %3143 = vmatpush.bf16.msra.mxu0 %v1680
        %3144 = vmatmul.bf16.gmra.mxu0 %v670
        %v3145 = vpop.f32.mrf.mxu0
        %v3146 = vadd.f32 %v3097, %v3145
        %v3147 = vpop.f32.mrf.mxu0
        %v3148 = vadd.f32 %v3099, %v3147
        %3149 = vmatmul.bf16.gmra.mxu0 %v676
        %v3150 = vpop.f32.mrf.mxu0
        %v3151 = vadd.f32 %v3102, %v3150
        %v3152 = vpop.f32.mrf.mxu0
        %v3153 = vadd.f32 %v3104, %v3152
        %3154 = vmatmul.bf16.gmra.mxu0 %v682
        %v3155 = vpop.f32.mrf.mxu0
        %v3156 = vadd.f32 %v3107, %v3155
        %v3157 = vpop.f32.mrf.mxu0
        %v3158 = vadd.f32 %v3109, %v3157
        %3159 = vmatmul.bf16.gmra.mxu0 %v688
        %v3160 = vpop.f32.mrf.mxu0
        %v3161 = vadd.f32 %v3112, %v3160
        %v3162 = vpop.f32.mrf.mxu0
        %v3163 = vadd.f32 %v3114, %v3162
        %3164 = vmatmul.bf16.gmra.mxu0 %v694
        %v3165 = vpop.f32.mrf.mxu0
        %v3166 = vadd.f32 %v3117, %v3165
        %v3167 = vpop.f32.mrf.mxu0
        %v3168 = vadd.f32 %v3119, %v3167
        %3169 = vmatmul.bf16.gmra.mxu0 %v700
        %v3170 = vpop.f32.mrf.mxu0
        %v3171 = vadd.f32 %v3122, %v3170
        %v3172 = vpop.f32.mrf.mxu0
        %v3173 = vadd.f32 %v3124, %v3172
        %3174 = vmatmul.bf16.gmra.mxu0 %v706
        %v3175 = vpop.f32.mrf.mxu0
        %v3176 = vadd.f32 %v3127, %v3175
        %v3177 = vpop.f32.mrf.mxu0
        %v3178 = vadd.f32 %v3129, %v3177
        %3179 = vmatmul.bf16.gmra.mxu0 %v712
        %v3180 = vpop.f32.mrf.mxu0
        %v3181 = vadd.f32 %v3132, %v3180
        %v3182 = vpop.f32.mrf.mxu0
        %v3183 = vadd.f32 %v3134, %v3182
        %3184 = vdwg.mxu0
        %3185 = vmatpush.bf16.msra.mxu0 %v1770
        %3186 = vmatpush.bf16.msra.mxu0 %v1764
        %3187 = vmatpush.bf16.msra.mxu0 %v1758
        %3188 = vmatpush.bf16.msra.mxu0 %v1752
        %3189 = vmatpush.bf16.msra.mxu0 %v1746
        %3190 = vmatpush.bf16.msra.mxu0 %v1740
        %3191 = vmatpush.bf16.msra.mxu0 %v1734
        %3192 = vmatpush.bf16.msra.mxu0 %v1728
        %3193 = vmatmul.bf16.gmra.mxu0 %v671
        %v3194 = vpop.f32.mrf.mxu0
        %v3195 = vadd.f32 %v3146, %v3194
        %v3196 = vpop.f32.mrf.mxu0
        %v3197 = vadd.f32 %v3148, %v3196
        %3198 = vmatmul.bf16.gmra.mxu0 %v677
        %v3199 = vpop.f32.mrf.mxu0
        %v3200 = vadd.f32 %v3151, %v3199
        %v3201 = vpop.f32.mrf.mxu0
        %v3202 = vadd.f32 %v3153, %v3201
        %3203 = vmatmul.bf16.gmra.mxu0 %v683
        %v3204 = vpop.f32.mrf.mxu0
        %v3205 = vadd.f32 %v3156, %v3204
        %v3206 = vpop.f32.mrf.mxu0
        %v3207 = vadd.f32 %v3158, %v3206
        %3208 = vmatmul.bf16.gmra.mxu0 %v689
        %v3209 = vpop.f32.mrf.mxu0
        %v3210 = vadd.f32 %v3161, %v3209
        %v3211 = vpop.f32.mrf.mxu0
        %v3212 = vadd.f32 %v3163, %v3211
        %3213 = vmatmul.bf16.gmra.mxu0 %v695
        %v3214 = vpop.f32.mrf.mxu0
        %v3215 = vadd.f32 %v3166, %v3214
        %v3216 = vpop.f32.mrf.mxu0
        %v3217 = vadd.f32 %v3168, %v3216
        %3218 = vmatmul.bf16.gmra.mxu0 %v701
        %v3219 = vpop.f32.mrf.mxu0
        %v3220 = vadd.f32 %v3171, %v3219
        %v3221 = vpop.f32.mrf.mxu0
        %v3222 = vadd.f32 %v3173, %v3221
        %3223 = vmatmul.bf16.gmra.mxu0 %v707
        %v3224 = vpop.f32.mrf.mxu0
        %v3225 = vadd.f32 %v3176, %v3224
        %v3226 = vpop.f32.mrf.mxu0
        %v3227 = vadd.f32 %v3178, %v3226
        %3228 = vmatmul.bf16.gmra.mxu0 %v713
        %v3229 = vpop.f32.mrf.mxu0
        %v3230 = vadd.f32 %v3181, %v3229
        %v3231 = vpop.f32.mrf.mxu0
        %v3232 = vadd.f32 %v3183, %v3231
        %3233 = vdwg.mxu0
        %3234 = vmatpush.bf16.msra.mxu0 %v1818
        %3235 = vmatpush.bf16.msra.mxu0 %v1812
        %3236 = vmatpush.bf16.msra.mxu0 %v1806
        %3237 = vmatpush.bf16.msra.mxu0 %v1800
        %3238 = vmatpush.bf16.msra.mxu0 %v1794
        %3239 = vmatpush.bf16.msra.mxu0 %v1788
        %3240 = vmatpush.bf16.msra.mxu0 %v1782
        %3241 = vmatpush.bf16.msra.mxu0 %v1776
        %3242 = vmatmul.bf16.gmra.mxu0 %v672
        %v3243 = vpop.f32.mrf.mxu0
        %v3244 = vadd.f32 %v3195, %v3243
        %v3245 = vpop.f32.mrf.mxu0
        %v3246 = vadd.f32 %v3197, %v3245
        %3247 = vmatmul.bf16.gmra.mxu0 %v678
        %v3248 = vpop.f32.mrf.mxu0
        %v3249 = vadd.f32 %v3200, %v3248
        %v3250 = vpop.f32.mrf.mxu0
        %v3251 = vadd.f32 %v3202, %v3250
        %3252 = vmatmul.bf16.gmra.mxu0 %v684
        %v3253 = vpop.f32.mrf.mxu0
        %v3254 = vadd.f32 %v3205, %v3253
        %v3255 = vpop.f32.mrf.mxu0
        %v3256 = vadd.f32 %v3207, %v3255
        %3257 = vmatmul.bf16.gmra.mxu0 %v690
        %v3258 = vpop.f32.mrf.mxu0
        %v3259 = vadd.f32 %v3210, %v3258
        %v3260 = vpop.f32.mrf.mxu0
        %v3261 = vadd.f32 %v3212, %v3260
        %3262 = vmatmul.bf16.gmra.mxu0 %v696
        %v3263 = vpop.f32.mrf.mxu0
        %v3264 = vadd.f32 %v3215, %v3263
        %v3265 = vpop.f32.mrf.mxu0
        %v3266 = vadd.f32 %v3217, %v3265
        %3267 = vmatmul.bf16.gmra.mxu0 %v702
        %v3268 = vpop.f32.mrf.mxu0
        %v3269 = vadd.f32 %v3220, %v3268
        %v3270 = vpop.f32.mrf.mxu0
        %v3271 = vadd.f32 %v3222, %v3270
        %3272 = vmatmul.bf16.gmra.mxu0 %v708
        %v3273 = vpop.f32.mrf.mxu0
        %v3274 = vadd.f32 %v3225, %v3273
        %v3275 = vpop.f32.mrf.mxu0
        %v3276 = vadd.f32 %v3227, %v3275
        %3277 = vmatmul.bf16.gmra.mxu0 %v714
        %v3278 = vpop.f32.mrf.mxu0
        %v3279 = vadd.f32 %v3230, %v3278
        %v3280 = vpop.f32.mrf.mxu0
        %v3281 = vadd.f32 %v3232, %v3280
        %3282 = vdwg.mxu0
        %3283 = vmatpush.bf16.msra.mxu0 %v1866
        %3284 = vmatpush.bf16.msra.mxu0 %v1860
        %3285 = vmatpush.bf16.msra.mxu0 %v1854
        %3286 = vmatpush.bf16.msra.mxu0 %v1848
        %3287 = vmatpush.bf16.msra.mxu0 %v1842
        %3288 = vmatpush.bf16.msra.mxu0 %v1836
        %3289 = vmatpush.bf16.msra.mxu0 %v1830
        %3290 = vmatpush.bf16.msra.mxu0 %v1824
        %3291 = vmatmul.bf16.gmra.mxu0 %v673
        %v3292 = vpop.f32.mrf.mxu0
        %v3293 = vadd.f32 %v3244, %v3292
        %v3294 = vpop.f32.mrf.mxu0
        %v3295 = vadd.f32 %v3246, %v3294
        %3296 = vmatmul.bf16.gmra.mxu0 %v679
        %v3297 = vpop.f32.mrf.mxu0
        %v3298 = vadd.f32 %v3249, %v3297
        %v3299 = vpop.f32.mrf.mxu0
        %v3300 = vadd.f32 %v3251, %v3299
        %3301 = vmatmul.bf16.gmra.mxu0 %v685
        %v3302 = vpop.f32.mrf.mxu0
        %v3303 = vadd.f32 %v3254, %v3302
        %v3304 = vpop.f32.mrf.mxu0
        %v3305 = vadd.f32 %v3256, %v3304
        %3306 = vmatmul.bf16.gmra.mxu0 %v691
        %v3307 = vpop.f32.mrf.mxu0
        %v3308 = vadd.f32 %v3259, %v3307
        %v3309 = vpop.f32.mrf.mxu0
        %v3310 = vadd.f32 %v3261, %v3309
        %3311 = vmatmul.bf16.gmra.mxu0 %v697
        %v3312 = vpop.f32.mrf.mxu0
        %v3313 = vadd.f32 %v3264, %v3312
        %v3314 = vpop.f32.mrf.mxu0
        %v3315 = vadd.f32 %v3266, %v3314
        %3316 = vmatmul.bf16.gmra.mxu0 %v703
        %v3317 = vpop.f32.mrf.mxu0
        %v3318 = vadd.f32 %v3269, %v3317
        %v3319 = vpop.f32.mrf.mxu0
        %v3320 = vadd.f32 %v3271, %v3319
        %3321 = vmatmul.bf16.gmra.mxu0 %v709
        %v3322 = vpop.f32.mrf.mxu0
        %v3323 = vadd.f32 %v3274, %v3322
        %v3324 = vpop.f32.mrf.mxu0
        %v3325 = vadd.f32 %v3276, %v3324
        %3326 = vmatmul.bf16.gmra.mxu0 %v715
        %v3327 = vpop.f32.mrf.mxu0
        %v3328 = vadd.f32 %v3279, %v3327
        %v3329 = vpop.f32.mrf.mxu0
        %v3330 = vadd.f32 %v3281, %v3329
        %3331 = vdwg.mxu0
        %3332 = vmatpush.bf16.msra.mxu0 %v1914
        %3333 = vmatpush.bf16.msra.mxu0 %v1908
        %3334 = vmatpush.bf16.msra.mxu0 %v1902
        %3335 = vmatpush.bf16.msra.mxu0 %v1896
        %3336 = vmatpush.bf16.msra.mxu0 %v1890
        %3337 = vmatpush.bf16.msra.mxu0 %v1884
        %3338 = vmatpush.bf16.msra.mxu0 %v1878
        %3339 = vmatpush.bf16.msra.mxu0 %v1872
        %3340 = vmatmul.bf16.gmra.mxu0 %v674
        %v3341 = vpop.f32.mrf.mxu0
        %v3342 = vadd.f32 %v3293, %v3341
        %v3343 = vpop.f32.mrf.mxu0
        %v3344 = vadd.f32 %v3295, %v3343
        %3345 = vmatmul.bf16.gmra.mxu0 %v680
        %v3346 = vpop.f32.mrf.mxu0
        %v3347 = vadd.f32 %v3298, %v3346
        %v3348 = vpop.f32.mrf.mxu0
        %v3349 = vadd.f32 %v3300, %v3348
        %3350 = vmatmul.bf16.gmra.mxu0 %v686
        %v3351 = vpop.f32.mrf.mxu0
        %v3352 = vadd.f32 %v3303, %v3351
        %v3353 = vpop.f32.mrf.mxu0
        %v3354 = vadd.f32 %v3305, %v3353
        %3355 = vmatmul.bf16.gmra.mxu0 %v692
        %v3356 = vpop.f32.mrf.mxu0
        %v3357 = vadd.f32 %v3308, %v3356
        %v3358 = vpop.f32.mrf.mxu0
        %v3359 = vadd.f32 %v3310, %v3358
        %3360 = vmatmul.bf16.gmra.mxu0 %v698
        %v3361 = vpop.f32.mrf.mxu0
        %v3362 = vadd.f32 %v3313, %v3361
        %v3363 = vpop.f32.mrf.mxu0
        %v3364 = vadd.f32 %v3315, %v3363
        %3365 = vmatmul.bf16.gmra.mxu0 %v704
        %v3366 = vpop.f32.mrf.mxu0
        %v3367 = vadd.f32 %v3318, %v3366
        %v3368 = vpop.f32.mrf.mxu0
        %v3369 = vadd.f32 %v3320, %v3368
        %3370 = vmatmul.bf16.gmra.mxu0 %v710
        %v3371 = vpop.f32.mrf.mxu0
        %v3372 = vadd.f32 %v3323, %v3371
        %v3373 = vpop.f32.mrf.mxu0
        %v3374 = vadd.f32 %v3325, %v3373
        %3375 = vmatmul.bf16.gmra.mxu0 %v716
        %v3376 = vpop.f32.mrf.mxu0
        %v3377 = vadd.f32 %v3328, %v3376
        %v3378 = vpop.f32.mrf.mxu0
        %v3379 = vadd.f32 %v3330, %v3378
        %3380 = vdwg.mxu0
        %3381 = vmatpush.bf16.msra.mxu0 %v1675
        %3382 = vmatpush.bf16.msra.mxu0 %v1669
        %3383 = vmatpush.bf16.msra.mxu0 %v1663
        %3384 = vmatpush.bf16.msra.mxu0 %v1657
        %3385 = vmatpush.bf16.msra.mxu0 %v1651
        %3386 = vmatpush.bf16.msra.mxu0 %v1645
        %3387 = vmatpush.bf16.msra.mxu0 %v1639
        %3388 = vmatpush.bf16.msra.mxu0 %v1633
        %3389 = vmatmul.bf16.gmra.mxu0 %v669
        %v3390 = vpop.f32.mrf.mxu0
        %v3391 = vadd.f32 %v517, %v3390
        %v3392 = vpop.f32.mrf.mxu0
        %v3393 = vadd.f32 %v517, %v3392
        %3394 = vmatmul.bf16.gmra.mxu0 %v675
        %v3395 = vpop.f32.mrf.mxu0
        %v3396 = vadd.f32 %v517, %v3395
        %v3397 = vpop.f32.mrf.mxu0
        %v3398 = vadd.f32 %v517, %v3397
        %3399 = vmatmul.bf16.gmra.mxu0 %v681
        %v3400 = vpop.f32.mrf.mxu0
        %v3401 = vadd.f32 %v517, %v3400
        %v3402 = vpop.f32.mrf.mxu0
        %v3403 = vadd.f32 %v517, %v3402
        %3404 = vmatmul.bf16.gmra.mxu0 %v687
        %v3405 = vpop.f32.mrf.mxu0
        %v3406 = vadd.f32 %v517, %v3405
        %v3407 = vpop.f32.mrf.mxu0
        %v3408 = vadd.f32 %v517, %v3407
        %3409 = vmatmul.bf16.gmra.mxu0 %v693
        %v3410 = vpop.f32.mrf.mxu0
        %v3411 = vadd.f32 %v517, %v3410
        %v3412 = vpop.f32.mrf.mxu0
        %v3413 = vadd.f32 %v517, %v3412
        %3414 = vmatmul.bf16.gmra.mxu0 %v699
        %v3415 = vpop.f32.mrf.mxu0
        %v3416 = vadd.f32 %v517, %v3415
        %v3417 = vpop.f32.mrf.mxu0
        %v3418 = vadd.f32 %v517, %v3417
        %3419 = vmatmul.bf16.gmra.mxu0 %v705
        %v3420 = vpop.f32.mrf.mxu0
        %v3421 = vadd.f32 %v517, %v3420
        %v3422 = vpop.f32.mrf.mxu0
        %v3423 = vadd.f32 %v517, %v3422
        %3424 = vmatmul.bf16.gmra.mxu0 %v711
        %v3425 = vpop.f32.mrf.mxu0
        %v3426 = vadd.f32 %v517, %v3425
        %v3427 = vpop.f32.mrf.mxu0
        %v3428 = vadd.f32 %v517, %v3427
        %3429 = vdwg.mxu0
        %3430 = vmatpush.bf16.msra.mxu0 %v1723
        %3431 = vmatpush.bf16.msra.mxu0 %v1717
        %3432 = vmatpush.bf16.msra.mxu0 %v1711
        %3433 = vmatpush.bf16.msra.mxu0 %v1705
        %3434 = vmatpush.bf16.msra.mxu0 %v1699
        %3435 = vmatpush.bf16.msra.mxu0 %v1693
        %3436 = vmatpush.bf16.msra.mxu0 %v1687
        %3437 = vmatpush.bf16.msra.mxu0 %v1681
        %3438 = vmatmul.bf16.gmra.mxu0 %v670
        %v3439 = vpop.f32.mrf.mxu0
        %v3440 = vadd.f32 %v3391, %v3439
        %v3441 = vpop.f32.mrf.mxu0
        %v3442 = vadd.f32 %v3393, %v3441
        %3443 = vmatmul.bf16.gmra.mxu0 %v676
        %v3444 = vpop.f32.mrf.mxu0
        %v3445 = vadd.f32 %v3396, %v3444
        %v3446 = vpop.f32.mrf.mxu0
        %v3447 = vadd.f32 %v3398, %v3446
        %3448 = vmatmul.bf16.gmra.mxu0 %v682
        %v3449 = vpop.f32.mrf.mxu0
        %v3450 = vadd.f32 %v3401, %v3449
        %v3451 = vpop.f32.mrf.mxu0
        %v3452 = vadd.f32 %v3403, %v3451
        %3453 = vmatmul.bf16.gmra.mxu0 %v688
        %v3454 = vpop.f32.mrf.mxu0
        %v3455 = vadd.f32 %v3406, %v3454
        %v3456 = vpop.f32.mrf.mxu0
        %v3457 = vadd.f32 %v3408, %v3456
        %3458 = vmatmul.bf16.gmra.mxu0 %v694
        %v3459 = vpop.f32.mrf.mxu0
        %v3460 = vadd.f32 %v3411, %v3459
        %v3461 = vpop.f32.mrf.mxu0
        %v3462 = vadd.f32 %v3413, %v3461
        %3463 = vmatmul.bf16.gmra.mxu0 %v700
        %v3464 = vpop.f32.mrf.mxu0
        %v3465 = vadd.f32 %v3416, %v3464
        %v3466 = vpop.f32.mrf.mxu0
        %v3467 = vadd.f32 %v3418, %v3466
        %3468 = vmatmul.bf16.gmra.mxu0 %v706
        %v3469 = vpop.f32.mrf.mxu0
        %v3470 = vadd.f32 %v3421, %v3469
        %v3471 = vpop.f32.mrf.mxu0
        %v3472 = vadd.f32 %v3423, %v3471
        %3473 = vmatmul.bf16.gmra.mxu0 %v712
        %v3474 = vpop.f32.mrf.mxu0
        %v3475 = vadd.f32 %v3426, %v3474
        %v3476 = vpop.f32.mrf.mxu0
        %v3477 = vadd.f32 %v3428, %v3476
        %3478 = vdwg.mxu0
        %3479 = vmatpush.bf16.msra.mxu0 %v1771
        %3480 = vmatpush.bf16.msra.mxu0 %v1765
        %3481 = vmatpush.bf16.msra.mxu0 %v1759
        %3482 = vmatpush.bf16.msra.mxu0 %v1753
        %3483 = vmatpush.bf16.msra.mxu0 %v1747
        %3484 = vmatpush.bf16.msra.mxu0 %v1741
        %3485 = vmatpush.bf16.msra.mxu0 %v1735
        %3486 = vmatpush.bf16.msra.mxu0 %v1729
        %3487 = vmatmul.bf16.gmra.mxu0 %v671
        %v3488 = vpop.f32.mrf.mxu0
        %v3489 = vadd.f32 %v3440, %v3488
        %v3490 = vpop.f32.mrf.mxu0
        %v3491 = vadd.f32 %v3442, %v3490
        %3492 = vmatmul.bf16.gmra.mxu0 %v677
        %v3493 = vpop.f32.mrf.mxu0
        %v3494 = vadd.f32 %v3445, %v3493
        %v3495 = vpop.f32.mrf.mxu0
        %v3496 = vadd.f32 %v3447, %v3495
        %3497 = vmatmul.bf16.gmra.mxu0 %v683
        %v3498 = vpop.f32.mrf.mxu0
        %v3499 = vadd.f32 %v3450, %v3498
        %v3500 = vpop.f32.mrf.mxu0
        %v3501 = vadd.f32 %v3452, %v3500
        %3502 = vmatmul.bf16.gmra.mxu0 %v689
        %v3503 = vpop.f32.mrf.mxu0
        %v3504 = vadd.f32 %v3455, %v3503
        %v3505 = vpop.f32.mrf.mxu0
        %v3506 = vadd.f32 %v3457, %v3505
        %3507 = vmatmul.bf16.gmra.mxu0 %v695
        %v3508 = vpop.f32.mrf.mxu0
        %v3509 = vadd.f32 %v3460, %v3508
        %v3510 = vpop.f32.mrf.mxu0
        %v3511 = vadd.f32 %v3462, %v3510
        %3512 = vmatmul.bf16.gmra.mxu0 %v701
        %v3513 = vpop.f32.mrf.mxu0
        %v3514 = vadd.f32 %v3465, %v3513
        %v3515 = vpop.f32.mrf.mxu0
        %v3516 = vadd.f32 %v3467, %v3515
        %3517 = vmatmul.bf16.gmra.mxu0 %v707
        %v3518 = vpop.f32.mrf.mxu0
        %v3519 = vadd.f32 %v3470, %v3518
        %v3520 = vpop.f32.mrf.mxu0
        %v3521 = vadd.f32 %v3472, %v3520
        %3522 = vmatmul.bf16.gmra.mxu0 %v713
        %v3523 = vpop.f32.mrf.mxu0
        %v3524 = vadd.f32 %v3475, %v3523
        %v3525 = vpop.f32.mrf.mxu0
        %v3526 = vadd.f32 %v3477, %v3525
        %3527 = vdwg.mxu0
        %3528 = vmatpush.bf16.msra.mxu0 %v1819
        %3529 = vmatpush.bf16.msra.mxu0 %v1813
        %3530 = vmatpush.bf16.msra.mxu0 %v1807
        %3531 = vmatpush.bf16.msra.mxu0 %v1801
        %3532 = vmatpush.bf16.msra.mxu0 %v1795
        %3533 = vmatpush.bf16.msra.mxu0 %v1789
        %3534 = vmatpush.bf16.msra.mxu0 %v1783
        %3535 = vmatpush.bf16.msra.mxu0 %v1777
        %3536 = vmatmul.bf16.gmra.mxu0 %v672
        %v3537 = vpop.f32.mrf.mxu0
        %v3538 = vadd.f32 %v3489, %v3537
        %v3539 = vpop.f32.mrf.mxu0
        %v3540 = vadd.f32 %v3491, %v3539
        %3541 = vmatmul.bf16.gmra.mxu0 %v678
        %v3542 = vpop.f32.mrf.mxu0
        %v3543 = vadd.f32 %v3494, %v3542
        %v3544 = vpop.f32.mrf.mxu0
        %v3545 = vadd.f32 %v3496, %v3544
        %3546 = vmatmul.bf16.gmra.mxu0 %v684
        %v3547 = vpop.f32.mrf.mxu0
        %v3548 = vadd.f32 %v3499, %v3547
        %v3549 = vpop.f32.mrf.mxu0
        %v3550 = vadd.f32 %v3501, %v3549
        %3551 = vmatmul.bf16.gmra.mxu0 %v690
        %v3552 = vpop.f32.mrf.mxu0
        %v3553 = vadd.f32 %v3504, %v3552
        %v3554 = vpop.f32.mrf.mxu0
        %v3555 = vadd.f32 %v3506, %v3554
        %3556 = vmatmul.bf16.gmra.mxu0 %v696
        %v3557 = vpop.f32.mrf.mxu0
        %v3558 = vadd.f32 %v3509, %v3557
        %v3559 = vpop.f32.mrf.mxu0
        %v3560 = vadd.f32 %v3511, %v3559
        %3561 = vmatmul.bf16.gmra.mxu0 %v702
        %v3562 = vpop.f32.mrf.mxu0
        %v3563 = vadd.f32 %v3514, %v3562
        %v3564 = vpop.f32.mrf.mxu0
        %v3565 = vadd.f32 %v3516, %v3564
        %3566 = vmatmul.bf16.gmra.mxu0 %v708
        %v3567 = vpop.f32.mrf.mxu0
        %v3568 = vadd.f32 %v3519, %v3567
        %v3569 = vpop.f32.mrf.mxu0
        %v3570 = vadd.f32 %v3521, %v3569
        %3571 = vmatmul.bf16.gmra.mxu0 %v714
        %v3572 = vpop.f32.mrf.mxu0
        %v3573 = vadd.f32 %v3524, %v3572
        %v3574 = vpop.f32.mrf.mxu0
        %v3575 = vadd.f32 %v3526, %v3574
        %3576 = vdwg.mxu0
        %3577 = vmatpush.bf16.msra.mxu0 %v1867
        %3578 = vmatpush.bf16.msra.mxu0 %v1861
        %3579 = vmatpush.bf16.msra.mxu0 %v1855
        %3580 = vmatpush.bf16.msra.mxu0 %v1849
        %3581 = vmatpush.bf16.msra.mxu0 %v1843
        %3582 = vmatpush.bf16.msra.mxu0 %v1837
        %3583 = vmatpush.bf16.msra.mxu0 %v1831
        %3584 = vmatpush.bf16.msra.mxu0 %v1825
        %3585 = vmatmul.bf16.gmra.mxu0 %v673
        %v3586 = vpop.f32.mrf.mxu0
        %v3587 = vadd.f32 %v3538, %v3586
        %v3588 = vpop.f32.mrf.mxu0
        %v3589 = vadd.f32 %v3540, %v3588
        %3590 = vmatmul.bf16.gmra.mxu0 %v679
        %v3591 = vpop.f32.mrf.mxu0
        %v3592 = vadd.f32 %v3543, %v3591
        %v3593 = vpop.f32.mrf.mxu0
        %v3594 = vadd.f32 %v3545, %v3593
        %3595 = vmatmul.bf16.gmra.mxu0 %v685
        %v3596 = vpop.f32.mrf.mxu0
        %v3597 = vadd.f32 %v3548, %v3596
        %v3598 = vpop.f32.mrf.mxu0
        %v3599 = vadd.f32 %v3550, %v3598
        %3600 = vmatmul.bf16.gmra.mxu0 %v691
        %v3601 = vpop.f32.mrf.mxu0
        %v3602 = vadd.f32 %v3553, %v3601
        %v3603 = vpop.f32.mrf.mxu0
        %v3604 = vadd.f32 %v3555, %v3603
        %3605 = vmatmul.bf16.gmra.mxu0 %v697
        %v3606 = vpop.f32.mrf.mxu0
        %v3607 = vadd.f32 %v3558, %v3606
        %v3608 = vpop.f32.mrf.mxu0
        %v3609 = vadd.f32 %v3560, %v3608
        %3610 = vmatmul.bf16.gmra.mxu0 %v703
        %v3611 = vpop.f32.mrf.mxu0
        %v3612 = vadd.f32 %v3563, %v3611
        %v3613 = vpop.f32.mrf.mxu0
        %v3614 = vadd.f32 %v3565, %v3613
        %3615 = vmatmul.bf16.gmra.mxu0 %v709
        %v3616 = vpop.f32.mrf.mxu0
        %v3617 = vadd.f32 %v3568, %v3616
        %v3618 = vpop.f32.mrf.mxu0
        %v3619 = vadd.f32 %v3570, %v3618
        %3620 = vmatmul.bf16.gmra.mxu0 %v715
        %v3621 = vpop.f32.mrf.mxu0
        %v3622 = vadd.f32 %v3573, %v3621
        %v3623 = vpop.f32.mrf.mxu0
        %v3624 = vadd.f32 %v3575, %v3623
        %3625 = vdwg.mxu0
        %3626 = vmatpush.bf16.msra.mxu0 %v1915
        %3627 = vmatpush.bf16.msra.mxu0 %v1909
        %3628 = vmatpush.bf16.msra.mxu0 %v1903
        %3629 = vmatpush.bf16.msra.mxu0 %v1897
        %3630 = vmatpush.bf16.msra.mxu0 %v1891
        %3631 = vmatpush.bf16.msra.mxu0 %v1885
        %3632 = vmatpush.bf16.msra.mxu0 %v1879
        %3633 = vmatpush.bf16.msra.mxu0 %v1873
        %3634 = vmatmul.bf16.gmra.mxu0 %v674
        %v3635 = vpop.f32.mrf.mxu0
        %v3636 = vadd.f32 %v3587, %v3635
        %v3637 = vpop.f32.mrf.mxu0
        %v3638 = vadd.f32 %v3589, %v3637
        %3639 = vmatmul.bf16.gmra.mxu0 %v680
        %v3640 = vpop.f32.mrf.mxu0
        %v3641 = vadd.f32 %v3592, %v3640
        %v3642 = vpop.f32.mrf.mxu0
        %v3643 = vadd.f32 %v3594, %v3642
        %3644 = vmatmul.bf16.gmra.mxu0 %v686
        %v3645 = vpop.f32.mrf.mxu0
        %v3646 = vadd.f32 %v3597, %v3645
        %v3647 = vpop.f32.mrf.mxu0
        %v3648 = vadd.f32 %v3599, %v3647
        %3649 = vmatmul.bf16.gmra.mxu0 %v692
        %v3650 = vpop.f32.mrf.mxu0
        %v3651 = vadd.f32 %v3602, %v3650
        %v3652 = vpop.f32.mrf.mxu0
        %v3653 = vadd.f32 %v3604, %v3652
        %3654 = vmatmul.bf16.gmra.mxu0 %v698
        %v3655 = vpop.f32.mrf.mxu0
        %v3656 = vadd.f32 %v3607, %v3655
        %v3657 = vpop.f32.mrf.mxu0
        %v3658 = vadd.f32 %v3609, %v3657
        %3659 = vmatmul.bf16.gmra.mxu0 %v704
        %v3660 = vpop.f32.mrf.mxu0
        %v3661 = vadd.f32 %v3612, %v3660
        %v3662 = vpop.f32.mrf.mxu0
        %v3663 = vadd.f32 %v3614, %v3662
        %3664 = vmatmul.bf16.gmra.mxu0 %v710
        %v3665 = vpop.f32.mrf.mxu0
        %v3666 = vadd.f32 %v3617, %v3665
        %v3667 = vpop.f32.mrf.mxu0
        %v3668 = vadd.f32 %v3619, %v3667
        %3669 = vmatmul.bf16.gmra.mxu0 %v716
        %v3670 = vpop.f32.mrf.mxu0
        %v3671 = vadd.f32 %v3622, %v3670
        %v3672 = vpop.f32.mrf.mxu0
        %v3673 = vadd.f32 %v3624, %v3672
        %3674 = vdwg.mxu0
        %3675 = vmatpush.bf16.msra.mxu0 %v1676
        %3676 = vmatpush.bf16.msra.mxu0 %v1670
        %3677 = vmatpush.bf16.msra.mxu0 %v1664
        %3678 = vmatpush.bf16.msra.mxu0 %v1658
        %3679 = vmatpush.bf16.msra.mxu0 %v1652
        %3680 = vmatpush.bf16.msra.mxu0 %v1646
        %3681 = vmatpush.bf16.msra.mxu0 %v1640
        %3682 = vmatpush.bf16.msra.mxu0 %v1634
        %3683 = vmatmul.bf16.gmra.mxu0 %v669
        %v3684 = vpop.f32.mrf.mxu0
        %v3685 = vadd.f32 %v518, %v3684
        %v3686 = vpop.f32.mrf.mxu0
        %v3687 = vadd.f32 %v518, %v3686
        %3688 = vmatmul.bf16.gmra.mxu0 %v675
        %v3689 = vpop.f32.mrf.mxu0
        %v3690 = vadd.f32 %v518, %v3689
        %v3691 = vpop.f32.mrf.mxu0
        %v3692 = vadd.f32 %v518, %v3691
        %3693 = vmatmul.bf16.gmra.mxu0 %v681
        %v3694 = vpop.f32.mrf.mxu0
        %v3695 = vadd.f32 %v518, %v3694
        %v3696 = vpop.f32.mrf.mxu0
        %v3697 = vadd.f32 %v518, %v3696
        %3698 = vmatmul.bf16.gmra.mxu0 %v687
        %v3699 = vpop.f32.mrf.mxu0
        %v3700 = vadd.f32 %v518, %v3699
        %v3701 = vpop.f32.mrf.mxu0
        %v3702 = vadd.f32 %v518, %v3701
        %3703 = vmatmul.bf16.gmra.mxu0 %v693
        %v3704 = vpop.f32.mrf.mxu0
        %v3705 = vadd.f32 %v518, %v3704
        %v3706 = vpop.f32.mrf.mxu0
        %v3707 = vadd.f32 %v518, %v3706
        %3708 = vmatmul.bf16.gmra.mxu0 %v699
        %v3709 = vpop.f32.mrf.mxu0
        %v3710 = vadd.f32 %v518, %v3709
        %v3711 = vpop.f32.mrf.mxu0
        %v3712 = vadd.f32 %v518, %v3711
        %3713 = vmatmul.bf16.gmra.mxu0 %v705
        %v3714 = vpop.f32.mrf.mxu0
        %v3715 = vadd.f32 %v518, %v3714
        %v3716 = vpop.f32.mrf.mxu0
        %v3717 = vadd.f32 %v518, %v3716
        %3718 = vmatmul.bf16.gmra.mxu0 %v711
        %v3719 = vpop.f32.mrf.mxu0
        %v3720 = vadd.f32 %v518, %v3719
        %v3721 = vpop.f32.mrf.mxu0
        %v3722 = vadd.f32 %v518, %v3721
        %3723 = vdwg.mxu0
        %3724 = vmatpush.bf16.msra.mxu0 %v1724
        %3725 = vmatpush.bf16.msra.mxu0 %v1718
        %3726 = vmatpush.bf16.msra.mxu0 %v1712
        %3727 = vmatpush.bf16.msra.mxu0 %v1706
        %3728 = vmatpush.bf16.msra.mxu0 %v1700
        %3729 = vmatpush.bf16.msra.mxu0 %v1694
        %3730 = vmatpush.bf16.msra.mxu0 %v1688
        %3731 = vmatpush.bf16.msra.mxu0 %v1682
        %3732 = vmatmul.bf16.gmra.mxu0 %v670
        %v3733 = vpop.f32.mrf.mxu0
        %v3734 = vadd.f32 %v3685, %v3733
        %v3735 = vpop.f32.mrf.mxu0
        %v3736 = vadd.f32 %v3687, %v3735
        %3737 = vmatmul.bf16.gmra.mxu0 %v676
        %v3738 = vpop.f32.mrf.mxu0
        %v3739 = vadd.f32 %v3690, %v3738
        %v3740 = vpop.f32.mrf.mxu0
        %v3741 = vadd.f32 %v3692, %v3740
        %3742 = vmatmul.bf16.gmra.mxu0 %v682
        %v3743 = vpop.f32.mrf.mxu0
        %v3744 = vadd.f32 %v3695, %v3743
        %v3745 = vpop.f32.mrf.mxu0
        %v3746 = vadd.f32 %v3697, %v3745
        %3747 = vmatmul.bf16.gmra.mxu0 %v688
        %v3748 = vpop.f32.mrf.mxu0
        %v3749 = vadd.f32 %v3700, %v3748
        %v3750 = vpop.f32.mrf.mxu0
        %v3751 = vadd.f32 %v3702, %v3750
        %3752 = vmatmul.bf16.gmra.mxu0 %v694
        %v3753 = vpop.f32.mrf.mxu0
        %v3754 = vadd.f32 %v3705, %v3753
        %v3755 = vpop.f32.mrf.mxu0
        %v3756 = vadd.f32 %v3707, %v3755
        %3757 = vmatmul.bf16.gmra.mxu0 %v700
        %v3758 = vpop.f32.mrf.mxu0
        %v3759 = vadd.f32 %v3710, %v3758
        %v3760 = vpop.f32.mrf.mxu0
        %v3761 = vadd.f32 %v3712, %v3760
        %3762 = vmatmul.bf16.gmra.mxu0 %v706
        %v3763 = vpop.f32.mrf.mxu0
        %v3764 = vadd.f32 %v3715, %v3763
        %v3765 = vpop.f32.mrf.mxu0
        %v3766 = vadd.f32 %v3717, %v3765
        %3767 = vmatmul.bf16.gmra.mxu0 %v712
        %v3768 = vpop.f32.mrf.mxu0
        %v3769 = vadd.f32 %v3720, %v3768
        %v3770 = vpop.f32.mrf.mxu0
        %v3771 = vadd.f32 %v3722, %v3770
        %3772 = vdwg.mxu0
        %3773 = vmatpush.bf16.msra.mxu0 %v1772
        %3774 = vmatpush.bf16.msra.mxu0 %v1766
        %3775 = vmatpush.bf16.msra.mxu0 %v1760
        %3776 = vmatpush.bf16.msra.mxu0 %v1754
        %3777 = vmatpush.bf16.msra.mxu0 %v1748
        %3778 = vmatpush.bf16.msra.mxu0 %v1742
        %3779 = vmatpush.bf16.msra.mxu0 %v1736
        %3780 = vmatpush.bf16.msra.mxu0 %v1730
        %3781 = vmatmul.bf16.gmra.mxu0 %v671
        %v3782 = vpop.f32.mrf.mxu0
        %v3783 = vadd.f32 %v3734, %v3782
        %v3784 = vpop.f32.mrf.mxu0
        %v3785 = vadd.f32 %v3736, %v3784
        %3786 = vmatmul.bf16.gmra.mxu0 %v677
        %v3787 = vpop.f32.mrf.mxu0
        %v3788 = vadd.f32 %v3739, %v3787
        %v3789 = vpop.f32.mrf.mxu0
        %v3790 = vadd.f32 %v3741, %v3789
        %3791 = vmatmul.bf16.gmra.mxu0 %v683
        %v3792 = vpop.f32.mrf.mxu0
        %v3793 = vadd.f32 %v3744, %v3792
        %v3794 = vpop.f32.mrf.mxu0
        %v3795 = vadd.f32 %v3746, %v3794
        %3796 = vmatmul.bf16.gmra.mxu0 %v689
        %v3797 = vpop.f32.mrf.mxu0
        %v3798 = vadd.f32 %v3749, %v3797
        %v3799 = vpop.f32.mrf.mxu0
        %v3800 = vadd.f32 %v3751, %v3799
        %3801 = vmatmul.bf16.gmra.mxu0 %v695
        %v3802 = vpop.f32.mrf.mxu0
        %v3803 = vadd.f32 %v3754, %v3802
        %v3804 = vpop.f32.mrf.mxu0
        %v3805 = vadd.f32 %v3756, %v3804
        %3806 = vmatmul.bf16.gmra.mxu0 %v701
        %v3807 = vpop.f32.mrf.mxu0
        %v3808 = vadd.f32 %v3759, %v3807
        %v3809 = vpop.f32.mrf.mxu0
        %v3810 = vadd.f32 %v3761, %v3809
        %3811 = vmatmul.bf16.gmra.mxu0 %v707
        %v3812 = vpop.f32.mrf.mxu0
        %v3813 = vadd.f32 %v3764, %v3812
        %v3814 = vpop.f32.mrf.mxu0
        %v3815 = vadd.f32 %v3766, %v3814
        %3816 = vmatmul.bf16.gmra.mxu0 %v713
        %v3817 = vpop.f32.mrf.mxu0
        %v3818 = vadd.f32 %v3769, %v3817
        %v3819 = vpop.f32.mrf.mxu0
        %v3820 = vadd.f32 %v3771, %v3819
        %3821 = vdwg.mxu0
        %3822 = vmatpush.bf16.msra.mxu0 %v1820
        %3823 = vmatpush.bf16.msra.mxu0 %v1814
        %3824 = vmatpush.bf16.msra.mxu0 %v1808
        %3825 = vmatpush.bf16.msra.mxu0 %v1802
        %3826 = vmatpush.bf16.msra.mxu0 %v1796
        %3827 = vmatpush.bf16.msra.mxu0 %v1790
        %3828 = vmatpush.bf16.msra.mxu0 %v1784
        %3829 = vmatpush.bf16.msra.mxu0 %v1778
        %3830 = vmatmul.bf16.gmra.mxu0 %v672
        %v3831 = vpop.f32.mrf.mxu0
        %v3832 = vadd.f32 %v3783, %v3831
        %v3833 = vpop.f32.mrf.mxu0
        %v3834 = vadd.f32 %v3785, %v3833
        %3835 = vmatmul.bf16.gmra.mxu0 %v678
        %v3836 = vpop.f32.mrf.mxu0
        %v3837 = vadd.f32 %v3788, %v3836
        %v3838 = vpop.f32.mrf.mxu0
        %v3839 = vadd.f32 %v3790, %v3838
        %3840 = vmatmul.bf16.gmra.mxu0 %v684
        %v3841 = vpop.f32.mrf.mxu0
        %v3842 = vadd.f32 %v3793, %v3841
        %v3843 = vpop.f32.mrf.mxu0
        %v3844 = vadd.f32 %v3795, %v3843
        %3845 = vmatmul.bf16.gmra.mxu0 %v690
        %v3846 = vpop.f32.mrf.mxu0
        %v3847 = vadd.f32 %v3798, %v3846
        %v3848 = vpop.f32.mrf.mxu0
        %v3849 = vadd.f32 %v3800, %v3848
        %3850 = vmatmul.bf16.gmra.mxu0 %v696
        %v3851 = vpop.f32.mrf.mxu0
        %v3852 = vadd.f32 %v3803, %v3851
        %v3853 = vpop.f32.mrf.mxu0
        %v3854 = vadd.f32 %v3805, %v3853
        %3855 = vmatmul.bf16.gmra.mxu0 %v702
        %v3856 = vpop.f32.mrf.mxu0
        %v3857 = vadd.f32 %v3808, %v3856
        %v3858 = vpop.f32.mrf.mxu0
        %v3859 = vadd.f32 %v3810, %v3858
        %3860 = vmatmul.bf16.gmra.mxu0 %v708
        %v3861 = vpop.f32.mrf.mxu0
        %v3862 = vadd.f32 %v3813, %v3861
        %v3863 = vpop.f32.mrf.mxu0
        %v3864 = vadd.f32 %v3815, %v3863
        %3865 = vmatmul.bf16.gmra.mxu0 %v714
        %v3866 = vpop.f32.mrf.mxu0
        %v3867 = vadd.f32 %v3818, %v3866
        %v3868 = vpop.f32.mrf.mxu0
        %v3869 = vadd.f32 %v3820, %v3868
        %3870 = vdwg.mxu0
        %3871 = vmatpush.bf16.msra.mxu0 %v1868
        %3872 = vmatpush.bf16.msra.mxu0 %v1862
        %3873 = vmatpush.bf16.msra.mxu0 %v1856
        %3874 = vmatpush.bf16.msra.mxu0 %v1850
        %3875 = vmatpush.bf16.msra.mxu0 %v1844
        %3876 = vmatpush.bf16.msra.mxu0 %v1838
        %3877 = vmatpush.bf16.msra.mxu0 %v1832
        %3878 = vmatpush.bf16.msra.mxu0 %v1826
        %3879 = vmatmul.bf16.gmra.mxu0 %v673
        %v3880 = vpop.f32.mrf.mxu0
        %v3881 = vadd.f32 %v3832, %v3880
        %v3882 = vpop.f32.mrf.mxu0
        %v3883 = vadd.f32 %v3834, %v3882
        %3884 = vmatmul.bf16.gmra.mxu0 %v679
        %v3885 = vpop.f32.mrf.mxu0
        %v3886 = vadd.f32 %v3837, %v3885
        %v3887 = vpop.f32.mrf.mxu0
        %v3888 = vadd.f32 %v3839, %v3887
        %3889 = vmatmul.bf16.gmra.mxu0 %v685
        %v3890 = vpop.f32.mrf.mxu0
        %v3891 = vadd.f32 %v3842, %v3890
        %v3892 = vpop.f32.mrf.mxu0
        %v3893 = vadd.f32 %v3844, %v3892
        %3894 = vmatmul.bf16.gmra.mxu0 %v691
        %v3895 = vpop.f32.mrf.mxu0
        %v3896 = vadd.f32 %v3847, %v3895
        %v3897 = vpop.f32.mrf.mxu0
        %v3898 = vadd.f32 %v3849, %v3897
        %3899 = vmatmul.bf16.gmra.mxu0 %v697
        %v3900 = vpop.f32.mrf.mxu0
        %v3901 = vadd.f32 %v3852, %v3900
        %v3902 = vpop.f32.mrf.mxu0
        %v3903 = vadd.f32 %v3854, %v3902
        %3904 = vmatmul.bf16.gmra.mxu0 %v703
        %v3905 = vpop.f32.mrf.mxu0
        %v3906 = vadd.f32 %v3857, %v3905
        %v3907 = vpop.f32.mrf.mxu0
        %v3908 = vadd.f32 %v3859, %v3907
        %3909 = vmatmul.bf16.gmra.mxu0 %v709
        %v3910 = vpop.f32.mrf.mxu0
        %v3911 = vadd.f32 %v3862, %v3910
        %v3912 = vpop.f32.mrf.mxu0
        %v3913 = vadd.f32 %v3864, %v3912
        %3914 = vmatmul.bf16.gmra.mxu0 %v715
        %v3915 = vpop.f32.mrf.mxu0
        %v3916 = vadd.f32 %v3867, %v3915
        %v3917 = vpop.f32.mrf.mxu0
        %v3918 = vadd.f32 %v3869, %v3917
        %3919 = vdwg.mxu0
        %3920 = vmatpush.bf16.msra.mxu0 %v1916
        %3921 = vmatpush.bf16.msra.mxu0 %v1910
        %3922 = vmatpush.bf16.msra.mxu0 %v1904
        %3923 = vmatpush.bf16.msra.mxu0 %v1898
        %3924 = vmatpush.bf16.msra.mxu0 %v1892
        %3925 = vmatpush.bf16.msra.mxu0 %v1886
        %3926 = vmatpush.bf16.msra.mxu0 %v1880
        %3927 = vmatpush.bf16.msra.mxu0 %v1874
        %3928 = vmatmul.bf16.gmra.mxu0 %v674
        %v3929 = vpop.f32.mrf.mxu0
        %v3930 = vadd.f32 %v3881, %v3929
        %v3931 = vpop.f32.mrf.mxu0
        %v3932 = vadd.f32 %v3883, %v3931
        %3933 = vmatmul.bf16.gmra.mxu0 %v680
        %v3934 = vpop.f32.mrf.mxu0
        %v3935 = vadd.f32 %v3886, %v3934
        %v3936 = vpop.f32.mrf.mxu0
        %v3937 = vadd.f32 %v3888, %v3936
        %3938 = vmatmul.bf16.gmra.mxu0 %v686
        %v3939 = vpop.f32.mrf.mxu0
        %v3940 = vadd.f32 %v3891, %v3939
        %v3941 = vpop.f32.mrf.mxu0
        %v3942 = vadd.f32 %v3893, %v3941
        %3943 = vmatmul.bf16.gmra.mxu0 %v692
        %v3944 = vpop.f32.mrf.mxu0
        %v3945 = vadd.f32 %v3896, %v3944
        %v3946 = vpop.f32.mrf.mxu0
        %v3947 = vadd.f32 %v3898, %v3946
        %3948 = vmatmul.bf16.gmra.mxu0 %v698
        %v3949 = vpop.f32.mrf.mxu0
        %v3950 = vadd.f32 %v3901, %v3949
        %v3951 = vpop.f32.mrf.mxu0
        %v3952 = vadd.f32 %v3903, %v3951
        %3953 = vmatmul.bf16.gmra.mxu0 %v704
        %v3954 = vpop.f32.mrf.mxu0
        %v3955 = vadd.f32 %v3906, %v3954
        %v3956 = vpop.f32.mrf.mxu0
        %v3957 = vadd.f32 %v3908, %v3956
        %3958 = vmatmul.bf16.gmra.mxu0 %v710
        %v3959 = vpop.f32.mrf.mxu0
        %v3960 = vadd.f32 %v3911, %v3959
        %v3961 = vpop.f32.mrf.mxu0
        %v3962 = vadd.f32 %v3913, %v3961
        %3963 = vmatmul.bf16.gmra.mxu0 %v716
        %v3964 = vpop.f32.mrf.mxu0
        %v3965 = vadd.f32 %v3916, %v3964
        %v3966 = vpop.f32.mrf.mxu0
        %v3967 = vadd.f32 %v3918, %v3966
        %3968 = vdwg.mxu0
        %v3969 = vpack.c.bf16 %v2754, %v2460
        %v3970 = vpack.c.bf16 %v3342, %v3048
        %v3971 = vpack.c.bf16 %v3930, %v3636
        %v3972 = vpack.c.bf16 %v2756, %v2462
        %v3973 = vpack.c.bf16 %v3344, %v3050
        %v3974 = vpack.c.bf16 %v3932, %v3638
        %v3975 = vpack.c.bf16 %v2759, %v2465
        %v3976 = vpack.c.bf16 %v3347, %v3053
        %v3977 = vpack.c.bf16 %v3935, %v3641
        %v3978 = vpack.c.bf16 %v2761, %v2467
        %v3979 = vpack.c.bf16 %v3349, %v3055
        %v3980 = vpack.c.bf16 %v3937, %v3643
        %v3981 = vpack.c.bf16 %v2764, %v2470
        %v3982 = vpack.c.bf16 %v3352, %v3058
        %v3983 = vpack.c.bf16 %v3940, %v3646
        %v3984 = vpack.c.bf16 %v2766, %v2472
        %v3985 = vpack.c.bf16 %v3354, %v3060
        %v3986 = vpack.c.bf16 %v3942, %v3648
        %v3987 = vpack.c.bf16 %v2769, %v2475
        %v3988 = vpack.c.bf16 %v3357, %v3063
        %v3989 = vpack.c.bf16 %v3945, %v3651
        %v3990 = vpack.c.bf16 %v2771, %v2477
        %v3991 = vpack.c.bf16 %v3359, %v3065
        %v3992 = vpack.c.bf16 %v3947, %v3653
        %v3993 = vpack.c.bf16 %v2774, %v2480
        %v3994 = vpack.c.bf16 %v3362, %v3068
        %v3995 = vpack.c.bf16 %v3950, %v3656
        %v3996 = vpack.c.bf16 %v2776, %v2482
        %v3997 = vpack.c.bf16 %v3364, %v3070
        %v3998 = vpack.c.bf16 %v3952, %v3658
        %v3999 = vpack.c.bf16 %v2779, %v2485
        %v4000 = vpack.c.bf16 %v3367, %v3073
        %v4001 = vpack.c.bf16 %v3955, %v3661
        %v4002 = vpack.c.bf16 %v2781, %v2487
        %v4003 = vpack.c.bf16 %v3369, %v3075
        %v4004 = vpack.c.bf16 %v3957, %v3663
        %v4005 = vpack.c.bf16 %v2784, %v2490
        %v4006 = vpack.c.bf16 %v3372, %v3078
        %v4007 = vpack.c.bf16 %v3960, %v3666
        %v4008 = vpack.c.bf16 %v2786, %v2492
        %v4009 = vpack.c.bf16 %v3374, %v3080
        %v4010 = vpack.c.bf16 %v3962, %v3668
        %v4011 = vpack.c.bf16 %v2789, %v2495
        %v4012 = vpack.c.bf16 %v3377, %v3083
        %v4013 = vpack.c.bf16 %v3965, %v3671
        %v4014 = vpack.c.bf16 %v2791, %v2497
        %v4015 = vpack.c.bf16 %v3379, %v3085
        %v4016 = vpack.c.bf16 %v3967, %v3673
        %4017 = vst [vmem:[%s166] sm:$0xff] %v3969
        %4018 = vst [vmem:[%s166 + $0x8] sm:$0xff] %v3970
        %4019 = vst [vmem:[%s166 + $0x10] sm:$0xff] %v3971
        %4020 = vst [vmem:[%s166 + $0x18] sm:$0xff] %v3972
        %4021 = vst [vmem:[%s166 + $0x20] sm:$0xff] %v3973
        %4022 = vst [vmem:[%s166 + $0x28] sm:$0xff] %v3974
        %4023 = vst [vmem:[%s166 + $0x30] sm:$0xff] %v3975
        %4024 = vst [vmem:[%s166 + $0x38] sm:$0xff] %v3976
        %4025 = vst [vmem:[%s166 + $0x40] sm:$0xff] %v3977
        %4026 = vst [vmem:[%s166 + $0x48] sm:$0xff] %v3978
        %4027 = vst [vmem:[%s166 + $0x50] sm:$0xff] %v3979
        %4028 = vst [vmem:[%s166 + $0x58] sm:$0xff] %v3980
        %4029 = vst [vmem:[%s166 + $0x60] sm:$0xff] %v3981
        %4030 = vst [vmem:[%s166 + $0x68] sm:$0xff] %v3982
        %4031 = vst [vmem:[%s166 + $0x70] sm:$0xff] %v3983
        %4032 = vst [vmem:[%s166 + $0x78] sm:$0xff] %v3984
        %4033 = vst [vmem:[%s166 + $0x80] sm:$0xff] %v3985
        %4034 = vst [vmem:[%s166 + $0x88] sm:$0xff] %v3986
        %4035 = vst [vmem:[%s166 + $0x90] sm:$0xff] %v3987
        %4036 = vst [vmem:[%s166 + $0x98] sm:$0xff] %v3988
        %4037 = vst [vmem:[%s166 + $0xa0] sm:$0xff] %v3989
        %4038 = vst [vmem:[%s166 + $0xa8] sm:$0xff] %v3990
        %4039 = vst [vmem:[%s166 + $0xb0] sm:$0xff] %v3991
        %4040 = vst [vmem:[%s166 + $0xb8] sm:$0xff] %v3992
        %4041 = vst [vmem:[%s166 + $0xc0] sm:$0xff] %v3993
        %4042 = vst [vmem:[%s166 + $0xc8] sm:$0xff] %v3994
        %4043 = vst [vmem:[%s166 + $0xd0] sm:$0xff] %v3995
        %4044 = vst [vmem:[%s166 + $0xd8] sm:$0xff] %v3996
        %4045 = vst [vmem:[%s166 + $0xe0] sm:$0xff] %v3997
        %4046 = vst [vmem:[%s166 + $0xe8] sm:$0xff] %v3998
        %4047 = vst [vmem:[%s166 + $0xf0] sm:$0xff] %v3999
        %4048 = vst [vmem:[%s166 + $0xf8] sm:$0xff] %v4000
        %4049 = vst [vmem:[%s166 + $0x100] sm:$0xff] %v4001
        %4050 = vst [vmem:[%s166 + $0x108] sm:$0xff] %v4002
        %4051 = vst [vmem:[%s166 + $0x110] sm:$0xff] %v4003
        %4052 = vst [vmem:[%s166 + $0x118] sm:$0xff] %v4004
        %4053 = vst [vmem:[%s166 + $0x120] sm:$0xff] %v4005
        %4054 = vst [vmem:[%s166 + $0x128] sm:$0xff] %v4006
        %4055 = vst [vmem:[%s166 + $0x130] sm:$0xff] %v4007
        %4056 = vst [vmem:[%s166 + $0x138] sm:$0xff] %v4008
        %4057 = vst [vmem:[%s166 + $0x140] sm:$0xff] %v4009
        %4058 = vst [vmem:[%s166 + $0x148] sm:$0xff] %v4010
        %4059 = vst [vmem:[%s166 + $0x150] sm:$0xff] %v4011
        %4060 = vst [vmem:[%s166 + $0x158] sm:$0xff] %v4012
        %4061 = vst [vmem:[%s166 + $0x160] sm:$0xff] %v4013
        %4062 = vst [vmem:[%s166 + $0x168] sm:$0xff] %v4014
        %4063 = vst [vmem:[%s166 + $0x170] sm:$0xff] %v4015
        %4064 = vst [vmem:[%s166 + $0x178] sm:$0xff] %v4016
        %s4065 = sand.u32 %s93, 1
        %s4066 = scalar_lea.sflag [#allocation3], %s4065
        %s4067 = sand.u32 %s93, 1
        %s4068 = smul.addr %s4067, 384
        %s4069 = scalar_lea.vmem [#allocation2], %s4068
        // Predicated region
        $region33: #{patch_embedding_forward.1} parent=31 // pred_check
          %p4070 = pneg %p103
        $region34: #{patch_embedding_forward.1} parent=31 // pred_check_branch
          %4072 = sbr.rel (%p4070) target = $region36
        $region35: #{patch_embedding_forward.1} parent=31 // pred_region
          %s4073 = smul.u32 16, %s17
          %4075 = vsyncadd %s4066, 0
          %s4076 = smul.addr %s4073, 6
          %s4077 = smul.addr %s4076, 4
          %s4078 = scalar_lea.hbm %s3, %s4077
          %s4079 = sshll.u32 %s4069, 4
          %s4080 = int_to_ptr.vmem [resolvable:$true] %s4079
          %s4081 = sshll.u32 %s4078, 4
          %s4082 = int_to_ptr.hbm [resolvable:$true] %s4081
          %4087 = dma.vmem_to_hbm [thread:$0]  %s4080, 6144, %s4082, %s4066, 384, 384, 24
        $region36: #{patch_embedding_forward.1} parent=31 // pred_fallthru
          _
      $region32: #{patch_embedding_forward.1} parent=5 // pred_fallthru
        _
      %p4088 = scmp.le.s32.totalorder 2, %s12
      // Predicated region
      $region37: #{patch_embedding_forward.1} parent=5 // pred_check
        %p4089 = pneg %p4088
      $region38: #{patch_embedding_forward.1} parent=5 // pred_check_branch
        %4091 = sbr.rel (%p4089) target = $region40
      $region39: #{patch_embedding_forward.1} parent=5 // pred_region
        %s4092 = ssub.s32 %s12, 2
        // Predicated region
        $region41: #{patch_embedding_forward.1} parent=39 // pred_check
          %p4093 = pneg %p109
        $region42: #{patch_embedding_forward.1} parent=39 // pred_check_branch
          %4095 = sbr.rel (%p4093) target = $region44
        $region43: #{patch_embedding_forward.1} parent=39 // pred_region
          %s4096 = sand.u32 %s94, 1
          %s4097 = scalar_lea.sflag [#allocation3], %s4096
          %s4098 = sand.u32 %s94, 1
          %s4099 = smul.addr %s4098, 384
          %s4100 = scalar_lea.vmem [#allocation2], %s4099
          %4102 = dma.done %s4097, 6144
        $region44: #{patch_embedding_forward.1} parent=39 // pred_fallthru
          _
      $region40: #{patch_embedding_forward.1} parent=5 // pred_fallthru
        _
    $region6: #{patch_embedding_forward.1} parent=1 // loop_footer
      %s16 = sadd.s32 1, %s12
    $region7: #{patch_embedding_forward.1} parent=1 // loop_footer_branch
      %11 = sbr.rel target = $region3
    $region8: #{patch_embedding_forward.1} parent=1 // loop_exit
      _
    %4103 = vsyncpa [#allocation3], 1
    %s4104 = scalar_lea.sflag [#allocation3], 1
    %4105 = vsyncpa %s4104, 1

</llo_original>
